<compile_context>
chip_gen: v7x
topology: tpu7x:2x2x1
jax: 0.10.0
libtpu: 0.0.40
codegen_flags: <defaults>
</compile_context>

<pallas_src>
import functools

import jax
import jax.numpy as jnp
from jax.experimental import pallas as pl
from jax.experimental.pallas import tpu as pltpu

INPUT_SIZE = 300
HIDDEN_SIZE = 150
NUM_LAYERS = 3


def _round_up(x, m):
    return ((x + m - 1) // m) * m


# ----------------------------------------------------------------------------
# Pallas kernel: both heads fused.  grid = (head, n1_tile).
#   layer1 is tiled over its output (N) dim; partial h1 slabs land in a VMEM
#   scratch; layers 2+3 run on the last n1 tile of each head.
# ----------------------------------------------------------------------------
def _make_heads_kernel(n1_tiles, tn1):
    def kernel(x_ref, w1_ref, b1_ref, w2_ref, b2_ref, w3_ref, b3_ref,
               o_ref, h1_ref):
        n = pl.program_id(1)

        x = x_ref[...].astype(jnp.bfloat16)                      # (Bp, Sp)
        h1 = jnp.dot(x, w1_ref[...],
                     preferred_element_type=jnp.float32) + b1_ref[...]
        h1 = jnp.maximum(h1, 0.0)                                # (Bp, TN1)
        if n1_tiles == 1:
            h1_ref[...] = h1
        else:
            start = pl.multiple_of(n * tn1, 128)
            h1_ref[:, pl.ds(start, tn1)] = h1

        @pl.when(n == n1_tiles - 1)
        def _():
            h1_full = h1_ref[...].astype(jnp.bfloat16)           # (Bp, H1p)
            h2 = jnp.dot(h1_full, w2_ref[...],
                         preferred_element_type=jnp.float32) + b2_ref[...]
            h2 = jnp.maximum(h2, 0.0).astype(jnp.bfloat16)       # (Bp, H2p)
            h3 = jnp.dot(h2, w3_ref[...],
                         preferred_element_type=jnp.float32) + b3_ref[...]
            o_ref[...] = jnp.maximum(h3, 0.0)                    # (Bp, Cp)

    return kernel


def fused_heads(x, head_params):
    """x: (B, S) f32.  head_params: 6 arrays stacked on a leading head axis:
       w1 (2,Sp,H1p) bf16, b1 (2,1,H1p) f32, w2 (2,H1p,H2p) bf16,
       b2 (2,1,H2p) f32, w3 (2,H2p,Cp) bf16, b3 (2,1,Cp) f32.
       Returns (2, B_pad, Cp) f32."""
    w1, b1, w2, b2, w3, b3 = head_params
    B, S = x.shape
    S_pad, H1_pad = w1.shape[1], w1.shape[2]
    H2_pad = w2.shape[2]
    C_pad = w3.shape[2]
    B_pad = _round_up(max(B, 8), 8)

    x_pad = jnp.zeros((B_pad, S_pad), jnp.float32).at[:B, :S].set(x)

    # Layer-1 weight tile along its N (output) dim: keep each bf16 tile ~4 MB.
    tile_budget = 4 << 20
    tn1 = min(H1_pad, max(128, (tile_budget // (S_pad * 2)) // 128 * 128))
    while H1_pad % tn1 != 0:
        tn1 -= 128
    n1_tiles = H1_pad // tn1

    # Explicit VMEM budget (double buffers on inputs/outputs + scratch).
    est = (2 * B_pad * S_pad * 4 +        # x
           2 * S_pad * tn1 * 2 +          # w1 tile
           2 * 8 * tn1 * 4 +              # b1
           2 * H1_pad * H2_pad * 2 +      # w2
           2 * 8 * H2_pad * 4 +           # b2
           2 * H2_pad * C_pad * 2 +       # w3
           2 * 8 * C_pad * 4 +            # b3
           2 * B_pad * C_pad * 4 +        # out
           B_pad * H1_pad * 4)            # h1 scratch
    vmem_limit = int(min(max(2 * est, 16 << 20), 48 << 20))

    kernel = _make_heads_kernel(n1_tiles, tn1)

    out = pl.pallas_call(
        kernel,
        out_shape=jax.ShapeDtypeStruct((2, B_pad, C_pad), jnp.float32),
        grid_spec=pltpu.PrefetchScalarGridSpec(
            num_scalar_prefetch=0,
            grid=(2, n1_tiles),
            in_specs=[
                pl.BlockSpec((B_pad, S_pad), lambda h, n: (0, 0)),
                pl.BlockSpec((None, S_pad, tn1), lambda h, n: (h, 0, n)),
                pl.BlockSpec((None, 1, tn1), lambda h, n: (h, 0, n)),
                pl.BlockSpec((None, H1_pad, H2_pad), lambda h, n: (h, 0, 0)),
                pl.BlockSpec((None, 1, H2_pad), lambda h, n: (h, 0, 0)),
                pl.BlockSpec((None, H2_pad, C_pad), lambda h, n: (h, 0, 0)),
                pl.BlockSpec((None, 1, C_pad), lambda h, n: (h, 0, 0)),
            ],
            out_specs=pl.BlockSpec((None, B_pad, C_pad), lambda h, n: (h, 0, 0)),
            scratch_shapes=[pltpu.VMEM((B_pad, H1_pad), jnp.float32)],
        ),
        compiler_params=pltpu.CompilerParams(
            dimension_semantics=("parallel", "arbitrary"),
            vmem_limit_bytes=vmem_limit,
        ),
    )(x_pad, w1, b1, w2, b2, w3, b3)
    return out


# ----------------------------------------------------------------------------
# Plain-JAX LSTM glue (runs inside jit): only its final (h, c) matters.
# ----------------------------------------------------------------------------
def _lstm_cell(x, h, c, w_ih, w_hh, b_ih, b_hh):
    gates = x @ w_ih.T + h @ w_hh.T + b_ih + b_hh        # PyTorch order i,f,g,o
    i, f, g, o = jnp.split(gates, 4, axis=-1)
    i = jax.nn.sigmoid(i)
    f = jax.nn.sigmoid(f)
    g = jnp.tanh(g)
    o = jax.nn.sigmoid(o)
    c_new = f * c + i * g
    h_new = o * jnp.tanh(c_new)
    return h_new, c_new


def lstm_forward(data, lstm_params, h0, c0):
    """data: (B, T, in). Returns (out (B,T,2H), (h_n, c_n) each (6,B,H))."""
    x = data
    h_out, c_out = [], []
    for layer in range(NUM_LAYERS):
        outs = []
        for direction in range(2):
            idx = layer * 2 + direction
            w_ih, w_hh, b_ih, b_hh = lstm_params[idx]
            seq = x if direction == 0 else x[:, ::-1, :]

            def step(carry, x_t, w_ih=w_ih, w_hh=w_hh, b_ih=b_ih, b_hh=b_hh):
                h, c = carry
                h, c = _lstm_cell(x_t, h, c, w_ih, w_hh, b_ih, b_hh)
                return (h, c), h

            (h_f, c_f), ys = jax.lax.scan(step, (h0[idx], c0[idx]),
                                          jnp.swapaxes(seq, 0, 1))
            ys = jnp.swapaxes(ys, 0, 1)                  # (B, T, H)
            if direction == 1:
                ys = ys[:, ::-1, :]
            outs.append(ys)
            h_out.append(h_f)
            c_out.append(c_f)
        x = jnp.concatenate(outs, axis=-1)               # (B, T, 2H)
    return x, (jnp.stack(h_out), jnp.stack(c_out))


# ----------------------------------------------------------------------------
# Jitted functional forward (hidden state as explicit carry).
# ----------------------------------------------------------------------------
def _forward(lstm_params, head_params, data, h0, c0, *, seq_size, n_classes):
    out, (h_n, c_n) = lstm_forward(data, lstm_params, h0, c0)
    flat = data.reshape(out.shape[0], seq_size)
    heads_out = fused_heads(flat, head_params)
    B = data.shape[0]
    prediction_punc = heads_out[0, :B, :n_classes]
    prediction_cap = heads_out[1, :B, :2]
    return prediction_punc, prediction_cap, h_n, c_n


# ----------------------------------------------------------------------------
# Model wrapper mirroring PuncLstmPersistent
# ----------------------------------------------------------------------------
def _uniform(key, shape, fan_in):
    bound = 1.0 / jnp.sqrt(jnp.float32(fan_in))
    return jax.random.uniform(key, shape, jnp.float32, -bound, bound)


def _pad2d(a, rows, cols):
    return jnp.pad(a, ((0, rows - a.shape[0]), (0, cols - a.shape[1])))


class PuncLstmPersistentPallas:
    def __init__(self, classes, window_size, key):
        self.sequence_size = 300 * window_size
        self.hidden = None
        S = self.sequence_size
        n_classes = len(classes)
        H1, H2 = S // 2, S // 4
        S_pad = _round_up(S, 128)
        H1_pad = _round_up(H1, 128)
        H2_pad = _round_up(H2, 128)
        C_pad = 128

        keys = iter(jax.random.split(key, 64))

        # LSTM params: per (layer, direction): W_ih (4H,in), W_hh (4H,H), b_ih, b_hh
        self.lstm_params = []
        for layer in range(NUM_LAYERS):
            in_size = INPUT_SIZE if layer == 0 else 2 * HIDDEN_SIZE
            for _direction in range(2):
                w_ih = _uniform(next(keys), (4 * HIDDEN_SIZE, in_size), HIDDEN_SIZE)
                w_hh = _uniform(next(keys), (4 * HIDDEN_SIZE, HIDDEN_SIZE), HIDDEN_SIZE)
                b_ih = _uniform(next(keys), (4 * HIDDEN_SIZE,), HIDDEN_SIZE)
                b_hh = _uniform(next(keys), (4 * HIDDEN_SIZE,), HIDDEN_SIZE)
                self.lstm_params.append((w_ih, w_hh, b_ih, b_hh))

        def make_head(out_dim):
            dims = [(S, H1, S_pad, H1_pad),
                    (H1, H2, H1_pad, H2_pad),
                    (H2, out_dim, H2_pad, C_pad)]
            ws, bs = [], []
            for (din, dout, din_p, dout_p) in dims:
                w = _uniform(next(keys), (din, dout), din)      # (in, out)
                b = _uniform(next(keys), (1, dout), din)
                ws.append(_pad2d(w, din_p, dout_p).astype(jnp.bfloat16))
                bs.append(_pad2d(b, 1, dout_p)[None])           # (1,1,dout_p) f32
            return ws, bs

        (pw, pb) = make_head(n_classes)
        (cw, cb) = make_head(2)
        # Stack heads on a leading axis: punc = head 0, cap = head 1.
        self.head_params = (
            jnp.stack([pw[0], cw[0]]),               # w1 (2, S_pad, H1_pad) bf16
            jnp.concatenate([pb[0], cb[0]], axis=0),  # b1 (2, 1, H1_pad) f32
            jnp.stack([pw[1], cw[1]]),               # w2
            jnp.concatenate([pb[1], cb[1]], axis=0),  # b2
            jnp.stack([pw[2], cw[2]]),               # w3
            jnp.concatenate([pb[2], cb[2]], axis=0),  # b3
        )

        self._jit_forward = jax.jit(functools.partial(
            _forward, seq_size=S, n_classes=n_classes))

    def __call__(self, data):
        B = data.shape[0]
        if self.hidden is None:
            h0 = jnp.zeros((NUM_LAYERS * 2, B, HIDDEN_SIZE), jnp.float32)
            c0 = jnp.zeros_like(h0)
        else:
            h0, c0 = self.hidden
        punc, cap, h_n, c_n = self._jit_forward(
            self.lstm_params, self.head_params, data, h0, c0)
        self.hidden = (h_n, c_n)
        return punc, cap


if __name__ == "__main__":
    key = jax.random.PRNGKey(0)
    k_param, k_data = jax.random.split(key)

    classes = ["O", "COMMA", "PERIOD", "QUESTION"]   # 4 classes
    window_size = 4                                  # sequence_size = 1200
    batch = 2

    model = PuncLstmPersistentPallas(classes, window_size, k_param)

    data = jax.random.normal(k_data, (batch, window_size, INPUT_SIZE), jnp.float32)

    # First call: hidden is None -> zero init. Second call reuses persistent hidden.
    punc1, cap1 = model(data)
    punc2, cap2 = model(data)
    jax.block_until_ready((punc1, cap1, punc2, cap2))

    assert punc2.shape == (batch, len(classes))
    assert cap2.shape == (batch, 2)
    assert bool(jnp.all(punc2 >= 0.0)) and bool(jnp.all(cap2 >= 0.0))
    print("KERNEL_OK")
</pallas_src>

<mosaic_0001>
module attributes {stable_mosaic.version = 11 : i64} {
  func.func @kernel(%arg0: i32, %arg1: i32, %arg2: memref<8x1280xf32, #tpu.memory_space<vmem>>, %arg3: memref<1x1280x640xbf16, #tpu.memory_space<vmem>>, %arg4: memref<1x1x640xf32, #tpu.memory_space<vmem>>, %arg5: memref<1x640x384xbf16, #tpu.memory_space<vmem>>, %arg6: memref<1x1x384xf32, #tpu.memory_space<vmem>>, %arg7: memref<1x384x128xbf16, #tpu.memory_space<vmem>>, %arg8: memref<1x1x128xf32, #tpu.memory_space<vmem>>, %arg9: memref<1x8x128xf32, #tpu.memory_space<vmem>>, %arg10: memref<8x640xf32, #tpu.memory_space<vmem>>) attributes {dimension_semantics = [#tpu.dimension_semantics<parallel>, #tpu.dimension_semantics<arbitrary>], iteration_bounds = array<i64: 2, 1>, scalar_prefetch = 0 : i64, scratch_operands = 1 : i64, tpu.core_type = #tpu.core_type<tc>, window_params = [{pipeline_mode = #tpu.pipeline_mode<synchronous>, transform_indices = @transform_0, window_bounds = array<i64: 8, 1280>}, {transform_indices = @transform_1, window_bounds = array<i64: 1, 1280, 640>}, {transform_indices = @transform_2, window_bounds = array<i64: 1, 1, 640>}, {transform_indices = @transform_3, window_bounds = array<i64: 1, 640, 384>}, {transform_indices = @transform_4, window_bounds = array<i64: 1, 1, 384>}, {transform_indices = @transform_5, window_bounds = array<i64: 1, 384, 128>}, {transform_indices = @transform_6, window_bounds = array<i64: 1, 1, 128>}, {transform_indices = @transform_7, window_bounds = array<i64: 1, 8, 128>}]} {
    %c0 = arith.constant 0 : index
    %c0_0 = arith.constant 0 : index
    %0 = vector.load %arg2[%c0, %c0_0] : memref<8x1280xf32, #tpu.memory_space<vmem>>, vector<8x1280xf32>
    %1 = arith.truncf %0 : vector<8x1280xf32> to vector<8x1280xbf16>
    %c0_1 = arith.constant 0 : index
    %c0_2 = arith.constant 0 : index
    %c0_3 = arith.constant 0 : index
    %2 = vector.load %arg3[%c0_1, %c0_2, %c0_3] : memref<1x1280x640xbf16, #tpu.memory_space<vmem>>, vector<1x1280x640xbf16>
    %3 = vector.shape_cast %2 : vector<1x1280x640xbf16> to vector<1280x640xbf16>
    %cst = arith.constant dense<0.000000e+00> : vector<8x640xf32>
    %4 = tpu.matmul %1, %3, %cst {dimension_numbers = #tpu.dot_dimension_numbers<[1], [0], [0], [1], [0, 0, 1, 1], [], []>} : vector<8x1280xbf16>, vector<1280x640xbf16>, vector<8x640xf32> -> vector<8x640xf32>
    %c0_4 = arith.constant 0 : index
    %c0_5 = arith.constant 0 : index
    %c0_6 = arith.constant 0 : index
    %5 = vector.load %arg4[%c0_4, %c0_5, %c0_6] : memref<1x1x640xf32, #tpu.memory_space<vmem>>, vector<1x1x640xf32>
    %6 = vector.shape_cast %5 : vector<1x1x640xf32> to vector<1x640xf32>
    %7 = vector.broadcast %6 : vector<1x640xf32> to vector<8x640xf32>
    %8 = arith.addf %4, %7 : vector<8x640xf32>
    %cst_7 = arith.constant 0.000000e+00 : f32
    %9 = vector.broadcast %cst_7 : f32 to vector<8x640xf32>
    %10 = arith.maximumf %8, %9 : vector<8x640xf32>
    %c0_8 = arith.constant 0 : index
    %c0_9 = arith.constant 0 : index
    %11 = vector.load %arg10[%c0_8, %c0_9] : memref<8x640xf32, #tpu.memory_space<vmem>>, vector<8x640xf32>
    tpu.vector_store %arg10[%c0_8, %c0_9], %10 {strides = array<i32>} : memref<8x640xf32, #tpu.memory_space<vmem>>, vector<8x640xf32>,
    %c0_i32 = arith.constant 0 : i32
    %12 = arith.cmpi eq, %arg1, %c0_i32 : i32
    %13 = arith.extui %12 : i1 to i32
    %c0_i32_10 = arith.constant 0 : i32
    %14 = arith.cmpi ne, %13, %c0_i32_10 : i32
    scf.if %14 {
      %c0_11 = arith.constant 0 : index
      %c0_12 = arith.constant 0 : index
      %15 = vector.load %arg10[%c0_11, %c0_12] : memref<8x640xf32, #tpu.memory_space<vmem>>, vector<8x640xf32>
      %16 = arith.truncf %15 : vector<8x640xf32> to vector<8x640xbf16>
      %c0_13 = arith.constant 0 : index
      %c0_14 = arith.constant 0 : index
      %c0_15 = arith.constant 0 : index
      %17 = vector.load %arg5[%c0_13, %c0_14, %c0_15] : memref<1x640x384xbf16, #tpu.memory_space<vmem>>, vector<1x640x384xbf16>
      %18 = vector.shape_cast %17 : vector<1x640x384xbf16> to vector<640x384xbf16>
      %cst_16 = arith.constant dense<0.000000e+00> : vector<8x384xf32>
      %19 = tpu.matmul %16, %18, %cst_16 {dimension_numbers = #tpu.dot_dimension_numbers<[1], [0], [0], [1], [0, 0, 1, 1], [], []>} : vector<8x640xbf16>, vector<640x384xbf16>, vector<8x384xf32> -> vector<8x384xf32>
      %c0_17 = arith.constant 0 : index
      %c0_18 = arith.constant 0 : index
      %c0_19 = arith.constant 0 : index
      %20 = vector.load %arg6[%c0_17, %c0_18, %c0_19] : memref<1x1x384xf32, #tpu.memory_space<vmem>>, vector<1x1x384xf32>
      %21 = vector.shape_cast %20 : vector<1x1x384xf32> to vector<1x384xf32>
      %22 = vector.broadcast %21 : vector<1x384xf32> to vector<8x384xf32>
      %23 = arith.addf %19, %22 : vector<8x384xf32>
      %cst_20 = arith.constant 0.000000e+00 : f32
      %24 = vector.broadcast %cst_20 : f32 to vector<8x384xf32>
      %25 = arith.maximumf %23, %24 : vector<8x384xf32>
      %26 = arith.truncf %25 : vector<8x384xf32> to vector<8x384xbf16>
      %c0_21 = arith.constant 0 : index
      %c0_22 = arith.constant 0 : index
      %c0_23 = arith.constant 0 : index
      %27 = vector.load %arg7[%c0_21, %c0_22, %c0_23] : memref<1x384x128xbf16, #tpu.memory_space<vmem>>, vector<1x384x128xbf16>
      %28 = vector.shape_cast %27 : vector<1x384x128xbf16> to vector<384x128xbf16>
      %cst_24 = arith.constant dense<0.000000e+00> : vector<8x128xf32>
      %29 = tpu.matmul %26, %28, %cst_24 {dimension_numbers = #tpu.dot_dimension_numbers<[1], [0], [0], [1], [0, 0, 1, 1], [], []>} : vector<8x384xbf16>, vector<384x128xbf16>, vector<8x128xf32> -> vector<8x128xf32>
      %c0_25 = arith.constant 0 : index
      %c0_26 = arith.constant 0 : index
      %c0_27 = arith.constant 0 : index
      %30 = vector.load %arg8[%c0_25, %c0_26, %c0_27] : memref<1x1x128xf32, #tpu.memory_space<vmem>>, vector<1x1x128xf32>
      %31 = vector.shape_cast %30 : vector<1x1x128xf32> to vector<1x128xf32>
      %32 = vector.broadcast %31 : vector<1x128xf32> to vector<8x128xf32>
      %33 = arith.addf %29, %32 : vector<8x128xf32>
      %cst_28 = arith.constant 0.000000e+00 : f32
      %34 = vector.broadcast %cst_28 : f32 to vector<8x128xf32>
      %35 = arith.maximumf %33, %34 : vector<8x128xf32>
      %c0_29 = arith.constant 0 : index
      %c0_30 = arith.constant 0 : index
      %c0_31 = arith.constant 0 : index
      %36 = vector.load %arg9[%c0_29, %c0_30, %c0_31] : memref<1x8x128xf32, #tpu.memory_space<vmem>>, vector<1x8x128xf32>
      %37 = vector.shape_cast %36 : vector<1x8x128xf32> to vector<8x128xf32>
      %38 = vector.shape_cast %35 : vector<8x128xf32> to vector<1x8x128xf32>
      tpu.vector_store %arg9[%c0_29, %c0_30, %c0_31], %38 {strides = array<i32>} : memref<1x8x128xf32, #tpu.memory_space<vmem>>, vector<1x8x128xf32>,
    } else {
    }
    return
  }
  func.func @transform_0(%arg0: i32, %arg1: i32) -> (i32, i32) {
    %c0_i32 = arith.constant 0 : i32
    %c0_i32_0 = arith.constant 0 : i32
    %c0_i32_1 = arith.constant 0 : i32
    return %c0_i32, %c0_i32_0 : i32, i32
  }
  func.func @transform_1(%arg0: i32, %arg1: i32) -> (i32, i32, i32) {
    %c0_i32 = arith.constant 0 : i32
    %c0_i32_0 = arith.constant 0 : i32
    return %arg0, %c0_i32, %arg1 : i32, i32, i32
  }
  func.func @transform_2(%arg0: i32, %arg1: i32) -> (i32, i32, i32) {
    %c0_i32 = arith.constant 0 : i32
    %c0_i32_0 = arith.constant 0 : i32
    return %arg0, %c0_i32, %arg1 : i32, i32, i32
  }
  func.func @transform_3(%arg0: i32, %arg1: i32) -> (i32, i32, i32) {
    %c0_i32 = arith.constant 0 : i32
    %c0_i32_0 = arith.constant 0 : i32
    %c0_i32_1 = arith.constant 0 : i32
    return %arg0, %c0_i32, %c0_i32_0 : i32, i32, i32
  }
  func.func @transform_4(%arg0: i32, %arg1: i32) -> (i32, i32, i32) {
    %c0_i32 = arith.constant 0 : i32
    %c0_i32_0 = arith.constant 0 : i32
    %c0_i32_1 = arith.constant 0 : i32
    return %arg0, %c0_i32, %c0_i32_0 : i32, i32, i32
  }
  func.func @transform_5(%arg0: i32, %arg1: i32) -> (i32, i32, i32) {
    %c0_i32 = arith.constant 0 : i32
    %c0_i32_0 = arith.constant 0 : i32
    %c0_i32_1 = arith.constant 0 : i32
    return %arg0, %c0_i32, %c0_i32_0 : i32, i32, i32
  }
  func.func @transform_6(%arg0: i32, %arg1: i32) -> (i32, i32, i32) {
    %c0_i32 = arith.constant 0 : i32
    %c0_i32_0 = arith.constant 0 : i32
    %c0_i32_1 = arith.constant 0 : i32
    return %arg0, %c0_i32, %c0_i32_0 : i32, i32, i32
  }
  func.func @transform_7(%arg0: i32, %arg1: i32) -> (i32, i32, i32) {
    %c0_i32 = arith.constant 0 : i32
    %c0_i32_0 = arith.constant 0 : i32
    %c0_i32_1 = arith.constant 0 : i32
    return %arg0, %c0_i32, %c0_i32_0 : i32, i32, i32
  }
}

</mosaic_0001>

<llo_original>
// kernel: _forward.1
$region0: #{_forward.1}
  #allocation0 [shape = 'u32[]', space=smem, size = 0x4, offset = 0x4, fixed_abs, tag = 'smem constant byte address 0x4 - core index']
  #allocation1 [shape = 'u32[144,128]{1,0:T(1,128)}', space=vmem, size = 0x12000, scoped, tag = 'internal scratch']
  #allocation2 [shape = 'f32[8,640]{1,0:T(8,128)}', space=vmem, size = 0x5000, scoped, tag = 'scratch operand']
  %s0 = inlined_call_operand.vmem [shape: f32[8,1280], index: 0, kind: input, shape index: {}]
  %s1 = inlined_call_operand.vmem [shape: bf16[2,1280,640], index: 1, kind: input, shape index: {}]
  %s2 = inlined_call_operand.vmem [shape: f32[2,1,640], index: 2, kind: input, shape index: {}]
  %s3 = inlined_call_operand.vmem [shape: bf16[2,640,384], index: 3, kind: input, shape index: {}]
  %s4 = inlined_call_operand.vmem [shape: f32[2,1,384], index: 4, kind: input, shape index: {}]
  %s5 = inlined_call_operand.vmem [shape: bf16[2,384,128], index: 5, kind: input, shape index: {}]
  %s6 = inlined_call_operand.vmem [shape: f32[2,1,128], index: 6, kind: input, shape index: {}]
  %s7 = inlined_call_operand.vmem [shape: f32[2,8,128], index: 7, kind: output, shape index: {}]
  %s8 = sld [smem:[#allocation0]]
  $region65: #{_forward.1} parent=0
    _
  %s10 = ssub.s32 1, %s8
  %s11 = scalar_select 0, %s10, %s8
  loop: start=0, step=1, limit=4
  $region2: #{_forward.1} parent=0 // loop_pre_header
    _
  $region3: #{_forward.1} parent=0 // loop_header
    %s13 = sphi 0, %s17
    %p14 = scmp.ge.s32.totalorder %s13, 4
    %s20 = sphi 0, %s32
    %s21 = sphi 0, %s28
    %s22 = sphi 0, %s20
    %s23 = sphi 0, %s21
    %s24 = sphi 0, %s22
    %s25 = sphi 0, %s23
    %s33 = sphi 0, %s33
    %s35 = sphi 0, %s33
    %s36 = sphi 0, %s35
    %s50 = sphi 0, %s36
    %s58 = sphi 0, %s60
    %s61 = sphi 0, %s58
    %s62 = sphi 0, %s61
    %s78 = sphi 0, %s62
    %s86 = sphi 0, %s88
    %s89 = sphi 0, %s86
    %s90 = sphi 0, %s89
    %s106 = sphi 0, %s90
    %s112 = sphi 0, %s114
    %s115 = sphi 0, %s112
    %s116 = sphi 0, %s115
    %s132 = sphi 0, %s116
    %s138 = sphi 0, %s140
    %s141 = sphi 0, %s138
    %s142 = sphi 0, %s141
    %s158 = sphi 0, %s142
    %s164 = sphi 0, %s166
    %s167 = sphi 0, %s164
    %s168 = sphi 0, %s167
    %s184 = sphi 0, %s168
    %s190 = sphi 0, %s192
    %s193 = sphi 0, %s190
    %s194 = sphi 0, %s193
    %s210 = sphi 0, %s194
    %s216 = sphi 0, %s218
    %s219 = sphi 0, %s216
    %s220 = sphi 0, %s219
    %s236 = sphi 0, %s220
  $region4: #{_forward.1} parent=0 // loop_header_branch
    %16 = sbr.rel (%p14) target = $region8
  $region5: #{_forward.1} parent=0 // loop_body
    %s18 = ssub.s32 %s13, 1
    %s19 = ssub.s32 %s13, 2
    %s26 = sadd.s32 1, %s21
    %p27 = scmp.ge.s32.totalorder %s26, 1
    %s28 = scalar_select %p27, 0, %s26
    %s29 = sadd.s32 1, %s20
    %s30 = scalar_select %p27, %s29, %s20
    %p31 = scmp.ge.s32.totalorder %s30, 2
    %s32 = scalar_select %p31, 0, %s30
    %s34 = sadd.s32 %s33, 1
    %p37 = scmp.eq.s32.totalorder %s13, 1
    %p38 = scmp.ne.s32.totalorder %s33, %s35
    %p39 = scmp.eq.s32.totalorder %s13, 0
    %p40 = por %p38, %p39
    %p41 = scmp.ne.s32.totalorder %s33, %s35
    %p42 = scmp.eq.s32.totalorder %s18, 1
    %p43 = por %p41, %p42
    %p44 = scmp.ne.s32.totalorder %s35, %s36
    %p45 = scmp.eq.s32.totalorder %s18, 0
    %p46 = por %p44, %p45
    %p47 = scmp.ne.s32.totalorder %s35, %s36
    %p48 = scmp.eq.s32.totalorder %s19, 1
    %p49 = por %p47, %p48
    %p51 = scmp.ne.s32.totalorder %s36, %s50
    %p52 = scmp.eq.s32.totalorder %s19, 0
    %p53 = por %p51, %p52
    %s54 = ssub.s32 %s20, %s32
    %s55 = ssub.s32 %s21, %s28
    %s56 = sor.u32 %s54, %s55
    %p57 = scmp.eq.s32.totalorder %s56, 0
    %s59 = sadd.s32 %s58, 1
    %s60 = scalar_select %p57, %s58, %s59
    %p63 = pneg %p57
    %p64 = scmp.eq.s32.totalorder %s13, 1
    %p65 = por %p63, %p64
    %p66 = scmp.ne.s32.totalorder %s58, %s61
    %p67 = scmp.eq.s32.totalorder %s13, 0
    %p68 = por %p66, %p67
    %p69 = scmp.ne.s32.totalorder %s58, %s61
    %p70 = scmp.eq.s32.totalorder %s18, 1
    %p71 = por %p69, %p70
    %p72 = scmp.ne.s32.totalorder %s61, %s62
    %p73 = scmp.eq.s32.totalorder %s18, 0
    %p74 = por %p72, %p73
    %p75 = scmp.ne.s32.totalorder %s61, %s62
    %p76 = scmp.eq.s32.totalorder %s19, 1
    %p77 = por %p75, %p76
    %p79 = scmp.ne.s32.totalorder %s62, %s78
    %p80 = scmp.eq.s32.totalorder %s19, 0
    %p81 = por %p79, %p80
    %s82 = ssub.s32 %s20, %s32
    %s83 = ssub.s32 %s21, %s28
    %s84 = sor.u32 %s82, %s83
    %p85 = scmp.eq.s32.totalorder %s84, 0
    %s87 = sadd.s32 %s86, 1
    %s88 = scalar_select %p85, %s86, %s87
    %p91 = pneg %p85
    %p92 = scmp.eq.s32.totalorder %s13, 1
    %p93 = por %p91, %p92
    %p94 = scmp.ne.s32.totalorder %s86, %s89
    %p95 = scmp.eq.s32.totalorder %s13, 0
    %p96 = por %p94, %p95
    %p97 = scmp.ne.s32.totalorder %s86, %s89
    %p98 = scmp.eq.s32.totalorder %s18, 1
    %p99 = por %p97, %p98
    %p100 = scmp.ne.s32.totalorder %s89, %s90
    %p101 = scmp.eq.s32.totalorder %s18, 0
    %p102 = por %p100, %p101
    %p103 = scmp.ne.s32.totalorder %s89, %s90
    %p104 = scmp.eq.s32.totalorder %s19, 1
    %p105 = por %p103, %p104
    %p107 = scmp.ne.s32.totalorder %s90, %s106
    %p108 = scmp.eq.s32.totalorder %s19, 0
    %p109 = por %p107, %p108
    %s110 = ssub.s32 %s20, %s32
    %p111 = scmp.eq.s32.totalorder %s110, 0
    %s113 = sadd.s32 %s112, 1
    %s114 = scalar_select %p111, %s112, %s113
    %p117 = pneg %p111
    %p118 = scmp.eq.s32.totalorder %s13, 1
    %p119 = por %p117, %p118
    %p120 = scmp.ne.s32.totalorder %s112, %s115
    %p121 = scmp.eq.s32.totalorder %s13, 0
    %p122 = por %p120, %p121
    %p123 = scmp.ne.s32.totalorder %s112, %s115
    %p124 = scmp.eq.s32.totalorder %s18, 1
    %p125 = por %p123, %p124
    %p126 = scmp.ne.s32.totalorder %s115, %s116
    %p127 = scmp.eq.s32.totalorder %s18, 0
    %p128 = por %p126, %p127
    %p129 = scmp.ne.s32.totalorder %s115, %s116
    %p130 = scmp.eq.s32.totalorder %s19, 1
    %p131 = por %p129, %p130
    %p133 = scmp.ne.s32.totalorder %s116, %s132
    %p134 = scmp.eq.s32.totalorder %s19, 0
    %p135 = por %p133, %p134
    %s136 = ssub.s32 %s20, %s32
    %p137 = scmp.eq.s32.totalorder %s136, 0
    %s139 = sadd.s32 %s138, 1
    %s140 = scalar_select %p137, %s138, %s139
    %p143 = pneg %p137
    %p144 = scmp.eq.s32.totalorder %s13, 1
    %p145 = por %p143, %p144
    %p146 = scmp.ne.s32.totalorder %s138, %s141
    %p147 = scmp.eq.s32.totalorder %s13, 0
    %p148 = por %p146, %p147
    %p149 = scmp.ne.s32.totalorder %s138, %s141
    %p150 = scmp.eq.s32.totalorder %s18, 1
    %p151 = por %p149, %p150
    %p152 = scmp.ne.s32.totalorder %s141, %s142
    %p153 = scmp.eq.s32.totalorder %s18, 0
    %p154 = por %p152, %p153
    %p155 = scmp.ne.s32.totalorder %s141, %s142
    %p156 = scmp.eq.s32.totalorder %s19, 1
    %p157 = por %p155, %p156
    %p159 = scmp.ne.s32.totalorder %s142, %s158
    %p160 = scmp.eq.s32.totalorder %s19, 0
    %p161 = por %p159, %p160
    %s162 = ssub.s32 %s20, %s32
    %p163 = scmp.eq.s32.totalorder %s162, 0
    %s165 = sadd.s32 %s164, 1
    %s166 = scalar_select %p163, %s164, %s165
    %p169 = pneg %p163
    %p170 = scmp.eq.s32.totalorder %s13, 1
    %p171 = por %p169, %p170
    %p172 = scmp.ne.s32.totalorder %s164, %s167
    %p173 = scmp.eq.s32.totalorder %s13, 0
    %p174 = por %p172, %p173
    %p175 = scmp.ne.s32.totalorder %s164, %s167
    %p176 = scmp.eq.s32.totalorder %s18, 1
    %p177 = por %p175, %p176
    %p178 = scmp.ne.s32.totalorder %s167, %s168
    %p179 = scmp.eq.s32.totalorder %s18, 0
    %p180 = por %p178, %p179
    %p181 = scmp.ne.s32.totalorder %s167, %s168
    %p182 = scmp.eq.s32.totalorder %s19, 1
    %p183 = por %p181, %p182
    %p185 = scmp.ne.s32.totalorder %s168, %s184
    %p186 = scmp.eq.s32.totalorder %s19, 0
    %p187 = por %p185, %p186
    %s188 = ssub.s32 %s20, %s32
    %p189 = scmp.eq.s32.totalorder %s188, 0
    %s191 = sadd.s32 %s190, 1
    %s192 = scalar_select %p189, %s190, %s191
    %p195 = pneg %p189
    %p196 = scmp.eq.s32.totalorder %s13, 1
    %p197 = por %p195, %p196
    %p198 = scmp.ne.s32.totalorder %s190, %s193
    %p199 = scmp.eq.s32.totalorder %s13, 0
    %p200 = por %p198, %p199
    %p201 = scmp.ne.s32.totalorder %s190, %s193
    %p202 = scmp.eq.s32.totalorder %s18, 1
    %p203 = por %p201, %p202
    %p204 = scmp.ne.s32.totalorder %s193, %s194
    %p205 = scmp.eq.s32.totalorder %s18, 0
    %p206 = por %p204, %p205
    %p207 = scmp.ne.s32.totalorder %s193, %s194
    %p208 = scmp.eq.s32.totalorder %s19, 1
    %p209 = por %p207, %p208
    %p211 = scmp.ne.s32.totalorder %s194, %s210
    %p212 = scmp.eq.s32.totalorder %s19, 0
    %p213 = por %p211, %p212
    %s214 = ssub.s32 %s20, %s32
    %p215 = scmp.eq.s32.totalorder %s214, 0
    %s217 = sadd.s32 %s216, 1
    %s218 = scalar_select %p215, %s216, %s217
    %p221 = pneg %p215
    %p222 = scmp.eq.s32.totalorder %s13, 1
    %p223 = por %p221, %p222
    %p224 = scmp.ne.s32.totalorder %s216, %s219
    %p225 = scmp.eq.s32.totalorder %s13, 0
    %p226 = por %p224, %p225
    %p227 = scmp.ne.s32.totalorder %s216, %s219
    %p228 = scmp.eq.s32.totalorder %s18, 1
    %p229 = por %p227, %p228
    %p230 = scmp.ne.s32.totalorder %s219, %s220
    %p231 = scmp.eq.s32.totalorder %s18, 0
    %p232 = por %p230, %p231
    %p233 = scmp.ne.s32.totalorder %s219, %s220
    %p234 = scmp.eq.s32.totalorder %s19, 1
    %p235 = por %p233, %p234
    %p237 = scmp.ne.s32.totalorder %s220, %s236
    %p238 = scmp.eq.s32.totalorder %s19, 0
    %p239 = por %p237, %p238
    %p240 = scmp.le.s32.totalorder 1, %s13
    %p241 = scmp.lt.s32.totalorder %s13, 3
    %p242 = pnand %p240, %p241
    %p243 = pneg %p242
    // Predicated region
    $region9: #{_forward.1} parent=5 // pred_check
      _
    $region10: #{_forward.1} parent=5 // pred_check_branch
      %245 = sbr.rel (%p242) target = $region12
    $region11: #{_forward.1} parent=5 // pred_region
      %s246 = ssub.s32 %s13, 1
      // Predicated region
      $region13: #{_forward.1} parent=11 // pred_check
        %p247 = pneg %p46
      $region14: #{_forward.1} parent=11 // pred_check_branch
        %249 = sbr.rel (%p247) target = $region16
      $region15: #{_forward.1} parent=11 // pred_region
        _
      $region16: #{_forward.1} parent=11 // pred_fallthru
        _
    $region12: #{_forward.1} parent=5 // pred_fallthru
      _
    %p250 = scmp.lt.s32.totalorder %s13, 2
    // Predicated region
    $region17: #{_forward.1} parent=5 // pred_check
      %p251 = pneg %p250
    $region18: #{_forward.1} parent=5 // pred_check_branch
      %253 = sbr.rel (%p251) target = $region20
    $region19: #{_forward.1} parent=5 // pred_region
      // Predicated region
      $region21: #{_forward.1} parent=19 // pred_check
        %p254 = pneg %p68
      $region22: #{_forward.1} parent=19 // pred_check_branch
        %256 = sbr.rel (%p254) target = $region24
      $region23: #{_forward.1} parent=19 // pred_region
        %s257 = smul.u32 5, %s21
        %p258 = scmp.lt.s32.totalorder %s20, 1
        %s259 = scalar_select %p258, %s20, 1
        %p260 = scmp.lt.s32.totalorder %s257, 4
        %s261 = scalar_select %p260, %s257, 4
        %s262 = smul.addr %s259, 800
        %s263 = sadd.s32 %s261, %s262
        %s264 = smul.addr %s263, 4
        %s265 = scalar_lea.vmem %s1, %s264
        %s266 = smul.u32 5, %s21
      $region24: #{_forward.1} parent=19 // pred_fallthru
        _
      // Predicated region
      $region25: #{_forward.1} parent=19 // pred_check
        %p267 = pneg %p96
      $region26: #{_forward.1} parent=19 // pred_check_branch
        %269 = sbr.rel (%p267) target = $region28
      $region27: #{_forward.1} parent=19 // pred_region
        %s270 = smul.u32 5, %s21
        %p271 = scmp.lt.s32.totalorder %s20, 1
        %s272 = scalar_select %p271, %s20, 1
        %p273 = scmp.lt.s32.totalorder %s270, 4
        %s274 = scalar_select %p273, %s270, 4
        %s275 = smul.addr %s272, 5
        %s276 = sadd.s32 %s274, %s275
        %s277 = scalar_lea.vmem %s2, %s276
        %s278 = smul.u32 5, %s21
      $region28: #{_forward.1} parent=19 // pred_fallthru
        _
      // Predicated region
      $region29: #{_forward.1} parent=19 // pred_check
        %p279 = pneg %p122
      $region30: #{_forward.1} parent=19 // pred_check_branch
        %281 = sbr.rel (%p279) target = $region32
      $region31: #{_forward.1} parent=19 // pred_region
        %p282 = scmp.lt.s32.totalorder %s20, 1
        %s283 = scalar_select %p282, %s20, 1
        %s284 = smul.addr %s283, 240
        %s285 = smul.addr %s284, 4
        %s286 = scalar_lea.vmem %s3, %s285
      $region32: #{_forward.1} parent=19 // pred_fallthru
        _
      // Predicated region
      $region33: #{_forward.1} parent=19 // pred_check
        %p287 = pneg %p148
      $region34: #{_forward.1} parent=19 // pred_check_branch
        %289 = sbr.rel (%p287) target = $region36
      $region35: #{_forward.1} parent=19 // pred_region
        %p290 = scmp.lt.s32.totalorder %s20, 1
        %s291 = scalar_select %p290, %s20, 1
        %s292 = smul.addr %s291, 3
        %s293 = scalar_lea.vmem %s4, %s292
      $region36: #{_forward.1} parent=19 // pred_fallthru
        _
      // Predicated region
      $region37: #{_forward.1} parent=19 // pred_check
        %p294 = pneg %p174
      $region38: #{_forward.1} parent=19 // pred_check_branch
        %296 = sbr.rel (%p294) target = $region40
      $region39: #{_forward.1} parent=19 // pred_region
        %p297 = scmp.lt.s32.totalorder %s20, 1
        %s298 = scalar_select %p297, %s20, 1
        %s299 = smul.addr %s298, 48
        %s300 = smul.addr %s299, 4
        %s301 = scalar_lea.vmem %s5, %s300
      $region40: #{_forward.1} parent=19 // pred_fallthru
        _
      // Predicated region
      $region41: #{_forward.1} parent=19 // pred_check
        %p302 = pneg %p200
      $region42: #{_forward.1} parent=19 // pred_check_branch
        %304 = sbr.rel (%p302) target = $region44
      $region43: #{_forward.1} parent=19 // pred_region
        %p305 = scmp.lt.s32.totalorder %s20, 1
        %s306 = scalar_select %p305, %s20, 1
        %s307 = scalar_lea.vmem %s6, %s306
      $region44: #{_forward.1} parent=19 // pred_fallthru
        _
    $region20: #{_forward.1} parent=5 // pred_fallthru
      _
    %p308 = scmp.le.s32.totalorder 1, %s13
    %p309 = scmp.lt.s32.totalorder %s13, 3
    %p310 = pnand %p308, %p309
    %p311 = pneg %p310
    // Predicated region
    $region45: #{_forward.1} parent=5 // pred_check
      _
    $region46: #{_forward.1} parent=5 // pred_check_branch
      %313 = sbr.rel (%p310) target = $region48
    $region47: #{_forward.1} parent=5 // pred_region
      %s314 = ssub.s32 %s13, 1
      %p315 = pneg %p46
      %p316 = pneg %p43
      %s317 = smul.u32 5, %s23
      %p318 = scmp.lt.s32.totalorder %s22, 1
      %s319 = scalar_select %p318, %s22, 1
      %p320 = scmp.lt.s32.totalorder %s317, 4
      %s321 = scalar_select %p320, %s317, 4
      %s322 = smul.addr %s319, 800
      %s323 = sadd.s32 %s321, %s322
      %s324 = smul.addr %s323, 4
      %s325 = scalar_lea.vmem %s1, %s324
      %p326 = pneg %p74
      %p327 = pneg %p71
      %s328 = smul.u32 5, %s23
      %p329 = scmp.lt.s32.totalorder %s22, 1
      %s330 = scalar_select %p329, %s22, 1
      %p331 = scmp.lt.s32.totalorder %s328, 4
      %s332 = scalar_select %p331, %s328, 4
      %s333 = smul.addr %s330, 5
      %s334 = sadd.s32 %s332, %s333
      %s335 = scalar_lea.vmem %s2, %s334
      %p336 = pneg %p102
      %p337 = pneg %p99
      %p338 = scmp.lt.s32.totalorder %s22, 1
      %s339 = scalar_select %p338, %s22, 1
      %s340 = smul.addr %s339, 240
      %s341 = smul.addr %s340, 4
      %s342 = scalar_lea.vmem %s3, %s341
      %p343 = pneg %p128
      %p344 = pneg %p125
      %p345 = scmp.lt.s32.totalorder %s22, 1
      %s346 = scalar_select %p345, %s22, 1
      %s347 = smul.addr %s346, 3
      %s348 = scalar_lea.vmem %s4, %s347
      %p349 = pneg %p154
      %p350 = pneg %p151
      %p351 = scmp.lt.s32.totalorder %s22, 1
      %s352 = scalar_select %p351, %s22, 1
      %s353 = smul.addr %s352, 48
      %s354 = smul.addr %s353, 4
      %s355 = scalar_lea.vmem %s5, %s354
      %p356 = pneg %p180
      %p357 = pneg %p177
      %p358 = scmp.lt.s32.totalorder %s22, 1
      %s359 = scalar_select %p358, %s22, 1
      %s360 = scalar_lea.vmem %s6, %s359
      %p361 = pneg %p206
      %p362 = pneg %p203
      %p363 = pneg %p232
      %p364 = pneg %p229
      %p365 = scmp.lt.s32.totalorder %s22, 1
      %s366 = scalar_select %p365, %s22, 1
      %s367 = smul.addr %s366, 8
      %s368 = scalar_lea.vmem %s7, %s367
      %s369 = smul.u32 5, %s23
      %p370 = scmp.lt.s32.totalorder %s22, 1
      %s371 = scalar_select %p370, %s22, 1
      %p372 = scmp.lt.s32.totalorder %s369, 4
      %s373 = scalar_select %p372, %s369, 4
      %s374 = smul.addr %s371, 800
      %s375 = sadd.s32 %s373, %s374
      %s376 = smul.addr %s375, 4
      %s377 = scalar_lea.vmem %s1, %s376
      %s378 = smul.u32 5, %s23
      %s379 = smul.u32 5, %s23
      %p380 = scmp.lt.s32.totalorder %s22, 1
      %s381 = scalar_select %p380, %s22, 1
      %p382 = scmp.lt.s32.totalorder %s379, 4
      %s383 = scalar_select %p382, %s379, 4
      %s384 = smul.addr %s381, 5
      %s385 = sadd.s32 %s383, %s384
      %s386 = scalar_lea.vmem %s2, %s385
      %s387 = smul.u32 5, %s23
      %p388 = scmp.lt.s32.totalorder %s22, 1
      %s389 = scalar_select %p388, %s22, 1
      %s390 = smul.addr %s389, 240
      %s391 = smul.addr %s390, 4
      %s392 = scalar_lea.vmem %s3, %s391
      %p393 = scmp.lt.s32.totalorder %s22, 1
      %s394 = scalar_select %p393, %s22, 1
      %s395 = smul.addr %s394, 3
      %s396 = scalar_lea.vmem %s4, %s395
      %p397 = scmp.lt.s32.totalorder %s22, 1
      %s398 = scalar_select %p397, %s22, 1
      %s399 = smul.addr %s398, 48
      %s400 = smul.addr %s399, 4
      %s401 = scalar_lea.vmem %s5, %s400
      %p402 = scmp.lt.s32.totalorder %s22, 1
      %s403 = scalar_select %p402, %s22, 1
      %s404 = scalar_lea.vmem %s6, %s403
      %p405 = scmp.lt.s32.totalorder %s22, 1
      %s406 = scalar_select %p405, %s22, 1
      %s407 = smul.addr %s406, 8
      %s408 = scalar_lea.vmem %s7, %s407
      %v410 = vld [vmem:[%s0] sm:$0xff]
      %v411 = vld [vmem:[%s0 + $0x8] sm:$0xff]
      %v412 = vld [vmem:[%s0 + $0x10] sm:$0xff]
      %v413 = vld [vmem:[%s0 + $0x18] sm:$0xff]
      %v414 = vld [vmem:[%s0 + $0x20] sm:$0xff]
      %v415 = vld [vmem:[%s0 + $0x28] sm:$0xff]
      %v416 = vld [vmem:[%s0 + $0x30] sm:$0xff]
      %v417 = vld [vmem:[%s0 + $0x38] sm:$0xff]
      %v418 = vld [vmem:[%s0 + $0x40] sm:$0xff]
      %v419 = vld [vmem:[%s0 + $0x48] sm:$0xff]
      %v420 = vpack.c.bf16 %v410, %v410
      %v421 = vpack.c.bf16 %v411, %v411
      %v422 = vpack.c.bf16 %v412, %v412
      %v423 = vpack.c.bf16 %v413, %v413
      %v424 = vpack.c.bf16 %v414, %v414
      %v425 = vpack.c.bf16 %v415, %v415
      %v426 = vpack.c.bf16 %v416, %v416
      %v427 = vpack.c.bf16 %v417, %v417
      %v428 = vpack.c.bf16 %v418, %v418
      %v429 = vpack.c.bf16 %v419, %v419
      %v430 = vld [vmem:[%s377] sm:$0xff]
      %v431 = vld [vmem:[%s377 + $0x8] sm:$0xff]
      %v432 = vld [vmem:[%s377 + $0x10] sm:$0xf]
      %v433 = vld [vmem:[%s377 + $0x14] sm:$0xff]
      %v434 = vld [vmem:[%s377 + $0x1c] sm:$0xff]
      %v435 = vld [vmem:[%s377 + $0x24] sm:$0xf]
      %v436 = vld [vmem:[%s377 + $0x28] sm:$0xff]
      %v437 = vld [vmem:[%s377 + $0x30] sm:$0xff]
      %v438 = vld [vmem:[%s377 + $0x38] sm:$0xf]
      %v439 = vld [vmem:[%s377 + $0x3c] sm:$0xff]
      %v440 = vld [vmem:[%s377 + $0x44] sm:$0xff]
      %v441 = vld [vmem:[%s377 + $0x4c] sm:$0xf]
      %v442 = vld [vmem:[%s377 + $0x50] sm:$0xff]
      %v443 = vld [vmem:[%s377 + $0x58] sm:$0xff]
      %v444 = vld [vmem:[%s377 + $0x60] sm:$0xf]
      %v445 = vld [vmem:[%s377 + $0x64] sm:$0xff]
      %v446 = vld [vmem:[%s377 + $0x6c] sm:$0xff]
      %v447 = vld [vmem:[%s377 + $0x74] sm:$0xf]
      %v448 = vld [vmem:[%s377 + $0x78] sm:$0xff]
      %v449 = vld [vmem:[%s377 + $0x80] sm:$0xff]
      %v450 = vld [vmem:[%s377 + $0x88] sm:$0xf]
      %v451 = vld [vmem:[%s377 + $0x8c] sm:$0xff]
      %v452 = vld [vmem:[%s377 + $0x94] sm:$0xff]
      %v453 = vld [vmem:[%s377 + $0x9c] sm:$0xf]
      %v454 = vld [vmem:[%s377 + $0xa0] sm:$0xff]
      %v455 = vld [vmem:[%s377 + $0xa8] sm:$0xff]
      %v456 = vld [vmem:[%s377 + $0xb0] sm:$0xf]
      %v457 = vld [vmem:[%s377 + $0xb4] sm:$0xff]
      %v458 = vld [vmem:[%s377 + $0xbc] sm:$0xff]
      %v459 = vld [vmem:[%s377 + $0xc4] sm:$0xf]
      %v460 = vld [vmem:[%s377 + $0xc8] sm:$0xff]
      %v461 = vld [vmem:[%s377 + $0xd0] sm:$0xff]
      %v462 = vld [vmem:[%s377 + $0xd8] sm:$0xf]
      %v463 = vld [vmem:[%s377 + $0xdc] sm:$0xff]
      %v464 = vld [vmem:[%s377 + $0xe4] sm:$0xff]
      %v465 = vld [vmem:[%s377 + $0xec] sm:$0xf]
      %v466 = vld [vmem:[%s377 + $0xf0] sm:$0xff]
      %v467 = vld [vmem:[%s377 + $0xf8] sm:$0xff]
      %v468 = vld [vmem:[%s377 + $0x100] sm:$0xf]
      %v469 = vld [vmem:[%s377 + $0x104] sm:$0xff]
      %v470 = vld [vmem:[%s377 + $0x10c] sm:$0xff]
      %v471 = vld [vmem:[%s377 + $0x114] sm:$0xf]
      %v472 = vld [vmem:[%s377 + $0x118] sm:$0xff]
      %v473 = vld [vmem:[%s377 + $0x120] sm:$0xff]
      %v474 = vld [vmem:[%s377 + $0x128] sm:$0xf]
      %v475 = vld [vmem:[%s377 + $0x12c] sm:$0xff]
      %v476 = vld [vmem:[%s377 + $0x134] sm:$0xff]
      %v477 = vld [vmem:[%s377 + $0x13c] sm:$0xf]
      %v478 = vld [vmem:[%s377 + $0x140] sm:$0xff]
      %v479 = vld [vmem:[%s377 + $0x148] sm:$0xff]
      %v480 = vld [vmem:[%s377 + $0x150] sm:$0xf]
      %v481 = vld [vmem:[%s377 + $0x154] sm:$0xff]
      %v482 = vld [vmem:[%s377 + $0x15c] sm:$0xff]
      %v483 = vld [vmem:[%s377 + $0x164] sm:$0xf]
      %v484 = vld [vmem:[%s377 + $0x168] sm:$0xff]
      %v485 = vld [vmem:[%s377 + $0x170] sm:$0xff]
      %v486 = vld [vmem:[%s377 + $0x178] sm:$0xf]
      %v487 = vld [vmem:[%s377 + $0x17c] sm:$0xff]
      %v488 = vld [vmem:[%s377 + $0x184] sm:$0xff]
      %v489 = vld [vmem:[%s377 + $0x18c] sm:$0xf]
      %v490 = vld [vmem:[%s377 + $0x190] sm:$0xff]
      %v491 = vld [vmem:[%s377 + $0x198] sm:$0xff]
      %v492 = vld [vmem:[%s377 + $0x1a0] sm:$0xf]
      %v493 = vld [vmem:[%s377 + $0x1a4] sm:$0xff]
      %v494 = vld [vmem:[%s377 + $0x1ac] sm:$0xff]
      %v495 = vld [vmem:[%s377 + $0x1b4] sm:$0xf]
      %v496 = vld [vmem:[%s377 + $0x1b8] sm:$0xff]
      %v497 = vld [vmem:[%s377 + $0x1c0] sm:$0xff]
      %v498 = vld [vmem:[%s377 + $0x1c8] sm:$0xf]
      %v499 = vld [vmem:[%s377 + $0x1cc] sm:$0xff]
      %v500 = vld [vmem:[%s377 + $0x1d4] sm:$0xff]
      %v501 = vld [vmem:[%s377 + $0x1dc] sm:$0xf]
      %v502 = vld [vmem:[%s377 + $0x1e0] sm:$0xff]
      %v503 = vld [vmem:[%s377 + $0x1e8] sm:$0xff]
      %v504 = vld [vmem:[%s377 + $0x1f0] sm:$0xf]
      %v505 = vld [vmem:[%s377 + $0x1f4] sm:$0xff]
      %v506 = vld [vmem:[%s377 + $0x1fc] sm:$0xff]
      %v507 = vld [vmem:[%s377 + $0x204] sm:$0xf]
      %v508 = vld [vmem:[%s377 + $0x208] sm:$0xff]
      %v509 = vld [vmem:[%s377 + $0x210] sm:$0xff]
      %v510 = vld [vmem:[%s377 + $0x218] sm:$0xf]
      %v511 = vld [vmem:[%s377 + $0x21c] sm:$0xff]
      %v512 = vld [vmem:[%s377 + $0x224] sm:$0xff]
      %v513 = vld [vmem:[%s377 + $0x22c] sm:$0xf]
      %v514 = vld [vmem:[%s377 + $0x230] sm:$0xff]
      %v515 = vld [vmem:[%s377 + $0x238] sm:$0xff]
      %v516 = vld [vmem:[%s377 + $0x240] sm:$0xf]
      %v517 = vld [vmem:[%s377 + $0x244] sm:$0xff]
      %v518 = vld [vmem:[%s377 + $0x24c] sm:$0xff]
      %v519 = vld [vmem:[%s377 + $0x254] sm:$0xf]
      %v520 = vld [vmem:[%s377 + $0x258] sm:$0xff]
      %v521 = vld [vmem:[%s377 + $0x260] sm:$0xff]
      %v522 = vld [vmem:[%s377 + $0x268] sm:$0xf]
      %v523 = vld [vmem:[%s377 + $0x26c] sm:$0xff]
      %v524 = vld [vmem:[%s377 + $0x274] sm:$0xff]
      %v525 = vld [vmem:[%s377 + $0x27c] sm:$0xf]
      %v526 = vld [vmem:[%s377 + $0x280] sm:$0xff]
      %v527 = vld [vmem:[%s377 + $0x288] sm:$0xff]
      %v528 = vld [vmem:[%s377 + $0x290] sm:$0xf]
      %v529 = vld [vmem:[%s377 + $0x294] sm:$0xff]
      %v530 = vld [vmem:[%s377 + $0x29c] sm:$0xff]
      %v531 = vld [vmem:[%s377 + $0x2a4] sm:$0xf]
      %v532 = vld [vmem:[%s377 + $0x2a8] sm:$0xff]
      %v533 = vld [vmem:[%s377 + $0x2b0] sm:$0xff]
      %v534 = vld [vmem:[%s377 + $0x2b8] sm:$0xf]
      %v535 = vld [vmem:[%s377 + $0x2bc] sm:$0xff]
      %v536 = vld [vmem:[%s377 + $0x2c4] sm:$0xff]
      %v537 = vld [vmem:[%s377 + $0x2cc] sm:$0xf]
      %v538 = vld [vmem:[%s377 + $0x2d0] sm:$0xff]
      %v539 = vld [vmem:[%s377 + $0x2d8] sm:$0xff]
      %v540 = vld [vmem:[%s377 + $0x2e0] sm:$0xf]
      %v541 = vld [vmem:[%s377 + $0x2e4] sm:$0xff]
      %v542 = vld [vmem:[%s377 + $0x2ec] sm:$0xff]
      %v543 = vld [vmem:[%s377 + $0x2f4] sm:$0xf]
      %v544 = vld [vmem:[%s377 + $0x2f8] sm:$0xff]
      %v545 = vld [vmem:[%s377 + $0x300] sm:$0xff]
      %v546 = vld [vmem:[%s377 + $0x308] sm:$0xf]
      %v547 = vld [vmem:[%s377 + $0x30c] sm:$0xff]
      %v548 = vld [vmem:[%s377 + $0x314] sm:$0xff]
      %v549 = vld [vmem:[%s377 + $0x31c] sm:$0xf]
      %v550 = vld [vmem:[%s377 + $0x320] sm:$0xff]
      %v551 = vld [vmem:[%s377 + $0x328] sm:$0xff]
      %v552 = vld [vmem:[%s377 + $0x330] sm:$0xf]
      %v553 = vld [vmem:[%s377 + $0x334] sm:$0xff]
      %v554 = vld [vmem:[%s377 + $0x33c] sm:$0xff]
      %v555 = vld [vmem:[%s377 + $0x344] sm:$0xf]
      %v556 = vld [vmem:[%s377 + $0x348] sm:$0xff]
      %v557 = vld [vmem:[%s377 + $0x350] sm:$0xff]
      %v558 = vld [vmem:[%s377 + $0x358] sm:$0xf]
      %v559 = vld [vmem:[%s377 + $0x35c] sm:$0xff]
      %v560 = vld [vmem:[%s377 + $0x364] sm:$0xff]
      %v561 = vld [vmem:[%s377 + $0x36c] sm:$0xf]
      %v562 = vld [vmem:[%s377 + $0x370] sm:$0xff]
      %v563 = vld [vmem:[%s377 + $0x378] sm:$0xff]
      %v564 = vld [vmem:[%s377 + $0x380] sm:$0xf]
      %v565 = vld [vmem:[%s377 + $0x384] sm:$0xff]
      %v566 = vld [vmem:[%s377 + $0x38c] sm:$0xff]
      %v567 = vld [vmem:[%s377 + $0x394] sm:$0xf]
      %v568 = vld [vmem:[%s377 + $0x398] sm:$0xff]
      %v569 = vld [vmem:[%s377 + $0x3a0] sm:$0xff]
      %v570 = vld [vmem:[%s377 + $0x3a8] sm:$0xf]
      %v571 = vld [vmem:[%s377 + $0x3ac] sm:$0xff]
      %v572 = vld [vmem:[%s377 + $0x3b4] sm:$0xff]
      %v573 = vld [vmem:[%s377 + $0x3bc] sm:$0xf]
      %v574 = vld [vmem:[%s377 + $0x3c0] sm:$0xff]
      %v575 = vld [vmem:[%s377 + $0x3c8] sm:$0xff]
      %v576 = vld [vmem:[%s377 + $0x3d0] sm:$0xf]
      %v577 = vld [vmem:[%s377 + $0x3d4] sm:$0xff]
      %v578 = vld [vmem:[%s377 + $0x3dc] sm:$0xff]
      %v579 = vld [vmem:[%s377 + $0x3e4] sm:$0xf]
      %v580 = vld [vmem:[%s377 + $0x3e8] sm:$0xff]
      %v581 = vld [vmem:[%s377 + $0x3f0] sm:$0xff]
      %v582 = vld [vmem:[%s377 + $0x3f8] sm:$0xf]
      %v583 = vld [vmem:[%s377 + $0x3fc] sm:$0xff]
      %v584 = vld [vmem:[%s377 + $0x404] sm:$0xff]
      %v585 = vld [vmem:[%s377 + $0x40c] sm:$0xf]
      %v586 = vld [vmem:[%s377 + $0x410] sm:$0xff]
      %v587 = vld [vmem:[%s377 + $0x418] sm:$0xff]
      %v588 = vld [vmem:[%s377 + $0x420] sm:$0xf]
      %v589 = vld [vmem:[%s377 + $0x424] sm:$0xff]
      %v590 = vld [vmem:[%s377 + $0x42c] sm:$0xff]
      %v591 = vld [vmem:[%s377 + $0x434] sm:$0xf]
      %v592 = vld [vmem:[%s377 + $0x438] sm:$0xff]
      %v593 = vld [vmem:[%s377 + $0x440] sm:$0xff]
      %v594 = vld [vmem:[%s377 + $0x448] sm:$0xf]
      %v595 = vld [vmem:[%s377 + $0x44c] sm:$0xff]
      %v596 = vld [vmem:[%s377 + $0x454] sm:$0xff]
      %v597 = vld [vmem:[%s377 + $0x45c] sm:$0xf]
      %v598 = vld [vmem:[%s377 + $0x460] sm:$0xff]
      %v599 = vld [vmem:[%s377 + $0x468] sm:$0xff]
      %v600 = vld [vmem:[%s377 + $0x470] sm:$0xf]
      %v601 = vld [vmem:[%s377 + $0x474] sm:$0xff]
      %v602 = vld [vmem:[%s377 + $0x47c] sm:$0xff]
      %v603 = vld [vmem:[%s377 + $0x484] sm:$0xf]
      %v604 = vld [vmem:[%s377 + $0x488] sm:$0xff]
      %v605 = vld [vmem:[%s377 + $0x490] sm:$0xff]
      %v606 = vld [vmem:[%s377 + $0x498] sm:$0xf]
      %v607 = vld [vmem:[%s377 + $0x49c] sm:$0xff]
      %v608 = vld [vmem:[%s377 + $0x4a4] sm:$0xff]
      %v609 = vld [vmem:[%s377 + $0x4ac] sm:$0xf]
      %v610 = vld [vmem:[%s377 + $0x4b0] sm:$0xff]
      %v611 = vld [vmem:[%s377 + $0x4b8] sm:$0xff]
      %v612 = vld [vmem:[%s377 + $0x4c0] sm:$0xf]
      %v613 = vld [vmem:[%s377 + $0x4c4] sm:$0xff]
      %v614 = vld [vmem:[%s377 + $0x4cc] sm:$0xff]
      %v615 = vld [vmem:[%s377 + $0x4d4] sm:$0xf]
      %v616 = vld [vmem:[%s377 + $0x4d8] sm:$0xff]
      %v617 = vld [vmem:[%s377 + $0x4e0] sm:$0xff]
      %v618 = vld [vmem:[%s377 + $0x4e8] sm:$0xf]
      %v619 = vld [vmem:[%s377 + $0x4ec] sm:$0xff]
      %v620 = vld [vmem:[%s377 + $0x4f4] sm:$0xff]
      %v621 = vld [vmem:[%s377 + $0x4fc] sm:$0xf]
      %v622 = vld [vmem:[%s377 + $0x500] sm:$0xff]
      %v623 = vld [vmem:[%s377 + $0x508] sm:$0xff]
      %v624 = vld [vmem:[%s377 + $0x510] sm:$0xf]
      %v625 = vld [vmem:[%s377 + $0x514] sm:$0xff]
      %v626 = vld [vmem:[%s377 + $0x51c] sm:$0xff]
      %v627 = vld [vmem:[%s377 + $0x524] sm:$0xf]
      %v628 = vld [vmem:[%s377 + $0x528] sm:$0xff]
      %v629 = vld [vmem:[%s377 + $0x530] sm:$0xff]
      %v630 = vld [vmem:[%s377 + $0x538] sm:$0xf]
      %v631 = vld [vmem:[%s377 + $0x53c] sm:$0xff]
      %v632 = vld [vmem:[%s377 + $0x544] sm:$0xff]
      %v633 = vld [vmem:[%s377 + $0x54c] sm:$0xf]
      %v634 = vld [vmem:[%s377 + $0x550] sm:$0xff]
      %v635 = vld [vmem:[%s377 + $0x558] sm:$0xff]
      %v636 = vld [vmem:[%s377 + $0x560] sm:$0xf]
      %v637 = vld [vmem:[%s377 + $0x564] sm:$0xff]
      %v638 = vld [vmem:[%s377 + $0x56c] sm:$0xff]
      %v639 = vld [vmem:[%s377 + $0x574] sm:$0xf]
      %v640 = vld [vmem:[%s377 + $0x578] sm:$0xff]
      %v641 = vld [vmem:[%s377 + $0x580] sm:$0xff]
      %v642 = vld [vmem:[%s377 + $0x588] sm:$0xf]
      %v643 = vld [vmem:[%s377 + $0x58c] sm:$0xff]
      %v644 = vld [vmem:[%s377 + $0x594] sm:$0xff]
      %v645 = vld [vmem:[%s377 + $0x59c] sm:$0xf]
      %v646 = vld [vmem:[%s377 + $0x5a0] sm:$0xff]
      %v647 = vld [vmem:[%s377 + $0x5a8] sm:$0xff]
      %v648 = vld [vmem:[%s377 + $0x5b0] sm:$0xf]
      %v649 = vld [vmem:[%s377 + $0x5b4] sm:$0xff]
      %v650 = vld [vmem:[%s377 + $0x5bc] sm:$0xff]
      %v651 = vld [vmem:[%s377 + $0x5c4] sm:$0xf]
      %v652 = vld [vmem:[%s377 + $0x5c8] sm:$0xff]
      %v653 = vld [vmem:[%s377 + $0x5d0] sm:$0xff]
      %v654 = vld [vmem:[%s377 + $0x5d8] sm:$0xf]
      %v655 = vld [vmem:[%s377 + $0x5dc] sm:$0xff]
      %v656 = vld [vmem:[%s377 + $0x5e4] sm:$0xff]
      %v657 = vld [vmem:[%s377 + $0x5ec] sm:$0xf]
      %v658 = vld [vmem:[%s377 + $0x5f0] sm:$0xff]
      %v659 = vld [vmem:[%s377 + $0x5f8] sm:$0xff]
      %v660 = vld [vmem:[%s377 + $0x600] sm:$0xf]
      %v661 = vld [vmem:[%s377 + $0x604] sm:$0xff]
      %v662 = vld [vmem:[%s377 + $0x60c] sm:$0xff]
      %v663 = vld [vmem:[%s377 + $0x614] sm:$0xf]
      %v664 = vld [vmem:[%s377 + $0x618] sm:$0xff]
      %v665 = vld [vmem:[%s377 + $0x620] sm:$0xff]
      %v666 = vld [vmem:[%s377 + $0x628] sm:$0xf]
      %v667 = vld [vmem:[%s377 + $0x62c] sm:$0xff]
      %v668 = vld [vmem:[%s377 + $0x634] sm:$0xff]
      %v669 = vld [vmem:[%s377 + $0x63c] sm:$0xf]
      %v670 = vld [vmem:[%s377 + $0x640] sm:$0xff]
      %v671 = vld [vmem:[%s377 + $0x648] sm:$0xff]
      %v672 = vld [vmem:[%s377 + $0x650] sm:$0xf]
      %v673 = vld [vmem:[%s377 + $0x654] sm:$0xff]
      %v674 = vld [vmem:[%s377 + $0x65c] sm:$0xff]
      %v675 = vld [vmem:[%s377 + $0x664] sm:$0xf]
      %v676 = vld [vmem:[%s377 + $0x668] sm:$0xff]
      %v677 = vld [vmem:[%s377 + $0x670] sm:$0xff]
      %v678 = vld [vmem:[%s377 + $0x678] sm:$0xf]
      %v679 = vld [vmem:[%s377 + $0x67c] sm:$0xff]
      %v680 = vld [vmem:[%s377 + $0x684] sm:$0xff]
      %v681 = vld [vmem:[%s377 + $0x68c] sm:$0xf]
      %v682 = vld [vmem:[%s377 + $0x690] sm:$0xff]
      %v683 = vld [vmem:[%s377 + $0x698] sm:$0xff]
      %v684 = vld [vmem:[%s377 + $0x6a0] sm:$0xf]
      %v685 = vld [vmem:[%s377 + $0x6a4] sm:$0xff]
      %v686 = vld [vmem:[%s377 + $0x6ac] sm:$0xff]
      %v687 = vld [vmem:[%s377 + $0x6b4] sm:$0xf]
      %v688 = vld [vmem:[%s377 + $0x6b8] sm:$0xff]
      %v689 = vld [vmem:[%s377 + $0x6c0] sm:$0xff]
      %v690 = vld [vmem:[%s377 + $0x6c8] sm:$0xf]
      %v691 = vld [vmem:[%s377 + $0x6cc] sm:$0xff]
      %v692 = vld [vmem:[%s377 + $0x6d4] sm:$0xff]
      %v693 = vld [vmem:[%s377 + $0x6dc] sm:$0xf]
      %v694 = vld [vmem:[%s377 + $0x6e0] sm:$0xff]
      %v695 = vld [vmem:[%s377 + $0x6e8] sm:$0xff]
      %v696 = vld [vmem:[%s377 + $0x6f0] sm:$0xf]
      %v697 = vld [vmem:[%s377 + $0x6f4] sm:$0xff]
      %v698 = vld [vmem:[%s377 + $0x6fc] sm:$0xff]
      %v699 = vld [vmem:[%s377 + $0x704] sm:$0xf]
      %v700 = vld [vmem:[%s377 + $0x708] sm:$0xff]
      %v701 = vld [vmem:[%s377 + $0x710] sm:$0xff]
      %v702 = vld [vmem:[%s377 + $0x718] sm:$0xf]
      %v703 = vld [vmem:[%s377 + $0x71c] sm:$0xff]
      %v704 = vld [vmem:[%s377 + $0x724] sm:$0xff]
      %v705 = vld [vmem:[%s377 + $0x72c] sm:$0xf]
      %v706 = vld [vmem:[%s377 + $0x730] sm:$0xff]
      %v707 = vld [vmem:[%s377 + $0x738] sm:$0xff]
      %v708 = vld [vmem:[%s377 + $0x740] sm:$0xf]
      %v709 = vld [vmem:[%s377 + $0x744] sm:$0xff]
      %v710 = vld [vmem:[%s377 + $0x74c] sm:$0xff]
      %v711 = vld [vmem:[%s377 + $0x754] sm:$0xf]
      %v712 = vld [vmem:[%s377 + $0x758] sm:$0xff]
      %v713 = vld [vmem:[%s377 + $0x760] sm:$0xff]
      %v714 = vld [vmem:[%s377 + $0x768] sm:$0xf]
      %v715 = vld [vmem:[%s377 + $0x76c] sm:$0xff]
      %v716 = vld [vmem:[%s377 + $0x774] sm:$0xff]
      %v717 = vld [vmem:[%s377 + $0x77c] sm:$0xf]
      %v718 = vld [vmem:[%s377 + $0x780] sm:$0xff]
      %v719 = vld [vmem:[%s377 + $0x788] sm:$0xff]
      %v720 = vld [vmem:[%s377 + $0x790] sm:$0xf]
      %v721 = vld [vmem:[%s377 + $0x794] sm:$0xff]
      %v722 = vld [vmem:[%s377 + $0x79c] sm:$0xff]
      %v723 = vld [vmem:[%s377 + $0x7a4] sm:$0xf]
      %v724 = vld [vmem:[%s377 + $0x7a8] sm:$0xff]
      %v725 = vld [vmem:[%s377 + $0x7b0] sm:$0xff]
      %v726 = vld [vmem:[%s377 + $0x7b8] sm:$0xf]
      %v727 = vld [vmem:[%s377 + $0x7bc] sm:$0xff]
      %v728 = vld [vmem:[%s377 + $0x7c4] sm:$0xff]
      %v729 = vld [vmem:[%s377 + $0x7cc] sm:$0xf]
      %v730 = vld [vmem:[%s377 + $0x7d0] sm:$0xff]
      %v731 = vld [vmem:[%s377 + $0x7d8] sm:$0xff]
      %v732 = vld [vmem:[%s377 + $0x7e0] sm:$0xf]
      %v733 = vld [vmem:[%s377 + $0x7e4] sm:$0xff]
      %v734 = vld [vmem:[%s377 + $0x7ec] sm:$0xff]
      %v735 = vld [vmem:[%s377 + $0x7f4] sm:$0xf]
      %v736 = vld [vmem:[%s377 + $0x7f8] sm:$0xff]
      %v737 = vld [vmem:[%s377 + $0x800] sm:$0xff]
      %v738 = vld [vmem:[%s377 + $0x808] sm:$0xf]
      %v739 = vld [vmem:[%s377 + $0x80c] sm:$0xff]
      %v740 = vld [vmem:[%s377 + $0x814] sm:$0xff]
      %v741 = vld [vmem:[%s377 + $0x81c] sm:$0xf]
      %v742 = vld [vmem:[%s377 + $0x820] sm:$0xff]
      %v743 = vld [vmem:[%s377 + $0x828] sm:$0xff]
      %v744 = vld [vmem:[%s377 + $0x830] sm:$0xf]
      %v745 = vld [vmem:[%s377 + $0x834] sm:$0xff]
      %v746 = vld [vmem:[%s377 + $0x83c] sm:$0xff]
      %v747 = vld [vmem:[%s377 + $0x844] sm:$0xf]
      %v748 = vld [vmem:[%s377 + $0x848] sm:$0xff]
      %v749 = vld [vmem:[%s377 + $0x850] sm:$0xff]
      %v750 = vld [vmem:[%s377 + $0x858] sm:$0xf]
      %v751 = vld [vmem:[%s377 + $0x85c] sm:$0xff]
      %v752 = vld [vmem:[%s377 + $0x864] sm:$0xff]
      %v753 = vld [vmem:[%s377 + $0x86c] sm:$0xf]
      %v754 = vld [vmem:[%s377 + $0x870] sm:$0xff]
      %v755 = vld [vmem:[%s377 + $0x878] sm:$0xff]
      %v756 = vld [vmem:[%s377 + $0x880] sm:$0xf]
      %v757 = vld [vmem:[%s377 + $0x884] sm:$0xff]
      %v758 = vld [vmem:[%s377 + $0x88c] sm:$0xff]
      %v759 = vld [vmem:[%s377 + $0x894] sm:$0xf]
      %v760 = vld [vmem:[%s377 + $0x898] sm:$0xff]
      %v761 = vld [vmem:[%s377 + $0x8a0] sm:$0xff]
      %v762 = vld [vmem:[%s377 + $0x8a8] sm:$0xf]
      %v763 = vld [vmem:[%s377 + $0x8ac] sm:$0xff]
      %v764 = vld [vmem:[%s377 + $0x8b4] sm:$0xff]
      %v765 = vld [vmem:[%s377 + $0x8bc] sm:$0xf]
      %v766 = vld [vmem:[%s377 + $0x8c0] sm:$0xff]
      %v767 = vld [vmem:[%s377 + $0x8c8] sm:$0xff]
      %v768 = vld [vmem:[%s377 + $0x8d0] sm:$0xf]
      %v769 = vld [vmem:[%s377 + $0x8d4] sm:$0xff]
      %v770 = vld [vmem:[%s377 + $0x8dc] sm:$0xff]
      %v771 = vld [vmem:[%s377 + $0x8e4] sm:$0xf]
      %v772 = vld [vmem:[%s377 + $0x8e8] sm:$0xff]
      %v773 = vld [vmem:[%s377 + $0x8f0] sm:$0xff]
      %v774 = vld [vmem:[%s377 + $0x8f8] sm:$0xf]
      %v775 = vld [vmem:[%s377 + $0x8fc] sm:$0xff]
      %v776 = vld [vmem:[%s377 + $0x904] sm:$0xff]
      %v777 = vld [vmem:[%s377 + $0x90c] sm:$0xf]
      %v778 = vld [vmem:[%s377 + $0x910] sm:$0xff]
      %v779 = vld [vmem:[%s377 + $0x918] sm:$0xff]
      %v780 = vld [vmem:[%s377 + $0x920] sm:$0xf]
      %v781 = vld [vmem:[%s377 + $0x924] sm:$0xff]
      %v782 = vld [vmem:[%s377 + $0x92c] sm:$0xff]
      %v783 = vld [vmem:[%s377 + $0x934] sm:$0xf]
      %v784 = vld [vmem:[%s377 + $0x938] sm:$0xff]
      %v785 = vld [vmem:[%s377 + $0x940] sm:$0xff]
      %v786 = vld [vmem:[%s377 + $0x948] sm:$0xf]
      %v787 = vld [vmem:[%s377 + $0x94c] sm:$0xff]
      %v788 = vld [vmem:[%s377 + $0x954] sm:$0xff]
      %v789 = vld [vmem:[%s377 + $0x95c] sm:$0xf]
      %v790 = vld [vmem:[%s377 + $0x960] sm:$0xff]
      %v791 = vld [vmem:[%s377 + $0x968] sm:$0xff]
      %v792 = vld [vmem:[%s377 + $0x970] sm:$0xf]
      %v793 = vld [vmem:[%s377 + $0x974] sm:$0xff]
      %v794 = vld [vmem:[%s377 + $0x97c] sm:$0xff]
      %v795 = vld [vmem:[%s377 + $0x984] sm:$0xf]
      %v796 = vld [vmem:[%s377 + $0x988] sm:$0xff]
      %v797 = vld [vmem:[%s377 + $0x990] sm:$0xff]
      %v798 = vld [vmem:[%s377 + $0x998] sm:$0xf]
      %v799 = vld [vmem:[%s377 + $0x99c] sm:$0xff]
      %v800 = vld [vmem:[%s377 + $0x9a4] sm:$0xff]
      %v801 = vld [vmem:[%s377 + $0x9ac] sm:$0xf]
      %v802 = vld [vmem:[%s377 + $0x9b0] sm:$0xff]
      %v803 = vld [vmem:[%s377 + $0x9b8] sm:$0xff]
      %v804 = vld [vmem:[%s377 + $0x9c0] sm:$0xf]
      %v805 = vld [vmem:[%s377 + $0x9c4] sm:$0xff]
      %v806 = vld [vmem:[%s377 + $0x9cc] sm:$0xff]
      %v807 = vld [vmem:[%s377 + $0x9d4] sm:$0xf]
      %v808 = vld [vmem:[%s377 + $0x9d8] sm:$0xff]
      %v809 = vld [vmem:[%s377 + $0x9e0] sm:$0xff]
      %v810 = vld [vmem:[%s377 + $0x9e8] sm:$0xf]
      %v811 = vld [vmem:[%s377 + $0x9ec] sm:$0xff]
      %v812 = vld [vmem:[%s377 + $0x9f4] sm:$0xff]
      %v813 = vld [vmem:[%s377 + $0x9fc] sm:$0xf]
      %v814 = vld [vmem:[%s377 + $0xa00] sm:$0xff]
      %v815 = vld [vmem:[%s377 + $0xa08] sm:$0xff]
      %v816 = vld [vmem:[%s377 + $0xa10] sm:$0xf]
      %v817 = vld [vmem:[%s377 + $0xa14] sm:$0xff]
      %v818 = vld [vmem:[%s377 + $0xa1c] sm:$0xff]
      %v819 = vld [vmem:[%s377 + $0xa24] sm:$0xf]
      %v820 = vld [vmem:[%s377 + $0xa28] sm:$0xff]
      %v821 = vld [vmem:[%s377 + $0xa30] sm:$0xff]
      %v822 = vld [vmem:[%s377 + $0xa38] sm:$0xf]
      %v823 = vld [vmem:[%s377 + $0xa3c] sm:$0xff]
      %v824 = vld [vmem:[%s377 + $0xa44] sm:$0xff]
      %v825 = vld [vmem:[%s377 + $0xa4c] sm:$0xf]
      %v826 = vld [vmem:[%s377 + $0xa50] sm:$0xff]
      %v827 = vld [vmem:[%s377 + $0xa58] sm:$0xff]
      %v828 = vld [vmem:[%s377 + $0xa60] sm:$0xf]
      %v829 = vld [vmem:[%s377 + $0xa64] sm:$0xff]
      %v830 = vld [vmem:[%s377 + $0xa6c] sm:$0xff]
      %v831 = vld [vmem:[%s377 + $0xa74] sm:$0xf]
      %v832 = vld [vmem:[%s377 + $0xa78] sm:$0xff]
      %v833 = vld [vmem:[%s377 + $0xa80] sm:$0xff]
      %v834 = vld [vmem:[%s377 + $0xa88] sm:$0xf]
      %v835 = vld [vmem:[%s377 + $0xa8c] sm:$0xff]
      %v836 = vld [vmem:[%s377 + $0xa94] sm:$0xff]
      %v837 = vld [vmem:[%s377 + $0xa9c] sm:$0xf]
      %v838 = vld [vmem:[%s377 + $0xaa0] sm:$0xff]
      %v839 = vld [vmem:[%s377 + $0xaa8] sm:$0xff]
      %v840 = vld [vmem:[%s377 + $0xab0] sm:$0xf]
      %v841 = vld [vmem:[%s377 + $0xab4] sm:$0xff]
      %v842 = vld [vmem:[%s377 + $0xabc] sm:$0xff]
      %v843 = vld [vmem:[%s377 + $0xac4] sm:$0xf]
      %v844 = vld [vmem:[%s377 + $0xac8] sm:$0xff]
      %v845 = vld [vmem:[%s377 + $0xad0] sm:$0xff]
      %v846 = vld [vmem:[%s377 + $0xad8] sm:$0xf]
      %v847 = vld [vmem:[%s377 + $0xadc] sm:$0xff]
      %v848 = vld [vmem:[%s377 + $0xae4] sm:$0xff]
      %v849 = vld [vmem:[%s377 + $0xaec] sm:$0xf]
      %v850 = vld [vmem:[%s377 + $0xaf0] sm:$0xff]
      %v851 = vld [vmem:[%s377 + $0xaf8] sm:$0xff]
      %v852 = vld [vmem:[%s377 + $0xb00] sm:$0xf]
      %v853 = vld [vmem:[%s377 + $0xb04] sm:$0xff]
      %v854 = vld [vmem:[%s377 + $0xb0c] sm:$0xff]
      %v855 = vld [vmem:[%s377 + $0xb14] sm:$0xf]
      %v856 = vld [vmem:[%s377 + $0xb18] sm:$0xff]
      %v857 = vld [vmem:[%s377 + $0xb20] sm:$0xff]
      %v858 = vld [vmem:[%s377 + $0xb28] sm:$0xf]
      %v859 = vld [vmem:[%s377 + $0xb2c] sm:$0xff]
      %v860 = vld [vmem:[%s377 + $0xb34] sm:$0xff]
      %v861 = vld [vmem:[%s377 + $0xb3c] sm:$0xf]
      %v862 = vld [vmem:[%s377 + $0xb40] sm:$0xff]
      %v863 = vld [vmem:[%s377 + $0xb48] sm:$0xff]
      %v864 = vld [vmem:[%s377 + $0xb50] sm:$0xf]
      %v865 = vld [vmem:[%s377 + $0xb54] sm:$0xff]
      %v866 = vld [vmem:[%s377 + $0xb5c] sm:$0xff]
      %v867 = vld [vmem:[%s377 + $0xb64] sm:$0xf]
      %v868 = vld [vmem:[%s377 + $0xb68] sm:$0xff]
      %v869 = vld [vmem:[%s377 + $0xb70] sm:$0xff]
      %v870 = vld [vmem:[%s377 + $0xb78] sm:$0xf]
      %v871 = vld [vmem:[%s377 + $0xb7c] sm:$0xff]
      %v872 = vld [vmem:[%s377 + $0xb84] sm:$0xff]
      %v873 = vld [vmem:[%s377 + $0xb8c] sm:$0xf]
      %v874 = vld [vmem:[%s377 + $0xb90] sm:$0xff]
      %v875 = vld [vmem:[%s377 + $0xb98] sm:$0xff]
      %v876 = vld [vmem:[%s377 + $0xba0] sm:$0xf]
      %v877 = vld [vmem:[%s377 + $0xba4] sm:$0xff]
      %v878 = vld [vmem:[%s377 + $0xbac] sm:$0xff]
      %v879 = vld [vmem:[%s377 + $0xbb4] sm:$0xf]
      %v880 = vld [vmem:[%s377 + $0xbb8] sm:$0xff]
      %v881 = vld [vmem:[%s377 + $0xbc0] sm:$0xff]
      %v882 = vld [vmem:[%s377 + $0xbc8] sm:$0xf]
      %v883 = vld [vmem:[%s377 + $0xbcc] sm:$0xff]
      %v884 = vld [vmem:[%s377 + $0xbd4] sm:$0xff]
      %v885 = vld [vmem:[%s377 + $0xbdc] sm:$0xf]
      %v886 = vld [vmem:[%s377 + $0xbe0] sm:$0xff]
      %v887 = vld [vmem:[%s377 + $0xbe8] sm:$0xff]
      %v888 = vld [vmem:[%s377 + $0xbf0] sm:$0xf]
      %v889 = vld [vmem:[%s377 + $0xbf4] sm:$0xff]
      %v890 = vld [vmem:[%s377 + $0xbfc] sm:$0xff]
      %v891 = vld [vmem:[%s377 + $0xc04] sm:$0xf]
      %v892 = vld [vmem:[%s377 + $0xc08] sm:$0xff]
      %v893 = vld [vmem:[%s377 + $0xc10] sm:$0xff]
      %v894 = vld [vmem:[%s377 + $0xc18] sm:$0xf]
      %v895 = vld [vmem:[%s377 + $0xc1c] sm:$0xff]
      %v896 = vld [vmem:[%s377 + $0xc24] sm:$0xff]
      %v897 = vld [vmem:[%s377 + $0xc2c] sm:$0xf]
      %v898 = vld [vmem:[%s377 + $0xc30] sm:$0xff]
      %v899 = vld [vmem:[%s377 + $0xc38] sm:$0xff]
      %v900 = vld [vmem:[%s377 + $0xc40] sm:$0xf]
      %v901 = vld [vmem:[%s377 + $0xc44] sm:$0xff]
      %v902 = vld [vmem:[%s377 + $0xc4c] sm:$0xff]
      %v903 = vld [vmem:[%s377 + $0xc54] sm:$0xf]
      %v904 = vld [vmem:[%s377 + $0xc58] sm:$0xff]
      %v905 = vld [vmem:[%s377 + $0xc60] sm:$0xff]
      %v906 = vld [vmem:[%s377 + $0xc68] sm:$0xf]
      %v907 = vld [vmem:[%s377 + $0xc6c] sm:$0xff]
      %v908 = vld [vmem:[%s377 + $0xc74] sm:$0xff]
      %v909 = vld [vmem:[%s377 + $0xc7c] sm:$0xf]
      %v910 = vld [vmem:[%s386] sm:$0x1f]
      %v912 = vlaneseq
      %v913 = vshrl.u32 %v912, 7
      %v914 = vsub.s32 0, %v913
      %v915 = vrot.slane %v910, %v914
      %v916 = vlaneseq
      %v917 = vshrl.u32 %v916, 7
      %v918 = vsub.s32 1, %v917
      %v919 = vrot.slane %v910, %v918
      %v920 = vlaneseq
      %v921 = vshrl.u32 %v920, 7
      %v922 = vsub.s32 2, %v921
      %v923 = vrot.slane %v910, %v922
      %v924 = vlaneseq
      %v925 = vshrl.u32 %v924, 7
      %v926 = vsub.s32 3, %v925
      %v927 = vrot.slane %v910, %v926
      %v928 = vlaneseq
      %v929 = vshrl.u32 %v928, 7
      %v930 = vsub.s32 4, %v929
      %v931 = vrot.slane %v910, %v930
      %v1417 = vunpack.c.l.b16 %v430
      %v1418 = vunpack.c.h.b16 %v430
      %v1419 = vunpack.c.l.b16 %v431
      %v1420 = vunpack.c.h.b16 %v431
      %v1421 = vunpack.c.l.b16 %v432
      %v1422 = vunpack.c.l.b16 %v433
      %v1423 = vunpack.c.h.b16 %v433
      %v1424 = vunpack.c.l.b16 %v434
      %v1425 = vunpack.c.h.b16 %v434
      %v1426 = vunpack.c.l.b16 %v435
      %v1427 = vunpack.c.l.b16 %v436
      %v1428 = vunpack.c.h.b16 %v436
      %v1429 = vunpack.c.l.b16 %v437
      %v1430 = vunpack.c.h.b16 %v437
      %v1431 = vunpack.c.l.b16 %v438
      %v1432 = vunpack.c.l.b16 %v439
      %v1433 = vunpack.c.h.b16 %v439
      %v1434 = vunpack.c.l.b16 %v440
      %v1435 = vunpack.c.h.b16 %v440
      %v1436 = vunpack.c.l.b16 %v441
      %v1437 = vunpack.c.l.b16 %v442
      %v1438 = vunpack.c.h.b16 %v442
      %v1439 = vunpack.c.l.b16 %v443
      %v1440 = vunpack.c.h.b16 %v443
      %v1441 = vunpack.c.l.b16 %v444
      %v1442 = vunpack.c.l.b16 %v445
      %v1443 = vunpack.c.h.b16 %v445
      %v1444 = vunpack.c.l.b16 %v446
      %v1445 = vunpack.c.h.b16 %v446
      %v1446 = vunpack.c.l.b16 %v447
      %v1447 = vunpack.c.l.b16 %v448
      %v1448 = vunpack.c.h.b16 %v448
      %v1449 = vunpack.c.l.b16 %v449
      %v1450 = vunpack.c.h.b16 %v449
      %v1451 = vunpack.c.l.b16 %v450
      %v1452 = vunpack.c.l.b16 %v451
      %v1453 = vunpack.c.h.b16 %v451
      %v1454 = vunpack.c.l.b16 %v452
      %v1455 = vunpack.c.h.b16 %v452
      %v1456 = vunpack.c.l.b16 %v453
      %v1457 = vunpack.c.l.b16 %v454
      %v1458 = vunpack.c.h.b16 %v454
      %v1459 = vunpack.c.l.b16 %v455
      %v1460 = vunpack.c.h.b16 %v455
      %v1461 = vunpack.c.l.b16 %v456
      %v1462 = vunpack.c.l.b16 %v457
      %v1463 = vunpack.c.h.b16 %v457
      %v1464 = vunpack.c.l.b16 %v458
      %v1465 = vunpack.c.h.b16 %v458
      %v1466 = vunpack.c.l.b16 %v459
      %v1467 = vunpack.c.l.b16 %v460
      %v1468 = vunpack.c.h.b16 %v460
      %v1469 = vunpack.c.l.b16 %v461
      %v1470 = vunpack.c.h.b16 %v461
      %v1471 = vunpack.c.l.b16 %v462
      %v1472 = vunpack.c.l.b16 %v463
      %v1473 = vunpack.c.h.b16 %v463
      %v1474 = vunpack.c.l.b16 %v464
      %v1475 = vunpack.c.h.b16 %v464
      %v1476 = vunpack.c.l.b16 %v465
      %v1477 = vunpack.c.l.b16 %v466
      %v1478 = vunpack.c.h.b16 %v466
      %v1479 = vunpack.c.l.b16 %v467
      %v1480 = vunpack.c.h.b16 %v467
      %v1481 = vunpack.c.l.b16 %v468
      %v1482 = vunpack.c.l.b16 %v469
      %v1483 = vunpack.c.h.b16 %v469
      %v1484 = vunpack.c.l.b16 %v470
      %v1485 = vunpack.c.h.b16 %v470
      %v1486 = vunpack.c.l.b16 %v471
      %v1487 = vunpack.c.l.b16 %v472
      %v1488 = vunpack.c.h.b16 %v472
      %v1489 = vunpack.c.l.b16 %v473
      %v1490 = vunpack.c.h.b16 %v473
      %v1491 = vunpack.c.l.b16 %v474
      %v1492 = vunpack.c.l.b16 %v475
      %v1493 = vunpack.c.h.b16 %v475
      %v1494 = vunpack.c.l.b16 %v476
      %v1495 = vunpack.c.h.b16 %v476
      %v1496 = vunpack.c.l.b16 %v477
      %v1497 = vunpack.c.l.b16 %v478
      %v1498 = vunpack.c.h.b16 %v478
      %v1499 = vunpack.c.l.b16 %v479
      %v1500 = vunpack.c.h.b16 %v479
      %v1501 = vunpack.c.l.b16 %v480
      %v1502 = vunpack.c.l.b16 %v481
      %v1503 = vunpack.c.h.b16 %v481
      %v1504 = vunpack.c.l.b16 %v482
      %v1505 = vunpack.c.h.b16 %v482
      %v1506 = vunpack.c.l.b16 %v483
      %v1507 = vunpack.c.l.b16 %v484
      %v1508 = vunpack.c.h.b16 %v484
      %v1509 = vunpack.c.l.b16 %v485
      %v1510 = vunpack.c.h.b16 %v485
      %v1511 = vunpack.c.l.b16 %v486
      %v1512 = vunpack.c.l.b16 %v487
      %v1513 = vunpack.c.h.b16 %v487
      %v1514 = vunpack.c.l.b16 %v488
      %v1515 = vunpack.c.h.b16 %v488
      %v1516 = vunpack.c.l.b16 %v489
      %v1517 = vunpack.c.l.b16 %v490
      %v1518 = vunpack.c.h.b16 %v490
      %v1519 = vunpack.c.l.b16 %v491
      %v1520 = vunpack.c.h.b16 %v491
      %v1521 = vunpack.c.l.b16 %v492
      %v1522 = vunpack.c.l.b16 %v493
      %v1523 = vunpack.c.h.b16 %v493
      %v1524 = vunpack.c.l.b16 %v494
      %v1525 = vunpack.c.h.b16 %v494
      %v1526 = vunpack.c.l.b16 %v495
      %v1527 = vunpack.c.l.b16 %v496
      %v1528 = vunpack.c.h.b16 %v496
      %v1529 = vunpack.c.l.b16 %v497
      %v1530 = vunpack.c.h.b16 %v497
      %v1531 = vunpack.c.l.b16 %v498
      %v1532 = vunpack.c.l.b16 %v499
      %v1533 = vunpack.c.h.b16 %v499
      %v1534 = vunpack.c.l.b16 %v500
      %v1535 = vunpack.c.h.b16 %v500
      %v1536 = vunpack.c.l.b16 %v501
      %v1537 = vunpack.c.l.b16 %v502
      %v1538 = vunpack.c.h.b16 %v502
      %v1539 = vunpack.c.l.b16 %v503
      %v1540 = vunpack.c.h.b16 %v503
      %v1541 = vunpack.c.l.b16 %v504
      %v1542 = vunpack.c.l.b16 %v505
      %v1543 = vunpack.c.h.b16 %v505
      %v1544 = vunpack.c.l.b16 %v506
      %v1545 = vunpack.c.h.b16 %v506
      %v1546 = vunpack.c.l.b16 %v507
      %v1547 = vunpack.c.l.b16 %v508
      %v1548 = vunpack.c.h.b16 %v508
      %v1549 = vunpack.c.l.b16 %v509
      %v1550 = vunpack.c.h.b16 %v509
      %v1551 = vunpack.c.l.b16 %v510
      %v1552 = vunpack.c.l.b16 %v511
      %v1553 = vunpack.c.h.b16 %v511
      %v1554 = vunpack.c.l.b16 %v512
      %v1555 = vunpack.c.h.b16 %v512
      %v1556 = vunpack.c.l.b16 %v513
      %v1557 = vunpack.c.l.b16 %v514
      %v1558 = vunpack.c.h.b16 %v514
      %v1559 = vunpack.c.l.b16 %v515
      %v1560 = vunpack.c.h.b16 %v515
      %v1561 = vunpack.c.l.b16 %v516
      %v1562 = vunpack.c.l.b16 %v517
      %v1563 = vunpack.c.h.b16 %v517
      %v1564 = vunpack.c.l.b16 %v518
      %v1565 = vunpack.c.h.b16 %v518
      %v1566 = vunpack.c.l.b16 %v519
      %v1567 = vunpack.c.l.b16 %v520
      %v1568 = vunpack.c.h.b16 %v520
      %v1569 = vunpack.c.l.b16 %v521
      %v1570 = vunpack.c.h.b16 %v521
      %v1571 = vunpack.c.l.b16 %v522
      %v1572 = vunpack.c.l.b16 %v523
      %v1573 = vunpack.c.h.b16 %v523
      %v1574 = vunpack.c.l.b16 %v524
      %v1575 = vunpack.c.h.b16 %v524
      %v1576 = vunpack.c.l.b16 %v525
      %v1577 = vunpack.c.l.b16 %v526
      %v1578 = vunpack.c.h.b16 %v526
      %v1579 = vunpack.c.l.b16 %v527
      %v1580 = vunpack.c.h.b16 %v527
      %v1581 = vunpack.c.l.b16 %v528
      %v1582 = vunpack.c.l.b16 %v529
      %v1583 = vunpack.c.h.b16 %v529
      %v1584 = vunpack.c.l.b16 %v530
      %v1585 = vunpack.c.h.b16 %v530
      %v1586 = vunpack.c.l.b16 %v531
      %v1587 = vunpack.c.l.b16 %v532
      %v1588 = vunpack.c.h.b16 %v532
      %v1589 = vunpack.c.l.b16 %v533
      %v1590 = vunpack.c.h.b16 %v533
      %v1591 = vunpack.c.l.b16 %v534
      %v1592 = vunpack.c.l.b16 %v535
      %v1593 = vunpack.c.h.b16 %v535
      %v1594 = vunpack.c.l.b16 %v536
      %v1595 = vunpack.c.h.b16 %v536
      %v1596 = vunpack.c.l.b16 %v537
      %v1597 = vunpack.c.l.b16 %v538
      %v1598 = vunpack.c.h.b16 %v538
      %v1599 = vunpack.c.l.b16 %v539
      %v1600 = vunpack.c.h.b16 %v539
      %v1601 = vunpack.c.l.b16 %v540
      %v1602 = vunpack.c.l.b16 %v541
      %v1603 = vunpack.c.h.b16 %v541
      %v1604 = vunpack.c.l.b16 %v542
      %v1605 = vunpack.c.h.b16 %v542
      %v1606 = vunpack.c.l.b16 %v543
      %v1607 = vunpack.c.l.b16 %v544
      %v1608 = vunpack.c.h.b16 %v544
      %v1609 = vunpack.c.l.b16 %v545
      %v1610 = vunpack.c.h.b16 %v545
      %v1611 = vunpack.c.l.b16 %v546
      %v1612 = vunpack.c.l.b16 %v547
      %v1613 = vunpack.c.h.b16 %v547
      %v1614 = vunpack.c.l.b16 %v548
      %v1615 = vunpack.c.h.b16 %v548
      %v1616 = vunpack.c.l.b16 %v549
      %v1617 = vunpack.c.l.b16 %v550
      %v1618 = vunpack.c.h.b16 %v550
      %v1619 = vunpack.c.l.b16 %v551
      %v1620 = vunpack.c.h.b16 %v551
      %v1621 = vunpack.c.l.b16 %v552
      %v1622 = vunpack.c.l.b16 %v553
      %v1623 = vunpack.c.h.b16 %v553
      %v1624 = vunpack.c.l.b16 %v554
      %v1625 = vunpack.c.h.b16 %v554
      %v1626 = vunpack.c.l.b16 %v555
      %v1627 = vunpack.c.l.b16 %v556
      %v1628 = vunpack.c.h.b16 %v556
      %v1629 = vunpack.c.l.b16 %v557
      %v1630 = vunpack.c.h.b16 %v557
      %v1631 = vunpack.c.l.b16 %v558
      %v1632 = vunpack.c.l.b16 %v559
      %v1633 = vunpack.c.h.b16 %v559
      %v1634 = vunpack.c.l.b16 %v560
      %v1635 = vunpack.c.h.b16 %v560
      %v1636 = vunpack.c.l.b16 %v561
      %v1637 = vunpack.c.l.b16 %v562
      %v1638 = vunpack.c.h.b16 %v562
      %v1639 = vunpack.c.l.b16 %v563
      %v1640 = vunpack.c.h.b16 %v563
      %v1641 = vunpack.c.l.b16 %v564
      %v1642 = vunpack.c.l.b16 %v565
      %v1643 = vunpack.c.h.b16 %v565
      %v1644 = vunpack.c.l.b16 %v566
      %v1645 = vunpack.c.h.b16 %v566
      %v1646 = vunpack.c.l.b16 %v567
      %v1647 = vunpack.c.l.b16 %v568
      %v1648 = vunpack.c.h.b16 %v568
      %v1649 = vunpack.c.l.b16 %v569
      %v1650 = vunpack.c.h.b16 %v569
      %v1651 = vunpack.c.l.b16 %v570
      %v1652 = vunpack.c.l.b16 %v571
      %v1653 = vunpack.c.h.b16 %v571
      %v1654 = vunpack.c.l.b16 %v572
      %v1655 = vunpack.c.h.b16 %v572
      %v1656 = vunpack.c.l.b16 %v573
      %v1657 = vunpack.c.l.b16 %v574
      %v1658 = vunpack.c.h.b16 %v574
      %v1659 = vunpack.c.l.b16 %v575
      %v1660 = vunpack.c.h.b16 %v575
      %v1661 = vunpack.c.l.b16 %v576
      %v1662 = vunpack.c.l.b16 %v577
      %v1663 = vunpack.c.h.b16 %v577
      %v1664 = vunpack.c.l.b16 %v578
      %v1665 = vunpack.c.h.b16 %v578
      %v1666 = vunpack.c.l.b16 %v579
      %v1667 = vunpack.c.l.b16 %v580
      %v1668 = vunpack.c.h.b16 %v580
      %v1669 = vunpack.c.l.b16 %v581
      %v1670 = vunpack.c.h.b16 %v581
      %v1671 = vunpack.c.l.b16 %v582
      %v1672 = vunpack.c.l.b16 %v583
      %v1673 = vunpack.c.h.b16 %v583
      %v1674 = vunpack.c.l.b16 %v584
      %v1675 = vunpack.c.h.b16 %v584
      %v1676 = vunpack.c.l.b16 %v585
      %v1677 = vunpack.c.l.b16 %v586
      %v1678 = vunpack.c.h.b16 %v586
      %v1679 = vunpack.c.l.b16 %v587
      %v1680 = vunpack.c.h.b16 %v587
      %v1681 = vunpack.c.l.b16 %v588
      %v1682 = vunpack.c.l.b16 %v589
      %v1683 = vunpack.c.h.b16 %v589
      %v1684 = vunpack.c.l.b16 %v590
      %v1685 = vunpack.c.h.b16 %v590
      %v1686 = vunpack.c.l.b16 %v591
      %v1687 = vunpack.c.l.b16 %v592
      %v1688 = vunpack.c.h.b16 %v592
      %v1689 = vunpack.c.l.b16 %v593
      %v1690 = vunpack.c.h.b16 %v593
      %v1691 = vunpack.c.l.b16 %v594
      %v1692 = vunpack.c.l.b16 %v595
      %v1693 = vunpack.c.h.b16 %v595
      %v1694 = vunpack.c.l.b16 %v596
      %v1695 = vunpack.c.h.b16 %v596
      %v1696 = vunpack.c.l.b16 %v597
      %v1697 = vunpack.c.l.b16 %v598
      %v1698 = vunpack.c.h.b16 %v598
      %v1699 = vunpack.c.l.b16 %v599
      %v1700 = vunpack.c.h.b16 %v599
      %v1701 = vunpack.c.l.b16 %v600
      %v1702 = vunpack.c.l.b16 %v601
      %v1703 = vunpack.c.h.b16 %v601
      %v1704 = vunpack.c.l.b16 %v602
      %v1705 = vunpack.c.h.b16 %v602
      %v1706 = vunpack.c.l.b16 %v603
      %v1707 = vunpack.c.l.b16 %v604
      %v1708 = vunpack.c.h.b16 %v604
      %v1709 = vunpack.c.l.b16 %v605
      %v1710 = vunpack.c.h.b16 %v605
      %v1711 = vunpack.c.l.b16 %v606
      %v1712 = vunpack.c.l.b16 %v607
      %v1713 = vunpack.c.h.b16 %v607
      %v1714 = vunpack.c.l.b16 %v608
      %v1715 = vunpack.c.h.b16 %v608
      %v1716 = vunpack.c.l.b16 %v609
      %v1717 = vunpack.c.l.b16 %v610
      %v1718 = vunpack.c.h.b16 %v610
      %v1719 = vunpack.c.l.b16 %v611
      %v1720 = vunpack.c.h.b16 %v611
      %v1721 = vunpack.c.l.b16 %v612
      %v1722 = vunpack.c.l.b16 %v613
      %v1723 = vunpack.c.h.b16 %v613
      %v1724 = vunpack.c.l.b16 %v614
      %v1725 = vunpack.c.h.b16 %v614
      %v1726 = vunpack.c.l.b16 %v615
      %v1727 = vunpack.c.l.b16 %v616
      %v1728 = vunpack.c.h.b16 %v616
      %v1729 = vunpack.c.l.b16 %v617
      %v1730 = vunpack.c.h.b16 %v617
      %v1731 = vunpack.c.l.b16 %v618
      %v1732 = vunpack.c.l.b16 %v619
      %v1733 = vunpack.c.h.b16 %v619
      %v1734 = vunpack.c.l.b16 %v620
      %v1735 = vunpack.c.h.b16 %v620
      %v1736 = vunpack.c.l.b16 %v621
      %v1737 = vunpack.c.l.b16 %v622
      %v1738 = vunpack.c.h.b16 %v622
      %v1739 = vunpack.c.l.b16 %v623
      %v1740 = vunpack.c.h.b16 %v623
      %v1741 = vunpack.c.l.b16 %v624
      %v1742 = vunpack.c.l.b16 %v625
      %v1743 = vunpack.c.h.b16 %v625
      %v1744 = vunpack.c.l.b16 %v626
      %v1745 = vunpack.c.h.b16 %v626
      %v1746 = vunpack.c.l.b16 %v627
      %v1747 = vunpack.c.l.b16 %v628
      %v1748 = vunpack.c.h.b16 %v628
      %v1749 = vunpack.c.l.b16 %v629
      %v1750 = vunpack.c.h.b16 %v629
      %v1751 = vunpack.c.l.b16 %v630
      %v1752 = vunpack.c.l.b16 %v631
      %v1753 = vunpack.c.h.b16 %v631
      %v1754 = vunpack.c.l.b16 %v632
      %v1755 = vunpack.c.h.b16 %v632
      %v1756 = vunpack.c.l.b16 %v633
      %v1757 = vunpack.c.l.b16 %v634
      %v1758 = vunpack.c.h.b16 %v634
      %v1759 = vunpack.c.l.b16 %v635
      %v1760 = vunpack.c.h.b16 %v635
      %v1761 = vunpack.c.l.b16 %v636
      %v1762 = vunpack.c.l.b16 %v637
      %v1763 = vunpack.c.h.b16 %v637
      %v1764 = vunpack.c.l.b16 %v638
      %v1765 = vunpack.c.h.b16 %v638
      %v1766 = vunpack.c.l.b16 %v639
      %v1767 = vunpack.c.l.b16 %v640
      %v1768 = vunpack.c.h.b16 %v640
      %v1769 = vunpack.c.l.b16 %v641
      %v1770 = vunpack.c.h.b16 %v641
      %v1771 = vunpack.c.l.b16 %v642
      %v1772 = vunpack.c.l.b16 %v643
      %v1773 = vunpack.c.h.b16 %v643
      %v1774 = vunpack.c.l.b16 %v644
      %v1775 = vunpack.c.h.b16 %v644
      %v1776 = vunpack.c.l.b16 %v645
      %v1777 = vunpack.c.l.b16 %v646
      %v1778 = vunpack.c.h.b16 %v646
      %v1779 = vunpack.c.l.b16 %v647
      %v1780 = vunpack.c.h.b16 %v647
      %v1781 = vunpack.c.l.b16 %v648
      %v1782 = vunpack.c.l.b16 %v649
      %v1783 = vunpack.c.h.b16 %v649
      %v1784 = vunpack.c.l.b16 %v650
      %v1785 = vunpack.c.h.b16 %v650
      %v1786 = vunpack.c.l.b16 %v651
      %v1787 = vunpack.c.l.b16 %v652
      %v1788 = vunpack.c.h.b16 %v652
      %v1789 = vunpack.c.l.b16 %v653
      %v1790 = vunpack.c.h.b16 %v653
      %v1791 = vunpack.c.l.b16 %v654
      %v1792 = vunpack.c.l.b16 %v655
      %v1793 = vunpack.c.h.b16 %v655
      %v1794 = vunpack.c.l.b16 %v656
      %v1795 = vunpack.c.h.b16 %v656
      %v1796 = vunpack.c.l.b16 %v657
      %v1797 = vunpack.c.l.b16 %v658
      %v1798 = vunpack.c.h.b16 %v658
      %v1799 = vunpack.c.l.b16 %v659
      %v1800 = vunpack.c.h.b16 %v659
      %v1801 = vunpack.c.l.b16 %v660
      %v1802 = vunpack.c.l.b16 %v661
      %v1803 = vunpack.c.h.b16 %v661
      %v1804 = vunpack.c.l.b16 %v662
      %v1805 = vunpack.c.h.b16 %v662
      %v1806 = vunpack.c.l.b16 %v663
      %v1807 = vunpack.c.l.b16 %v664
      %v1808 = vunpack.c.h.b16 %v664
      %v1809 = vunpack.c.l.b16 %v665
      %v1810 = vunpack.c.h.b16 %v665
      %v1811 = vunpack.c.l.b16 %v666
      %v1812 = vunpack.c.l.b16 %v667
      %v1813 = vunpack.c.h.b16 %v667
      %v1814 = vunpack.c.l.b16 %v668
      %v1815 = vunpack.c.h.b16 %v668
      %v1816 = vunpack.c.l.b16 %v669
      %v1817 = vunpack.c.l.b16 %v670
      %v1818 = vunpack.c.h.b16 %v670
      %v1819 = vunpack.c.l.b16 %v671
      %v1820 = vunpack.c.h.b16 %v671
      %v1821 = vunpack.c.l.b16 %v672
      %v1822 = vunpack.c.l.b16 %v673
      %v1823 = vunpack.c.h.b16 %v673
      %v1824 = vunpack.c.l.b16 %v674
      %v1825 = vunpack.c.h.b16 %v674
      %v1826 = vunpack.c.l.b16 %v675
      %v1827 = vunpack.c.l.b16 %v676
      %v1828 = vunpack.c.h.b16 %v676
      %v1829 = vunpack.c.l.b16 %v677
      %v1830 = vunpack.c.h.b16 %v677
      %v1831 = vunpack.c.l.b16 %v678
      %v1832 = vunpack.c.l.b16 %v679
      %v1833 = vunpack.c.h.b16 %v679
      %v1834 = vunpack.c.l.b16 %v680
      %v1835 = vunpack.c.h.b16 %v680
      %v1836 = vunpack.c.l.b16 %v681
      %v1837 = vunpack.c.l.b16 %v682
      %v1838 = vunpack.c.h.b16 %v682
      %v1839 = vunpack.c.l.b16 %v683
      %v1840 = vunpack.c.h.b16 %v683
      %v1841 = vunpack.c.l.b16 %v684
      %v1842 = vunpack.c.l.b16 %v685
      %v1843 = vunpack.c.h.b16 %v685
      %v1844 = vunpack.c.l.b16 %v686
      %v1845 = vunpack.c.h.b16 %v686
      %v1846 = vunpack.c.l.b16 %v687
      %v1847 = vunpack.c.l.b16 %v688
      %v1848 = vunpack.c.h.b16 %v688
      %v1849 = vunpack.c.l.b16 %v689
      %v1850 = vunpack.c.h.b16 %v689
      %v1851 = vunpack.c.l.b16 %v690
      %v1852 = vunpack.c.l.b16 %v691
      %v1853 = vunpack.c.h.b16 %v691
      %v1854 = vunpack.c.l.b16 %v692
      %v1855 = vunpack.c.h.b16 %v692
      %v1856 = vunpack.c.l.b16 %v693
      %v1857 = vunpack.c.l.b16 %v694
      %v1858 = vunpack.c.h.b16 %v694
      %v1859 = vunpack.c.l.b16 %v695
      %v1860 = vunpack.c.h.b16 %v695
      %v1861 = vunpack.c.l.b16 %v696
      %v1862 = vunpack.c.l.b16 %v697
      %v1863 = vunpack.c.h.b16 %v697
      %v1864 = vunpack.c.l.b16 %v698
      %v1865 = vunpack.c.h.b16 %v698
      %v1866 = vunpack.c.l.b16 %v699
      %v1867 = vunpack.c.l.b16 %v700
      %v1868 = vunpack.c.h.b16 %v700
      %v1869 = vunpack.c.l.b16 %v701
      %v1870 = vunpack.c.h.b16 %v701
      %v1871 = vunpack.c.l.b16 %v702
      %v1872 = vunpack.c.l.b16 %v703
      %v1873 = vunpack.c.h.b16 %v703
      %v1874 = vunpack.c.l.b16 %v704
      %v1875 = vunpack.c.h.b16 %v704
      %v1876 = vunpack.c.l.b16 %v705
      %v1877 = vunpack.c.l.b16 %v706
      %v1878 = vunpack.c.h.b16 %v706
      %v1879 = vunpack.c.l.b16 %v707
      %v1880 = vunpack.c.h.b16 %v707
      %v1881 = vunpack.c.l.b16 %v708
      %v1882 = vunpack.c.l.b16 %v709
      %v1883 = vunpack.c.h.b16 %v709
      %v1884 = vunpack.c.l.b16 %v710
      %v1885 = vunpack.c.h.b16 %v710
      %v1886 = vunpack.c.l.b16 %v711
      %v1887 = vunpack.c.l.b16 %v712
      %v1888 = vunpack.c.h.b16 %v712
      %v1889 = vunpack.c.l.b16 %v713
      %v1890 = vunpack.c.h.b16 %v713
      %v1891 = vunpack.c.l.b16 %v714
      %v1892 = vunpack.c.l.b16 %v715
      %v1893 = vunpack.c.h.b16 %v715
      %v1894 = vunpack.c.l.b16 %v716
      %v1895 = vunpack.c.h.b16 %v716
      %v1896 = vunpack.c.l.b16 %v717
      %v1897 = vunpack.c.l.b16 %v718
      %v1898 = vunpack.c.h.b16 %v718
      %v1899 = vunpack.c.l.b16 %v719
      %v1900 = vunpack.c.h.b16 %v719
      %v1901 = vunpack.c.l.b16 %v720
      %v1902 = vunpack.c.l.b16 %v721
      %v1903 = vunpack.c.h.b16 %v721
      %v1904 = vunpack.c.l.b16 %v722
      %v1905 = vunpack.c.h.b16 %v722
      %v1906 = vunpack.c.l.b16 %v723
      %v1907 = vunpack.c.l.b16 %v724
      %v1908 = vunpack.c.h.b16 %v724
      %v1909 = vunpack.c.l.b16 %v725
      %v1910 = vunpack.c.h.b16 %v725
      %v1911 = vunpack.c.l.b16 %v726
      %v1912 = vunpack.c.l.b16 %v727
      %v1913 = vunpack.c.h.b16 %v727
      %v1914 = vunpack.c.l.b16 %v728
      %v1915 = vunpack.c.h.b16 %v728
      %v1916 = vunpack.c.l.b16 %v729
      %v1917 = vunpack.c.l.b16 %v730
      %v1918 = vunpack.c.h.b16 %v730
      %v1919 = vunpack.c.l.b16 %v731
      %v1920 = vunpack.c.h.b16 %v731
      %v1921 = vunpack.c.l.b16 %v732
      %v1922 = vunpack.c.l.b16 %v733
      %v1923 = vunpack.c.h.b16 %v733
      %v1924 = vunpack.c.l.b16 %v734
      %v1925 = vunpack.c.h.b16 %v734
      %v1926 = vunpack.c.l.b16 %v735
      %v1927 = vunpack.c.l.b16 %v736
      %v1928 = vunpack.c.h.b16 %v736
      %v1929 = vunpack.c.l.b16 %v737
      %v1930 = vunpack.c.h.b16 %v737
      %v1931 = vunpack.c.l.b16 %v738
      %v1932 = vunpack.c.l.b16 %v739
      %v1933 = vunpack.c.h.b16 %v739
      %v1934 = vunpack.c.l.b16 %v740
      %v1935 = vunpack.c.h.b16 %v740
      %v1936 = vunpack.c.l.b16 %v741
      %v1937 = vunpack.c.l.b16 %v742
      %v1938 = vunpack.c.h.b16 %v742
      %v1939 = vunpack.c.l.b16 %v743
      %v1940 = vunpack.c.h.b16 %v743
      %v1941 = vunpack.c.l.b16 %v744
      %v1942 = vunpack.c.l.b16 %v745
      %v1943 = vunpack.c.h.b16 %v745
      %v1944 = vunpack.c.l.b16 %v746
      %v1945 = vunpack.c.h.b16 %v746
      %v1946 = vunpack.c.l.b16 %v747
      %v1947 = vunpack.c.l.b16 %v748
      %v1948 = vunpack.c.h.b16 %v748
      %v1949 = vunpack.c.l.b16 %v749
      %v1950 = vunpack.c.h.b16 %v749
      %v1951 = vunpack.c.l.b16 %v750
      %v1952 = vunpack.c.l.b16 %v751
      %v1953 = vunpack.c.h.b16 %v751
      %v1954 = vunpack.c.l.b16 %v752
      %v1955 = vunpack.c.h.b16 %v752
      %v1956 = vunpack.c.l.b16 %v753
      %v1957 = vunpack.c.l.b16 %v754
      %v1958 = vunpack.c.h.b16 %v754
      %v1959 = vunpack.c.l.b16 %v755
      %v1960 = vunpack.c.h.b16 %v755
      %v1961 = vunpack.c.l.b16 %v756
      %v1962 = vunpack.c.l.b16 %v757
      %v1963 = vunpack.c.h.b16 %v757
      %v1964 = vunpack.c.l.b16 %v758
      %v1965 = vunpack.c.h.b16 %v758
      %v1966 = vunpack.c.l.b16 %v759
      %v1967 = vunpack.c.l.b16 %v760
      %v1968 = vunpack.c.h.b16 %v760
      %v1969 = vunpack.c.l.b16 %v761
      %v1970 = vunpack.c.h.b16 %v761
      %v1971 = vunpack.c.l.b16 %v762
      %v1972 = vunpack.c.l.b16 %v763
      %v1973 = vunpack.c.h.b16 %v763
      %v1974 = vunpack.c.l.b16 %v764
      %v1975 = vunpack.c.h.b16 %v764
      %v1976 = vunpack.c.l.b16 %v765
      %v1977 = vunpack.c.l.b16 %v766
      %v1978 = vunpack.c.h.b16 %v766
      %v1979 = vunpack.c.l.b16 %v767
      %v1980 = vunpack.c.h.b16 %v767
      %v1981 = vunpack.c.l.b16 %v768
      %v1982 = vunpack.c.l.b16 %v769
      %v1983 = vunpack.c.h.b16 %v769
      %v1984 = vunpack.c.l.b16 %v770
      %v1985 = vunpack.c.h.b16 %v770
      %v1986 = vunpack.c.l.b16 %v771
      %v1987 = vunpack.c.l.b16 %v772
      %v1988 = vunpack.c.h.b16 %v772
      %v1989 = vunpack.c.l.b16 %v773
      %v1990 = vunpack.c.h.b16 %v773
      %v1991 = vunpack.c.l.b16 %v774
      %v1992 = vunpack.c.l.b16 %v775
      %v1993 = vunpack.c.h.b16 %v775
      %v1994 = vunpack.c.l.b16 %v776
      %v1995 = vunpack.c.h.b16 %v776
      %v1996 = vunpack.c.l.b16 %v777
      %v1997 = vunpack.c.l.b16 %v778
      %v1998 = vunpack.c.h.b16 %v778
      %v1999 = vunpack.c.l.b16 %v779
      %v2000 = vunpack.c.h.b16 %v779
      %v2001 = vunpack.c.l.b16 %v780
      %v2002 = vunpack.c.l.b16 %v781
      %v2003 = vunpack.c.h.b16 %v781
      %v2004 = vunpack.c.l.b16 %v782
      %v2005 = vunpack.c.h.b16 %v782
      %v2006 = vunpack.c.l.b16 %v783
      %v2007 = vunpack.c.l.b16 %v784
      %v2008 = vunpack.c.h.b16 %v784
      %v2009 = vunpack.c.l.b16 %v785
      %v2010 = vunpack.c.h.b16 %v785
      %v2011 = vunpack.c.l.b16 %v786
      %v2012 = vunpack.c.l.b16 %v787
      %v2013 = vunpack.c.h.b16 %v787
      %v2014 = vunpack.c.l.b16 %v788
      %v2015 = vunpack.c.h.b16 %v788
      %v2016 = vunpack.c.l.b16 %v789
      %v2017 = vunpack.c.l.b16 %v790
      %v2018 = vunpack.c.h.b16 %v790
      %v2019 = vunpack.c.l.b16 %v791
      %v2020 = vunpack.c.h.b16 %v791
      %v2021 = vunpack.c.l.b16 %v792
      %v2022 = vunpack.c.l.b16 %v793
      %v2023 = vunpack.c.h.b16 %v793
      %v2024 = vunpack.c.l.b16 %v794
      %v2025 = vunpack.c.h.b16 %v794
      %v2026 = vunpack.c.l.b16 %v795
      %v2027 = vunpack.c.l.b16 %v796
      %v2028 = vunpack.c.h.b16 %v796
      %v2029 = vunpack.c.l.b16 %v797
      %v2030 = vunpack.c.h.b16 %v797
      %v2031 = vunpack.c.l.b16 %v798
      %v2032 = vunpack.c.l.b16 %v799
      %v2033 = vunpack.c.h.b16 %v799
      %v2034 = vunpack.c.l.b16 %v800
      %v2035 = vunpack.c.h.b16 %v800
      %v2036 = vunpack.c.l.b16 %v801
      %v2037 = vunpack.c.l.b16 %v802
      %v2038 = vunpack.c.h.b16 %v802
      %v2039 = vunpack.c.l.b16 %v803
      %v2040 = vunpack.c.h.b16 %v803
      %v2041 = vunpack.c.l.b16 %v804
      %v2042 = vunpack.c.l.b16 %v805
      %v2043 = vunpack.c.h.b16 %v805
      %v2044 = vunpack.c.l.b16 %v806
      %v2045 = vunpack.c.h.b16 %v806
      %v2046 = vunpack.c.l.b16 %v807
      %v2047 = vunpack.c.l.b16 %v808
      %v2048 = vunpack.c.h.b16 %v808
      %v2049 = vunpack.c.l.b16 %v809
      %v2050 = vunpack.c.h.b16 %v809
      %v2051 = vunpack.c.l.b16 %v810
      %v2052 = vunpack.c.l.b16 %v811
      %v2053 = vunpack.c.h.b16 %v811
      %v2054 = vunpack.c.l.b16 %v812
      %v2055 = vunpack.c.h.b16 %v812
      %v2056 = vunpack.c.l.b16 %v813
      %v2057 = vunpack.c.l.b16 %v814
      %v2058 = vunpack.c.h.b16 %v814
      %v2059 = vunpack.c.l.b16 %v815
      %v2060 = vunpack.c.h.b16 %v815
      %v2061 = vunpack.c.l.b16 %v816
      %v2062 = vunpack.c.l.b16 %v817
      %v2063 = vunpack.c.h.b16 %v817
      %v2064 = vunpack.c.l.b16 %v818
      %v2065 = vunpack.c.h.b16 %v818
      %v2066 = vunpack.c.l.b16 %v819
      %v2067 = vunpack.c.l.b16 %v820
      %v2068 = vunpack.c.h.b16 %v820
      %v2069 = vunpack.c.l.b16 %v821
      %v2070 = vunpack.c.h.b16 %v821
      %v2071 = vunpack.c.l.b16 %v822
      %v2072 = vunpack.c.l.b16 %v823
      %v2073 = vunpack.c.h.b16 %v823
      %v2074 = vunpack.c.l.b16 %v824
      %v2075 = vunpack.c.h.b16 %v824
      %v2076 = vunpack.c.l.b16 %v825
      %v2077 = vunpack.c.l.b16 %v826
      %v2078 = vunpack.c.h.b16 %v826
      %v2079 = vunpack.c.l.b16 %v827
      %v2080 = vunpack.c.h.b16 %v827
      %v2081 = vunpack.c.l.b16 %v828
      %v2082 = vunpack.c.l.b16 %v829
      %v2083 = vunpack.c.h.b16 %v829
      %v2084 = vunpack.c.l.b16 %v830
      %v2085 = vunpack.c.h.b16 %v830
      %v2086 = vunpack.c.l.b16 %v831
      %v2087 = vunpack.c.l.b16 %v832
      %v2088 = vunpack.c.h.b16 %v832
      %v2089 = vunpack.c.l.b16 %v833
      %v2090 = vunpack.c.h.b16 %v833
      %v2091 = vunpack.c.l.b16 %v834
      %v2092 = vunpack.c.l.b16 %v835
      %v2093 = vunpack.c.h.b16 %v835
      %v2094 = vunpack.c.l.b16 %v836
      %v2095 = vunpack.c.h.b16 %v836
      %v2096 = vunpack.c.l.b16 %v837
      %v2097 = vunpack.c.l.b16 %v838
      %v2098 = vunpack.c.h.b16 %v838
      %v2099 = vunpack.c.l.b16 %v839
      %v2100 = vunpack.c.h.b16 %v839
      %v2101 = vunpack.c.l.b16 %v840
      %v2102 = vunpack.c.l.b16 %v841
      %v2103 = vunpack.c.h.b16 %v841
      %v2104 = vunpack.c.l.b16 %v842
      %v2105 = vunpack.c.h.b16 %v842
      %v2106 = vunpack.c.l.b16 %v843
      %v2107 = vunpack.c.l.b16 %v844
      %v2108 = vunpack.c.h.b16 %v844
      %v2109 = vunpack.c.l.b16 %v845
      %v2110 = vunpack.c.h.b16 %v845
      %v2111 = vunpack.c.l.b16 %v846
      %v2112 = vunpack.c.l.b16 %v847
      %v2113 = vunpack.c.h.b16 %v847
      %v2114 = vunpack.c.l.b16 %v848
      %v2115 = vunpack.c.h.b16 %v848
      %v2116 = vunpack.c.l.b16 %v849
      %v2117 = vunpack.c.l.b16 %v850
      %v2118 = vunpack.c.h.b16 %v850
      %v2119 = vunpack.c.l.b16 %v851
      %v2120 = vunpack.c.h.b16 %v851
      %v2121 = vunpack.c.l.b16 %v852
      %v2122 = vunpack.c.l.b16 %v853
      %v2123 = vunpack.c.h.b16 %v853
      %v2124 = vunpack.c.l.b16 %v854
      %v2125 = vunpack.c.h.b16 %v854
      %v2126 = vunpack.c.l.b16 %v855
      %v2127 = vunpack.c.l.b16 %v856
      %v2128 = vunpack.c.h.b16 %v856
      %v2129 = vunpack.c.l.b16 %v857
      %v2130 = vunpack.c.h.b16 %v857
      %v2131 = vunpack.c.l.b16 %v858
      %v2132 = vunpack.c.l.b16 %v859
      %v2133 = vunpack.c.h.b16 %v859
      %v2134 = vunpack.c.l.b16 %v860
      %v2135 = vunpack.c.h.b16 %v860
      %v2136 = vunpack.c.l.b16 %v861
      %v2137 = vunpack.c.l.b16 %v862
      %v2138 = vunpack.c.h.b16 %v862
      %v2139 = vunpack.c.l.b16 %v863
      %v2140 = vunpack.c.h.b16 %v863
      %v2141 = vunpack.c.l.b16 %v864
      %v2142 = vunpack.c.l.b16 %v865
      %v2143 = vunpack.c.h.b16 %v865
      %v2144 = vunpack.c.l.b16 %v866
      %v2145 = vunpack.c.h.b16 %v866
      %v2146 = vunpack.c.l.b16 %v867
      %v2147 = vunpack.c.l.b16 %v868
      %v2148 = vunpack.c.h.b16 %v868
      %v2149 = vunpack.c.l.b16 %v869
      %v2150 = vunpack.c.h.b16 %v869
      %v2151 = vunpack.c.l.b16 %v870
      %v2152 = vunpack.c.l.b16 %v871
      %v2153 = vunpack.c.h.b16 %v871
      %v2154 = vunpack.c.l.b16 %v872
      %v2155 = vunpack.c.h.b16 %v872
      %v2156 = vunpack.c.l.b16 %v873
      %v2157 = vunpack.c.l.b16 %v874
      %v2158 = vunpack.c.h.b16 %v874
      %v2159 = vunpack.c.l.b16 %v875
      %v2160 = vunpack.c.h.b16 %v875
      %v2161 = vunpack.c.l.b16 %v876
      %v2162 = vunpack.c.l.b16 %v877
      %v2163 = vunpack.c.h.b16 %v877
      %v2164 = vunpack.c.l.b16 %v878
      %v2165 = vunpack.c.h.b16 %v878
      %v2166 = vunpack.c.l.b16 %v879
      %v2167 = vunpack.c.l.b16 %v880
      %v2168 = vunpack.c.h.b16 %v880
      %v2169 = vunpack.c.l.b16 %v881
      %v2170 = vunpack.c.h.b16 %v881
      %v2171 = vunpack.c.l.b16 %v882
      %v2172 = vunpack.c.l.b16 %v883
      %v2173 = vunpack.c.h.b16 %v883
      %v2174 = vunpack.c.l.b16 %v884
      %v2175 = vunpack.c.h.b16 %v884
      %v2176 = vunpack.c.l.b16 %v885
      %v2177 = vunpack.c.l.b16 %v886
      %v2178 = vunpack.c.h.b16 %v886
      %v2179 = vunpack.c.l.b16 %v887
      %v2180 = vunpack.c.h.b16 %v887
      %v2181 = vunpack.c.l.b16 %v888
      %v2182 = vunpack.c.l.b16 %v889
      %v2183 = vunpack.c.h.b16 %v889
      %v2184 = vunpack.c.l.b16 %v890
      %v2185 = vunpack.c.h.b16 %v890
      %v2186 = vunpack.c.l.b16 %v891
      %v2187 = vunpack.c.l.b16 %v892
      %v2188 = vunpack.c.h.b16 %v892
      %v2189 = vunpack.c.l.b16 %v893
      %v2190 = vunpack.c.h.b16 %v893
      %v2191 = vunpack.c.l.b16 %v894
      %v2192 = vunpack.c.l.b16 %v895
      %v2193 = vunpack.c.h.b16 %v895
      %v2194 = vunpack.c.l.b16 %v896
      %v2195 = vunpack.c.h.b16 %v896
      %v2196 = vunpack.c.l.b16 %v897
      %v2197 = vunpack.c.l.b16 %v898
      %v2198 = vunpack.c.h.b16 %v898
      %v2199 = vunpack.c.l.b16 %v899
      %v2200 = vunpack.c.h.b16 %v899
      %v2201 = vunpack.c.l.b16 %v900
      %v2202 = vunpack.c.l.b16 %v901
      %v2203 = vunpack.c.h.b16 %v901
      %v2204 = vunpack.c.l.b16 %v902
      %v2205 = vunpack.c.h.b16 %v902
      %v2206 = vunpack.c.l.b16 %v903
      %v2207 = vunpack.c.l.b16 %v904
      %v2208 = vunpack.c.h.b16 %v904
      %v2209 = vunpack.c.l.b16 %v905
      %v2210 = vunpack.c.h.b16 %v905
      %v2211 = vunpack.c.l.b16 %v906
      %v2212 = vunpack.c.l.b16 %v907
      %v2213 = vunpack.c.h.b16 %v907
      %v2214 = vunpack.c.l.b16 %v908
      %v2215 = vunpack.c.h.b16 %v908
      %v2216 = vunpack.c.l.b16 %v909
      %v2217 = vpack.c.b16 %v1422, %v1417
      %v2218 = vpack.c.b16 %v1423, %v1418
      %v2219 = vpack.c.b16 %v1424, %v1419
      %v2220 = vpack.c.b16 %v1425, %v1420
      %v2221 = vpack.c.b16 %v1426, %v1421
      %v2222 = vpack.c.b16 %v1432, %v1427
      %v2223 = vpack.c.b16 %v1433, %v1428
      %v2224 = vpack.c.b16 %v1434, %v1429
      %v2225 = vpack.c.b16 %v1435, %v1430
      %v2226 = vpack.c.b16 %v1436, %v1431
      %v2227 = vpack.c.b16 %v1442, %v1437
      %v2228 = vpack.c.b16 %v1443, %v1438
      %v2229 = vpack.c.b16 %v1444, %v1439
      %v2230 = vpack.c.b16 %v1445, %v1440
      %v2231 = vpack.c.b16 %v1446, %v1441
      %v2232 = vpack.c.b16 %v1452, %v1447
      %v2233 = vpack.c.b16 %v1453, %v1448
      %v2234 = vpack.c.b16 %v1454, %v1449
      %v2235 = vpack.c.b16 %v1455, %v1450
      %v2236 = vpack.c.b16 %v1456, %v1451
      %v2237 = vpack.c.b16 %v1462, %v1457
      %v2238 = vpack.c.b16 %v1463, %v1458
      %v2239 = vpack.c.b16 %v1464, %v1459
      %v2240 = vpack.c.b16 %v1465, %v1460
      %v2241 = vpack.c.b16 %v1466, %v1461
      %v2242 = vpack.c.b16 %v1472, %v1467
      %v2243 = vpack.c.b16 %v1473, %v1468
      %v2244 = vpack.c.b16 %v1474, %v1469
      %v2245 = vpack.c.b16 %v1475, %v1470
      %v2246 = vpack.c.b16 %v1476, %v1471
      %v2247 = vpack.c.b16 %v1482, %v1477
      %v2248 = vpack.c.b16 %v1483, %v1478
      %v2249 = vpack.c.b16 %v1484, %v1479
      %v2250 = vpack.c.b16 %v1485, %v1480
      %v2251 = vpack.c.b16 %v1486, %v1481
      %v2252 = vpack.c.b16 %v1492, %v1487
      %v2253 = vpack.c.b16 %v1493, %v1488
      %v2254 = vpack.c.b16 %v1494, %v1489
      %v2255 = vpack.c.b16 %v1495, %v1490
      %v2256 = vpack.c.b16 %v1496, %v1491
      %v2257 = vpack.c.b16 %v1502, %v1497
      %v2258 = vpack.c.b16 %v1503, %v1498
      %v2259 = vpack.c.b16 %v1504, %v1499
      %v2260 = vpack.c.b16 %v1505, %v1500
      %v2261 = vpack.c.b16 %v1506, %v1501
      %v2262 = vpack.c.b16 %v1512, %v1507
      %v2263 = vpack.c.b16 %v1513, %v1508
      %v2264 = vpack.c.b16 %v1514, %v1509
      %v2265 = vpack.c.b16 %v1515, %v1510
      %v2266 = vpack.c.b16 %v1516, %v1511
      %v2267 = vpack.c.b16 %v1522, %v1517
      %v2268 = vpack.c.b16 %v1523, %v1518
      %v2269 = vpack.c.b16 %v1524, %v1519
      %v2270 = vpack.c.b16 %v1525, %v1520
      %v2271 = vpack.c.b16 %v1526, %v1521
      %v2272 = vpack.c.b16 %v1532, %v1527
      %v2273 = vpack.c.b16 %v1533, %v1528
      %v2274 = vpack.c.b16 %v1534, %v1529
      %v2275 = vpack.c.b16 %v1535, %v1530
      %v2276 = vpack.c.b16 %v1536, %v1531
      %v2277 = vpack.c.b16 %v1542, %v1537
      %v2278 = vpack.c.b16 %v1543, %v1538
      %v2279 = vpack.c.b16 %v1544, %v1539
      %v2280 = vpack.c.b16 %v1545, %v1540
      %v2281 = vpack.c.b16 %v1546, %v1541
      %v2282 = vpack.c.b16 %v1552, %v1547
      %v2283 = vpack.c.b16 %v1553, %v1548
      %v2284 = vpack.c.b16 %v1554, %v1549
      %v2285 = vpack.c.b16 %v1555, %v1550
      %v2286 = vpack.c.b16 %v1556, %v1551
      %v2287 = vpack.c.b16 %v1562, %v1557
      %v2288 = vpack.c.b16 %v1563, %v1558
      %v2289 = vpack.c.b16 %v1564, %v1559
      %v2290 = vpack.c.b16 %v1565, %v1560
      %v2291 = vpack.c.b16 %v1566, %v1561
      %v2292 = vpack.c.b16 %v1572, %v1567
      %v2293 = vpack.c.b16 %v1573, %v1568
      %v2294 = vpack.c.b16 %v1574, %v1569
      %v2295 = vpack.c.b16 %v1575, %v1570
      %v2296 = vpack.c.b16 %v1576, %v1571
      %v2297 = vpack.c.b16 %v1582, %v1577
      %v2298 = vpack.c.b16 %v1583, %v1578
      %v2299 = vpack.c.b16 %v1584, %v1579
      %v2300 = vpack.c.b16 %v1585, %v1580
      %v2301 = vpack.c.b16 %v1586, %v1581
      %v2302 = vpack.c.b16 %v1592, %v1587
      %v2303 = vpack.c.b16 %v1593, %v1588
      %v2304 = vpack.c.b16 %v1594, %v1589
      %v2305 = vpack.c.b16 %v1595, %v1590
      %v2306 = vpack.c.b16 %v1596, %v1591
      %v2307 = vpack.c.b16 %v1602, %v1597
      %v2308 = vpack.c.b16 %v1603, %v1598
      %v2309 = vpack.c.b16 %v1604, %v1599
      %v2310 = vpack.c.b16 %v1605, %v1600
      %v2311 = vpack.c.b16 %v1606, %v1601
      %v2312 = vpack.c.b16 %v1612, %v1607
      %v2313 = vpack.c.b16 %v1613, %v1608
      %v2314 = vpack.c.b16 %v1614, %v1609
      %v2315 = vpack.c.b16 %v1615, %v1610
      %v2316 = vpack.c.b16 %v1616, %v1611
      %v2317 = vpack.c.b16 %v1622, %v1617
      %v2318 = vpack.c.b16 %v1623, %v1618
      %v2319 = vpack.c.b16 %v1624, %v1619
      %v2320 = vpack.c.b16 %v1625, %v1620
      %v2321 = vpack.c.b16 %v1626, %v1621
      %v2322 = vpack.c.b16 %v1632, %v1627
      %v2323 = vpack.c.b16 %v1633, %v1628
      %v2324 = vpack.c.b16 %v1634, %v1629
      %v2325 = vpack.c.b16 %v1635, %v1630
      %v2326 = vpack.c.b16 %v1636, %v1631
      %v2327 = vpack.c.b16 %v1642, %v1637
      %v2328 = vpack.c.b16 %v1643, %v1638
      %v2329 = vpack.c.b16 %v1644, %v1639
      %v2330 = vpack.c.b16 %v1645, %v1640
      %v2331 = vpack.c.b16 %v1646, %v1641
      %v2332 = vpack.c.b16 %v1652, %v1647
      %v2333 = vpack.c.b16 %v1653, %v1648
      %v2334 = vpack.c.b16 %v1654, %v1649
      %v2335 = vpack.c.b16 %v1655, %v1650
      %v2336 = vpack.c.b16 %v1656, %v1651
      %v2337 = vpack.c.b16 %v1662, %v1657
      %v2338 = vpack.c.b16 %v1663, %v1658
      %v2339 = vpack.c.b16 %v1664, %v1659
      %v2340 = vpack.c.b16 %v1665, %v1660
      %v2341 = vpack.c.b16 %v1666, %v1661
      %v2342 = vpack.c.b16 %v1672, %v1667
      %v2343 = vpack.c.b16 %v1673, %v1668
      %v2344 = vpack.c.b16 %v1674, %v1669
      %v2345 = vpack.c.b16 %v1675, %v1670
      %v2346 = vpack.c.b16 %v1676, %v1671
      %v2347 = vpack.c.b16 %v1682, %v1677
      %v2348 = vpack.c.b16 %v1683, %v1678
      %v2349 = vpack.c.b16 %v1684, %v1679
      %v2350 = vpack.c.b16 %v1685, %v1680
      %v2351 = vpack.c.b16 %v1686, %v1681
      %v2352 = vpack.c.b16 %v1692, %v1687
      %v2353 = vpack.c.b16 %v1693, %v1688
      %v2354 = vpack.c.b16 %v1694, %v1689
      %v2355 = vpack.c.b16 %v1695, %v1690
      %v2356 = vpack.c.b16 %v1696, %v1691
      %v2357 = vpack.c.b16 %v1702, %v1697
      %v2358 = vpack.c.b16 %v1703, %v1698
      %v2359 = vpack.c.b16 %v1704, %v1699
      %v2360 = vpack.c.b16 %v1705, %v1700
      %v2361 = vpack.c.b16 %v1706, %v1701
      %v2362 = vpack.c.b16 %v1712, %v1707
      %v2363 = vpack.c.b16 %v1713, %v1708
      %v2364 = vpack.c.b16 %v1714, %v1709
      %v2365 = vpack.c.b16 %v1715, %v1710
      %v2366 = vpack.c.b16 %v1716, %v1711
      %v2367 = vpack.c.b16 %v1722, %v1717
      %v2368 = vpack.c.b16 %v1723, %v1718
      %v2369 = vpack.c.b16 %v1724, %v1719
      %v2370 = vpack.c.b16 %v1725, %v1720
      %v2371 = vpack.c.b16 %v1726, %v1721
      %v2372 = vpack.c.b16 %v1732, %v1727
      %v2373 = vpack.c.b16 %v1733, %v1728
      %v2374 = vpack.c.b16 %v1734, %v1729
      %v2375 = vpack.c.b16 %v1735, %v1730
      %v2376 = vpack.c.b16 %v1736, %v1731
      %v2377 = vpack.c.b16 %v1742, %v1737
      %v2378 = vpack.c.b16 %v1743, %v1738
      %v2379 = vpack.c.b16 %v1744, %v1739
      %v2380 = vpack.c.b16 %v1745, %v1740
      %v2381 = vpack.c.b16 %v1746, %v1741
      %v2382 = vpack.c.b16 %v1752, %v1747
      %v2383 = vpack.c.b16 %v1753, %v1748
      %v2384 = vpack.c.b16 %v1754, %v1749
      %v2385 = vpack.c.b16 %v1755, %v1750
      %v2386 = vpack.c.b16 %v1756, %v1751
      %v2387 = vpack.c.b16 %v1762, %v1757
      %v2388 = vpack.c.b16 %v1763, %v1758
      %v2389 = vpack.c.b16 %v1764, %v1759
      %v2390 = vpack.c.b16 %v1765, %v1760
      %v2391 = vpack.c.b16 %v1766, %v1761
      %v2392 = vpack.c.b16 %v1772, %v1767
      %v2393 = vpack.c.b16 %v1773, %v1768
      %v2394 = vpack.c.b16 %v1774, %v1769
      %v2395 = vpack.c.b16 %v1775, %v1770
      %v2396 = vpack.c.b16 %v1776, %v1771
      %v2397 = vpack.c.b16 %v1782, %v1777
      %v2398 = vpack.c.b16 %v1783, %v1778
      %v2399 = vpack.c.b16 %v1784, %v1779
      %v2400 = vpack.c.b16 %v1785, %v1780
      %v2401 = vpack.c.b16 %v1786, %v1781
      %v2402 = vpack.c.b16 %v1792, %v1787
      %v2403 = vpack.c.b16 %v1793, %v1788
      %v2404 = vpack.c.b16 %v1794, %v1789
      %v2405 = vpack.c.b16 %v1795, %v1790
      %v2406 = vpack.c.b16 %v1796, %v1791
      %v2407 = vpack.c.b16 %v1802, %v1797
      %v2408 = vpack.c.b16 %v1803, %v1798
      %v2409 = vpack.c.b16 %v1804, %v1799
      %v2410 = vpack.c.b16 %v1805, %v1800
      %v2411 = vpack.c.b16 %v1806, %v1801
      %v2412 = vpack.c.b16 %v1812, %v1807
      %v2413 = vpack.c.b16 %v1813, %v1808
      %v2414 = vpack.c.b16 %v1814, %v1809
      %v2415 = vpack.c.b16 %v1815, %v1810
      %v2416 = vpack.c.b16 %v1816, %v1811
      %v2417 = vpack.c.b16 %v1822, %v1817
      %v2418 = vpack.c.b16 %v1823, %v1818
      %v2419 = vpack.c.b16 %v1824, %v1819
      %v2420 = vpack.c.b16 %v1825, %v1820
      %v2421 = vpack.c.b16 %v1826, %v1821
      %v2422 = vpack.c.b16 %v1832, %v1827
      %v2423 = vpack.c.b16 %v1833, %v1828
      %v2424 = vpack.c.b16 %v1834, %v1829
      %v2425 = vpack.c.b16 %v1835, %v1830
      %v2426 = vpack.c.b16 %v1836, %v1831
      %v2427 = vpack.c.b16 %v1842, %v1837
      %v2428 = vpack.c.b16 %v1843, %v1838
      %v2429 = vpack.c.b16 %v1844, %v1839
      %v2430 = vpack.c.b16 %v1845, %v1840
      %v2431 = vpack.c.b16 %v1846, %v1841
      %v2432 = vpack.c.b16 %v1852, %v1847
      %v2433 = vpack.c.b16 %v1853, %v1848
      %v2434 = vpack.c.b16 %v1854, %v1849
      %v2435 = vpack.c.b16 %v1855, %v1850
      %v2436 = vpack.c.b16 %v1856, %v1851
      %v2437 = vpack.c.b16 %v1862, %v1857
      %v2438 = vpack.c.b16 %v1863, %v1858
      %v2439 = vpack.c.b16 %v1864, %v1859
      %v2440 = vpack.c.b16 %v1865, %v1860
      %v2441 = vpack.c.b16 %v1866, %v1861
      %v2442 = vpack.c.b16 %v1872, %v1867
      %v2443 = vpack.c.b16 %v1873, %v1868
      %v2444 = vpack.c.b16 %v1874, %v1869
      %v2445 = vpack.c.b16 %v1875, %v1870
      %v2446 = vpack.c.b16 %v1876, %v1871
      %v2447 = vpack.c.b16 %v1882, %v1877
      %v2448 = vpack.c.b16 %v1883, %v1878
      %v2449 = vpack.c.b16 %v1884, %v1879
      %v2450 = vpack.c.b16 %v1885, %v1880
      %v2451 = vpack.c.b16 %v1886, %v1881
      %v2452 = vpack.c.b16 %v1892, %v1887
      %v2453 = vpack.c.b16 %v1893, %v1888
      %v2454 = vpack.c.b16 %v1894, %v1889
      %v2455 = vpack.c.b16 %v1895, %v1890
      %v2456 = vpack.c.b16 %v1896, %v1891
      %v2457 = vpack.c.b16 %v1902, %v1897
      %v2458 = vpack.c.b16 %v1903, %v1898
      %v2459 = vpack.c.b16 %v1904, %v1899
      %v2460 = vpack.c.b16 %v1905, %v1900
      %v2461 = vpack.c.b16 %v1906, %v1901
      %v2462 = vpack.c.b16 %v1912, %v1907
      %v2463 = vpack.c.b16 %v1913, %v1908
      %v2464 = vpack.c.b16 %v1914, %v1909
      %v2465 = vpack.c.b16 %v1915, %v1910
      %v2466 = vpack.c.b16 %v1916, %v1911
      %v2467 = vpack.c.b16 %v1922, %v1917
      %v2468 = vpack.c.b16 %v1923, %v1918
      %v2469 = vpack.c.b16 %v1924, %v1919
      %v2470 = vpack.c.b16 %v1925, %v1920
      %v2471 = vpack.c.b16 %v1926, %v1921
      %v2472 = vpack.c.b16 %v1932, %v1927
      %v2473 = vpack.c.b16 %v1933, %v1928
      %v2474 = vpack.c.b16 %v1934, %v1929
      %v2475 = vpack.c.b16 %v1935, %v1930
      %v2476 = vpack.c.b16 %v1936, %v1931
      %v2477 = vpack.c.b16 %v1942, %v1937
      %v2478 = vpack.c.b16 %v1943, %v1938
      %v2479 = vpack.c.b16 %v1944, %v1939
      %v2480 = vpack.c.b16 %v1945, %v1940
      %v2481 = vpack.c.b16 %v1946, %v1941
      %v2482 = vpack.c.b16 %v1952, %v1947
      %v2483 = vpack.c.b16 %v1953, %v1948
      %v2484 = vpack.c.b16 %v1954, %v1949
      %v2485 = vpack.c.b16 %v1955, %v1950
      %v2486 = vpack.c.b16 %v1956, %v1951
      %v2487 = vpack.c.b16 %v1962, %v1957
      %v2488 = vpack.c.b16 %v1963, %v1958
      %v2489 = vpack.c.b16 %v1964, %v1959
      %v2490 = vpack.c.b16 %v1965, %v1960
      %v2491 = vpack.c.b16 %v1966, %v1961
      %v2492 = vpack.c.b16 %v1972, %v1967
      %v2493 = vpack.c.b16 %v1973, %v1968
      %v2494 = vpack.c.b16 %v1974, %v1969
      %v2495 = vpack.c.b16 %v1975, %v1970
      %v2496 = vpack.c.b16 %v1976, %v1971
      %v2497 = vpack.c.b16 %v1982, %v1977
      %v2498 = vpack.c.b16 %v1983, %v1978
      %v2499 = vpack.c.b16 %v1984, %v1979
      %v2500 = vpack.c.b16 %v1985, %v1980
      %v2501 = vpack.c.b16 %v1986, %v1981
      %v2502 = vpack.c.b16 %v1992, %v1987
      %v2503 = vpack.c.b16 %v1993, %v1988
      %v2504 = vpack.c.b16 %v1994, %v1989
      %v2505 = vpack.c.b16 %v1995, %v1990
      %v2506 = vpack.c.b16 %v1996, %v1991
      %v2507 = vpack.c.b16 %v2002, %v1997
      %v2508 = vpack.c.b16 %v2003, %v1998
      %v2509 = vpack.c.b16 %v2004, %v1999
      %v2510 = vpack.c.b16 %v2005, %v2000
      %v2511 = vpack.c.b16 %v2006, %v2001
      %v2512 = vpack.c.b16 %v2012, %v2007
      %v2513 = vpack.c.b16 %v2013, %v2008
      %v2514 = vpack.c.b16 %v2014, %v2009
      %v2515 = vpack.c.b16 %v2015, %v2010
      %v2516 = vpack.c.b16 %v2016, %v2011
      %v2517 = vpack.c.b16 %v2022, %v2017
      %v2518 = vpack.c.b16 %v2023, %v2018
      %v2519 = vpack.c.b16 %v2024, %v2019
      %v2520 = vpack.c.b16 %v2025, %v2020
      %v2521 = vpack.c.b16 %v2026, %v2021
      %v2522 = vpack.c.b16 %v2032, %v2027
      %v2523 = vpack.c.b16 %v2033, %v2028
      %v2524 = vpack.c.b16 %v2034, %v2029
      %v2525 = vpack.c.b16 %v2035, %v2030
      %v2526 = vpack.c.b16 %v2036, %v2031
      %v2527 = vpack.c.b16 %v2042, %v2037
      %v2528 = vpack.c.b16 %v2043, %v2038
      %v2529 = vpack.c.b16 %v2044, %v2039
      %v2530 = vpack.c.b16 %v2045, %v2040
      %v2531 = vpack.c.b16 %v2046, %v2041
      %v2532 = vpack.c.b16 %v2052, %v2047
      %v2533 = vpack.c.b16 %v2053, %v2048
      %v2534 = vpack.c.b16 %v2054, %v2049
      %v2535 = vpack.c.b16 %v2055, %v2050
      %v2536 = vpack.c.b16 %v2056, %v2051
      %v2537 = vpack.c.b16 %v2062, %v2057
      %v2538 = vpack.c.b16 %v2063, %v2058
      %v2539 = vpack.c.b16 %v2064, %v2059
      %v2540 = vpack.c.b16 %v2065, %v2060
      %v2541 = vpack.c.b16 %v2066, %v2061
      %v2542 = vpack.c.b16 %v2072, %v2067
      %v2543 = vpack.c.b16 %v2073, %v2068
      %v2544 = vpack.c.b16 %v2074, %v2069
      %v2545 = vpack.c.b16 %v2075, %v2070
      %v2546 = vpack.c.b16 %v2076, %v2071
      %v2547 = vpack.c.b16 %v2082, %v2077
      %v2548 = vpack.c.b16 %v2083, %v2078
      %v2549 = vpack.c.b16 %v2084, %v2079
      %v2550 = vpack.c.b16 %v2085, %v2080
      %v2551 = vpack.c.b16 %v2086, %v2081
      %v2552 = vpack.c.b16 %v2092, %v2087
      %v2553 = vpack.c.b16 %v2093, %v2088
      %v2554 = vpack.c.b16 %v2094, %v2089
      %v2555 = vpack.c.b16 %v2095, %v2090
      %v2556 = vpack.c.b16 %v2096, %v2091
      %v2557 = vpack.c.b16 %v2102, %v2097
      %v2558 = vpack.c.b16 %v2103, %v2098
      %v2559 = vpack.c.b16 %v2104, %v2099
      %v2560 = vpack.c.b16 %v2105, %v2100
      %v2561 = vpack.c.b16 %v2106, %v2101
      %v2562 = vpack.c.b16 %v2112, %v2107
      %v2563 = vpack.c.b16 %v2113, %v2108
      %v2564 = vpack.c.b16 %v2114, %v2109
      %v2565 = vpack.c.b16 %v2115, %v2110
      %v2566 = vpack.c.b16 %v2116, %v2111
      %v2567 = vpack.c.b16 %v2122, %v2117
      %v2568 = vpack.c.b16 %v2123, %v2118
      %v2569 = vpack.c.b16 %v2124, %v2119
      %v2570 = vpack.c.b16 %v2125, %v2120
      %v2571 = vpack.c.b16 %v2126, %v2121
      %v2572 = vpack.c.b16 %v2132, %v2127
      %v2573 = vpack.c.b16 %v2133, %v2128
      %v2574 = vpack.c.b16 %v2134, %v2129
      %v2575 = vpack.c.b16 %v2135, %v2130
      %v2576 = vpack.c.b16 %v2136, %v2131
      %v2577 = vpack.c.b16 %v2142, %v2137
      %v2578 = vpack.c.b16 %v2143, %v2138
      %v2579 = vpack.c.b16 %v2144, %v2139
      %v2580 = vpack.c.b16 %v2145, %v2140
      %v2581 = vpack.c.b16 %v2146, %v2141
      %v2582 = vpack.c.b16 %v2152, %v2147
      %v2583 = vpack.c.b16 %v2153, %v2148
      %v2584 = vpack.c.b16 %v2154, %v2149
      %v2585 = vpack.c.b16 %v2155, %v2150
      %v2586 = vpack.c.b16 %v2156, %v2151
      %v2587 = vpack.c.b16 %v2162, %v2157
      %v2588 = vpack.c.b16 %v2163, %v2158
      %v2589 = vpack.c.b16 %v2164, %v2159
      %v2590 = vpack.c.b16 %v2165, %v2160
      %v2591 = vpack.c.b16 %v2166, %v2161
      %v2592 = vpack.c.b16 %v2172, %v2167
      %v2593 = vpack.c.b16 %v2173, %v2168
      %v2594 = vpack.c.b16 %v2174, %v2169
      %v2595 = vpack.c.b16 %v2175, %v2170
      %v2596 = vpack.c.b16 %v2176, %v2171
      %v2597 = vpack.c.b16 %v2182, %v2177
      %v2598 = vpack.c.b16 %v2183, %v2178
      %v2599 = vpack.c.b16 %v2184, %v2179
      %v2600 = vpack.c.b16 %v2185, %v2180
      %v2601 = vpack.c.b16 %v2186, %v2181
      %v2602 = vpack.c.b16 %v2192, %v2187
      %v2603 = vpack.c.b16 %v2193, %v2188
      %v2604 = vpack.c.b16 %v2194, %v2189
      %v2605 = vpack.c.b16 %v2195, %v2190
      %v2606 = vpack.c.b16 %v2196, %v2191
      %v2607 = vpack.c.b16 %v2202, %v2197
      %v2608 = vpack.c.b16 %v2203, %v2198
      %v2609 = vpack.c.b16 %v2204, %v2199
      %v2610 = vpack.c.b16 %v2205, %v2200
      %v2611 = vpack.c.b16 %v2206, %v2201
      %v2612 = vpack.c.b16 %v2212, %v2207
      %v2613 = vpack.c.b16 %v2213, %v2208
      %v2614 = vpack.c.b16 %v2214, %v2209
      %v2615 = vpack.c.b16 %v2215, %v2210
      %v2616 = vpack.c.b16 %v2216, %v2211
      %3017 = vmatprep.subr.bf16.mxu0 %v2218
      %3018 = vmatpush1.bf16.msra.mxu0 %v2217
      %3019 = vmatprep.subr.bf16.mxu0 %v2223
      %3020 = vmatpush1.bf16.msra.mxu0 %v2222
      %3021 = vmatprep.subr.bf16.mxu0 %v2228
      %3022 = vmatpush1.bf16.msra.mxu0 %v2227
      %3023 = vmatprep.subr.bf16.mxu0 %v2233
      %3024 = vmatpush1.bf16.msra.mxu0 %v2232
      %3025 = vmatprep.subr.bf16.mxu0 %v2238
      %3026 = vmatpush1.bf16.msra.mxu0 %v2237
      %3027 = vmatprep.subr.bf16.mxu0 %v2243
      %3028 = vmatpush1.bf16.msra.mxu0 %v2242
      %3029 = vmatprep.subr.bf16.mxu0 %v2248
      %3030 = vmatpush1.bf16.msra.mxu0 %v2247
      %3031 = vmatprep.subr.bf16.mxu0 %v2253
      %3032 = vmatpush1.bf16.msra.mxu0 %v2252
      %3033 = vmatprep.subr.bf16.mxu0 %v2258
      %3034 = vmatpush1.bf16.msra.mxu0 %v2257
      %3035 = vmatprep.subr.bf16.mxu0 %v2263
      %3036 = vmatpush1.bf16.msra.mxu0 %v2262
      %3037 = vmatprep.subr.bf16.mxu0 %v2268
      %3038 = vmatpush1.bf16.msra.mxu0 %v2267
      %3039 = vmatprep.subr.bf16.mxu0 %v2273
      %3040 = vmatpush1.bf16.msra.mxu0 %v2272
      %3041 = vmatprep.subr.bf16.mxu0 %v2278
      %3042 = vmatpush1.bf16.msra.mxu0 %v2277
      %3043 = vmatprep.subr.bf16.mxu0 %v2283
      %3044 = vmatpush1.bf16.msra.mxu0 %v2282
      %3045 = vmatprep.subr.bf16.mxu0 %v2288
      %3046 = vmatpush1.bf16.msra.mxu0 %v2287
      %3047 = vmatprep.subr.bf16.mxu0 %v2293
      %3048 = vmatpush1.bf16.msra.mxu0 %v2292
      %3049 = vmatprep.mubr.bf16.mxu0 %v421
      %3050 = vmatmul.mubr.bf16.gmra.mrb[0].mxu0 %v420
      %v3051 = vpop.f32.mrb[0].mxu0
      %v3052 = vadd.f32 %v915, %v3051
      %v3053 = vpop.f32.mrb[0].mxu0
      %v3054 = vadd.f32 %v919, %v3053
      %v3055 = vpop.f32.mrb[0].mxu0
      %v3056 = vpop.f32.mrb[0].mxu0
      %3057 = vdwg.mxu0
      %3058 = vmatprep.subr.bf16.mxu0 %v2298
      %3059 = vmatpush1.bf16.msra.mxu0 %v2297
      %3060 = vmatprep.subr.bf16.mxu0 %v2303
      %3061 = vmatpush1.bf16.msra.mxu0 %v2302
      %3062 = vmatprep.subr.bf16.mxu0 %v2308
      %3063 = vmatpush1.bf16.msra.mxu0 %v2307
      %3064 = vmatprep.subr.bf16.mxu0 %v2313
      %3065 = vmatpush1.bf16.msra.mxu0 %v2312
      %3066 = vmatprep.subr.bf16.mxu0 %v2318
      %3067 = vmatpush1.bf16.msra.mxu0 %v2317
      %3068 = vmatprep.subr.bf16.mxu0 %v2323
      %3069 = vmatpush1.bf16.msra.mxu0 %v2322
      %3070 = vmatprep.subr.bf16.mxu0 %v2328
      %3071 = vmatpush1.bf16.msra.mxu0 %v2327
      %3072 = vmatprep.subr.bf16.mxu0 %v2333
      %3073 = vmatpush1.bf16.msra.mxu0 %v2332
      %3074 = vmatprep.subr.bf16.mxu0 %v2338
      %3075 = vmatpush1.bf16.msra.mxu0 %v2337
      %3076 = vmatprep.subr.bf16.mxu0 %v2343
      %3077 = vmatpush1.bf16.msra.mxu0 %v2342
      %3078 = vmatprep.subr.bf16.mxu0 %v2348
      %3079 = vmatpush1.bf16.msra.mxu0 %v2347
      %3080 = vmatprep.subr.bf16.mxu0 %v2353
      %3081 = vmatpush1.bf16.msra.mxu0 %v2352
      %3082 = vmatprep.subr.bf16.mxu0 %v2358
      %3083 = vmatpush1.bf16.msra.mxu0 %v2357
      %3084 = vmatprep.subr.bf16.mxu0 %v2363
      %3085 = vmatpush1.bf16.msra.mxu0 %v2362
      %3086 = vmatprep.subr.bf16.mxu0 %v2368
      %3087 = vmatpush1.bf16.msra.mxu0 %v2367
      %3088 = vmatprep.subr.bf16.mxu0 %v2373
      %3089 = vmatpush1.bf16.msra.mxu0 %v2372
      %3090 = vmatprep.mubr.bf16.mxu0 %v423
      %3091 = vmatmul.mubr.bf16.gmra.mrb[0].mxu0 %v422
      %v3092 = vpop.f32.mrb[0].mxu0
      %v3093 = vadd.f32 %v3052, %v3092
      %v3094 = vpop.f32.mrb[0].mxu0
      %v3095 = vadd.f32 %v3054, %v3094
      %v3096 = vpop.f32.mrb[0].mxu0
      %v3097 = vpop.f32.mrb[0].mxu0
      %3098 = vdwg.mxu0
      %3099 = vmatprep.subr.bf16.mxu0 %v2378
      %3100 = vmatpush1.bf16.msra.mxu0 %v2377
      %3101 = vmatprep.subr.bf16.mxu0 %v2383
      %3102 = vmatpush1.bf16.msra.mxu0 %v2382
      %3103 = vmatprep.subr.bf16.mxu0 %v2388
      %3104 = vmatpush1.bf16.msra.mxu0 %v2387
      %3105 = vmatprep.subr.bf16.mxu0 %v2393
      %3106 = vmatpush1.bf16.msra.mxu0 %v2392
      %3107 = vmatprep.subr.bf16.mxu0 %v2398
      %3108 = vmatpush1.bf16.msra.mxu0 %v2397
      %3109 = vmatprep.subr.bf16.mxu0 %v2403
      %3110 = vmatpush1.bf16.msra.mxu0 %v2402
      %3111 = vmatprep.subr.bf16.mxu0 %v2408
      %3112 = vmatpush1.bf16.msra.mxu0 %v2407
      %3113 = vmatprep.subr.bf16.mxu0 %v2413
      %3114 = vmatpush1.bf16.msra.mxu0 %v2412
      %3115 = vmatprep.subr.bf16.mxu0 %v2418
      %3116 = vmatpush1.bf16.msra.mxu0 %v2417
      %3117 = vmatprep.subr.bf16.mxu0 %v2423
      %3118 = vmatpush1.bf16.msra.mxu0 %v2422
      %3119 = vmatprep.subr.bf16.mxu0 %v2428
      %3120 = vmatpush1.bf16.msra.mxu0 %v2427
      %3121 = vmatprep.subr.bf16.mxu0 %v2433
      %3122 = vmatpush1.bf16.msra.mxu0 %v2432
      %3123 = vmatprep.subr.bf16.mxu0 %v2438
      %3124 = vmatpush1.bf16.msra.mxu0 %v2437
      %3125 = vmatprep.subr.bf16.mxu0 %v2443
      %3126 = vmatpush1.bf16.msra.mxu0 %v2442
      %3127 = vmatprep.subr.bf16.mxu0 %v2448
      %3128 = vmatpush1.bf16.msra.mxu0 %v2447
      %3129 = vmatprep.subr.bf16.mxu0 %v2453
      %3130 = vmatpush1.bf16.msra.mxu0 %v2452
      %3131 = vmatprep.mubr.bf16.mxu0 %v425
      %3132 = vmatmul.mubr.bf16.gmra.mrb[0].mxu0 %v424
      %v3133 = vpop.f32.mrb[0].mxu0
      %v3134 = vadd.f32 %v3093, %v3133
      %v3135 = vpop.f32.mrb[0].mxu0
      %v3136 = vadd.f32 %v3095, %v3135
      %v3137 = vpop.f32.mrb[0].mxu0
      %v3138 = vpop.f32.mrb[0].mxu0
      %3139 = vdwg.mxu0
      %3140 = vmatprep.subr.bf16.mxu0 %v2458
      %3141 = vmatpush1.bf16.msra.mxu0 %v2457
      %3142 = vmatprep.subr.bf16.mxu0 %v2463
      %3143 = vmatpush1.bf16.msra.mxu0 %v2462
      %3144 = vmatprep.subr.bf16.mxu0 %v2468
      %3145 = vmatpush1.bf16.msra.mxu0 %v2467
      %3146 = vmatprep.subr.bf16.mxu0 %v2473
      %3147 = vmatpush1.bf16.msra.mxu0 %v2472
      %3148 = vmatprep.subr.bf16.mxu0 %v2478
      %3149 = vmatpush1.bf16.msra.mxu0 %v2477
      %3150 = vmatprep.subr.bf16.mxu0 %v2483
      %3151 = vmatpush1.bf16.msra.mxu0 %v2482
      %3152 = vmatprep.subr.bf16.mxu0 %v2488
      %3153 = vmatpush1.bf16.msra.mxu0 %v2487
      %3154 = vmatprep.subr.bf16.mxu0 %v2493
      %3155 = vmatpush1.bf16.msra.mxu0 %v2492
      %3156 = vmatprep.subr.bf16.mxu0 %v2498
      %3157 = vmatpush1.bf16.msra.mxu0 %v2497
      %3158 = vmatprep.subr.bf16.mxu0 %v2503
      %3159 = vmatpush1.bf16.msra.mxu0 %v2502
      %3160 = vmatprep.subr.bf16.mxu0 %v2508
      %3161 = vmatpush1.bf16.msra.mxu0 %v2507
      %3162 = vmatprep.subr.bf16.mxu0 %v2513
      %3163 = vmatpush1.bf16.msra.mxu0 %v2512
      %3164 = vmatprep.subr.bf16.mxu0 %v2518
      %3165 = vmatpush1.bf16.msra.mxu0 %v2517
      %3166 = vmatprep.subr.bf16.mxu0 %v2523
      %3167 = vmatpush1.bf16.msra.mxu0 %v2522
      %3168 = vmatprep.subr.bf16.mxu0 %v2528
      %3169 = vmatpush1.bf16.msra.mxu0 %v2527
      %3170 = vmatprep.subr.bf16.mxu0 %v2533
      %3171 = vmatpush1.bf16.msra.mxu0 %v2532
      %3172 = vmatprep.mubr.bf16.mxu0 %v427
      %3173 = vmatmul.mubr.bf16.gmra.mrb[0].mxu0 %v426
      %v3174 = vpop.f32.mrb[0].mxu0
      %v3175 = vadd.f32 %v3134, %v3174
      %v3176 = vpop.f32.mrb[0].mxu0
      %v3177 = vadd.f32 %v3136, %v3176
      %v3178 = vpop.f32.mrb[0].mxu0
      %v3179 = vpop.f32.mrb[0].mxu0
      %3180 = vdwg.mxu0
      %3181 = vmatprep.subr.bf16.mxu0 %v2538
      %3182 = vmatpush1.bf16.msra.mxu0 %v2537
      %3183 = vmatprep.subr.bf16.mxu0 %v2543
      %3184 = vmatpush1.bf16.msra.mxu0 %v2542
      %3185 = vmatprep.subr.bf16.mxu0 %v2548
      %3186 = vmatpush1.bf16.msra.mxu0 %v2547
      %3187 = vmatprep.subr.bf16.mxu0 %v2553
      %3188 = vmatpush1.bf16.msra.mxu0 %v2552
      %3189 = vmatprep.subr.bf16.mxu0 %v2558
      %3190 = vmatpush1.bf16.msra.mxu0 %v2557
      %3191 = vmatprep.subr.bf16.mxu0 %v2563
      %3192 = vmatpush1.bf16.msra.mxu0 %v2562
      %3193 = vmatprep.subr.bf16.mxu0 %v2568
      %3194 = vmatpush1.bf16.msra.mxu0 %v2567
      %3195 = vmatprep.subr.bf16.mxu0 %v2573
      %3196 = vmatpush1.bf16.msra.mxu0 %v2572
      %3197 = vmatprep.subr.bf16.mxu0 %v2578
      %3198 = vmatpush1.bf16.msra.mxu0 %v2577
      %3199 = vmatprep.subr.bf16.mxu0 %v2583
      %3200 = vmatpush1.bf16.msra.mxu0 %v2582
      %3201 = vmatprep.subr.bf16.mxu0 %v2588
      %3202 = vmatpush1.bf16.msra.mxu0 %v2587
      %3203 = vmatprep.subr.bf16.mxu0 %v2593
      %3204 = vmatpush1.bf16.msra.mxu0 %v2592
      %3205 = vmatprep.subr.bf16.mxu0 %v2598
      %3206 = vmatpush1.bf16.msra.mxu0 %v2597
      %3207 = vmatprep.subr.bf16.mxu0 %v2603
      %3208 = vmatpush1.bf16.msra.mxu0 %v2602
      %3209 = vmatprep.subr.bf16.mxu0 %v2608
      %3210 = vmatpush1.bf16.msra.mxu0 %v2607
      %3211 = vmatprep.subr.bf16.mxu0 %v2613
      %3212 = vmatpush1.bf16.msra.mxu0 %v2612
      %3213 = vmatprep.mubr.bf16.mxu0 %v429
      %3214 = vmatmul.mubr.bf16.gmra.mrb[0].mxu0 %v428
      %v3215 = vpop.f32.mrb[0].mxu0
      %v3216 = vadd.f32 %v3175, %v3215
      %v3217 = vpop.f32.mrb[0].mxu0
      %v3218 = vadd.f32 %v3177, %v3217
      %v3219 = vpop.f32.mrb[0].mxu0
      %v3220 = vpop.f32.mrb[0].mxu0
      %3221 = vdwg.mxu0
      %3222 = vmatprep.subr.bf16.mxu0 %v2220
      %3223 = vmatpush1.bf16.msra.mxu0 %v2219
      %3224 = vmatprep.subr.bf16.mxu0 %v2225
      %3225 = vmatpush1.bf16.msra.mxu0 %v2224
      %3226 = vmatprep.subr.bf16.mxu0 %v2230
      %3227 = vmatpush1.bf16.msra.mxu0 %v2229
      %3228 = vmatprep.subr.bf16.mxu0 %v2235
      %3229 = vmatpush1.bf16.msra.mxu0 %v2234
      %3230 = vmatprep.subr.bf16.mxu0 %v2240
      %3231 = vmatpush1.bf16.msra.mxu0 %v2239
      %3232 = vmatprep.subr.bf16.mxu0 %v2245
      %3233 = vmatpush1.bf16.msra.mxu0 %v2244
      %3234 = vmatprep.subr.bf16.mxu0 %v2250
      %3235 = vmatpush1.bf16.msra.mxu0 %v2249
      %3236 = vmatprep.subr.bf16.mxu0 %v2255
      %3237 = vmatpush1.bf16.msra.mxu0 %v2254
      %3238 = vmatprep.subr.bf16.mxu0 %v2260
      %3239 = vmatpush1.bf16.msra.mxu0 %v2259
      %3240 = vmatprep.subr.bf16.mxu0 %v2265
      %3241 = vmatpush1.bf16.msra.mxu0 %v2264
      %3242 = vmatprep.subr.bf16.mxu0 %v2270
      %3243 = vmatpush1.bf16.msra.mxu0 %v2269
      %3244 = vmatprep.subr.bf16.mxu0 %v2275
      %3245 = vmatpush1.bf16.msra.mxu0 %v2274
      %3246 = vmatprep.subr.bf16.mxu0 %v2280
      %3247 = vmatpush1.bf16.msra.mxu0 %v2279
      %3248 = vmatprep.subr.bf16.mxu0 %v2285
      %3249 = vmatpush1.bf16.msra.mxu0 %v2284
      %3250 = vmatprep.subr.bf16.mxu0 %v2290
      %3251 = vmatpush1.bf16.msra.mxu0 %v2289
      %3252 = vmatprep.subr.bf16.mxu0 %v2295
      %3253 = vmatpush1.bf16.msra.mxu0 %v2294
      %3254 = vmatprep.mubr.bf16.mxu0 %v421
      %3255 = vmatmul.mubr.bf16.gmra.mrb[0].mxu0 %v420
      %v3256 = vpop.f32.mrb[0].mxu0
      %v3257 = vadd.f32 %v923, %v3256
      %v3258 = vpop.f32.mrb[0].mxu0
      %v3259 = vadd.f32 %v927, %v3258
      %v3260 = vpop.f32.mrb[0].mxu0
      %v3261 = vpop.f32.mrb[0].mxu0
      %3262 = vdwg.mxu0
      %3263 = vmatprep.subr.bf16.mxu0 %v2300
      %3264 = vmatpush1.bf16.msra.mxu0 %v2299
      %3265 = vmatprep.subr.bf16.mxu0 %v2305
      %3266 = vmatpush1.bf16.msra.mxu0 %v2304
      %3267 = vmatprep.subr.bf16.mxu0 %v2310
      %3268 = vmatpush1.bf16.msra.mxu0 %v2309
      %3269 = vmatprep.subr.bf16.mxu0 %v2315
      %3270 = vmatpush1.bf16.msra.mxu0 %v2314
      %3271 = vmatprep.subr.bf16.mxu0 %v2320
      %3272 = vmatpush1.bf16.msra.mxu0 %v2319
      %3273 = vmatprep.subr.bf16.mxu0 %v2325
      %3274 = vmatpush1.bf16.msra.mxu0 %v2324
      %3275 = vmatprep.subr.bf16.mxu0 %v2330
      %3276 = vmatpush1.bf16.msra.mxu0 %v2329
      %3277 = vmatprep.subr.bf16.mxu0 %v2335
      %3278 = vmatpush1.bf16.msra.mxu0 %v2334
      %3279 = vmatprep.subr.bf16.mxu0 %v2340
      %3280 = vmatpush1.bf16.msra.mxu0 %v2339
      %3281 = vmatprep.subr.bf16.mxu0 %v2345
      %3282 = vmatpush1.bf16.msra.mxu0 %v2344
      %3283 = vmatprep.subr.bf16.mxu0 %v2350
      %3284 = vmatpush1.bf16.msra.mxu0 %v2349
      %3285 = vmatprep.subr.bf16.mxu0 %v2355
      %3286 = vmatpush1.bf16.msra.mxu0 %v2354
      %3287 = vmatprep.subr.bf16.mxu0 %v2360
      %3288 = vmatpush1.bf16.msra.mxu0 %v2359
      %3289 = vmatprep.subr.bf16.mxu0 %v2365
      %3290 = vmatpush1.bf16.msra.mxu0 %v2364
      %3291 = vmatprep.subr.bf16.mxu0 %v2370
      %3292 = vmatpush1.bf16.msra.mxu0 %v2369
      %3293 = vmatprep.subr.bf16.mxu0 %v2375
      %3294 = vmatpush1.bf16.msra.mxu0 %v2374
      %3295 = vmatprep.mubr.bf16.mxu0 %v423
      %3296 = vmatmul.mubr.bf16.gmra.mrb[0].mxu0 %v422
      %v3297 = vpop.f32.mrb[0].mxu0
      %v3298 = vadd.f32 %v3257, %v3297
      %v3299 = vpop.f32.mrb[0].mxu0
      %v3300 = vadd.f32 %v3259, %v3299
      %v3301 = vpop.f32.mrb[0].mxu0
      %v3302 = vpop.f32.mrb[0].mxu0
      %3303 = vdwg.mxu0
      %3304 = vmatprep.subr.bf16.mxu0 %v2380
      %3305 = vmatpush1.bf16.msra.mxu0 %v2379
      %3306 = vmatprep.subr.bf16.mxu0 %v2385
      %3307 = vmatpush1.bf16.msra.mxu0 %v2384
      %3308 = vmatprep.subr.bf16.mxu0 %v2390
      %3309 = vmatpush1.bf16.msra.mxu0 %v2389
      %3310 = vmatprep.subr.bf16.mxu0 %v2395
      %3311 = vmatpush1.bf16.msra.mxu0 %v2394
      %3312 = vmatprep.subr.bf16.mxu0 %v2400
      %3313 = vmatpush1.bf16.msra.mxu0 %v2399
      %3314 = vmatprep.subr.bf16.mxu0 %v2405
      %3315 = vmatpush1.bf16.msra.mxu0 %v2404
      %3316 = vmatprep.subr.bf16.mxu0 %v2410
      %3317 = vmatpush1.bf16.msra.mxu0 %v2409
      %3318 = vmatprep.subr.bf16.mxu0 %v2415
      %3319 = vmatpush1.bf16.msra.mxu0 %v2414
      %3320 = vmatprep.subr.bf16.mxu0 %v2420
      %3321 = vmatpush1.bf16.msra.mxu0 %v2419
      %3322 = vmatprep.subr.bf16.mxu0 %v2425
      %3323 = vmatpush1.bf16.msra.mxu0 %v2424
      %3324 = vmatprep.subr.bf16.mxu0 %v2430
      %3325 = vmatpush1.bf16.msra.mxu0 %v2429
      %3326 = vmatprep.subr.bf16.mxu0 %v2435
      %3327 = vmatpush1.bf16.msra.mxu0 %v2434
      %3328 = vmatprep.subr.bf16.mxu0 %v2440
      %3329 = vmatpush1.bf16.msra.mxu0 %v2439
      %3330 = vmatprep.subr.bf16.mxu0 %v2445
      %3331 = vmatpush1.bf16.msra.mxu0 %v2444
      %3332 = vmatprep.subr.bf16.mxu0 %v2450
      %3333 = vmatpush1.bf16.msra.mxu0 %v2449
      %3334 = vmatprep.subr.bf16.mxu0 %v2455
      %3335 = vmatpush1.bf16.msra.mxu0 %v2454
      %3336 = vmatprep.mubr.bf16.mxu0 %v425
      %3337 = vmatmul.mubr.bf16.gmra.mrb[0].mxu0 %v424
      %v3338 = vpop.f32.mrb[0].mxu0
      %v3339 = vadd.f32 %v3298, %v3338
      %v3340 = vpop.f32.mrb[0].mxu0
      %v3341 = vadd.f32 %v3300, %v3340
      %v3342 = vpop.f32.mrb[0].mxu0
      %v3343 = vpop.f32.mrb[0].mxu0
      %3344 = vdwg.mxu0
      %3345 = vmatprep.subr.bf16.mxu0 %v2460
      %3346 = vmatpush1.bf16.msra.mxu0 %v2459
      %3347 = vmatprep.subr.bf16.mxu0 %v2465
      %3348 = vmatpush1.bf16.msra.mxu0 %v2464
      %3349 = vmatprep.subr.bf16.mxu0 %v2470
      %3350 = vmatpush1.bf16.msra.mxu0 %v2469
      %3351 = vmatprep.subr.bf16.mxu0 %v2475
      %3352 = vmatpush1.bf16.msra.mxu0 %v2474
      %3353 = vmatprep.subr.bf16.mxu0 %v2480
      %3354 = vmatpush1.bf16.msra.mxu0 %v2479
      %3355 = vmatprep.subr.bf16.mxu0 %v2485
      %3356 = vmatpush1.bf16.msra.mxu0 %v2484
      %3357 = vmatprep.subr.bf16.mxu0 %v2490
      %3358 = vmatpush1.bf16.msra.mxu0 %v2489
      %3359 = vmatprep.subr.bf16.mxu0 %v2495
      %3360 = vmatpush1.bf16.msra.mxu0 %v2494
      %3361 = vmatprep.subr.bf16.mxu0 %v2500
      %3362 = vmatpush1.bf16.msra.mxu0 %v2499
      %3363 = vmatprep.subr.bf16.mxu0 %v2505
      %3364 = vmatpush1.bf16.msra.mxu0 %v2504
      %3365 = vmatprep.subr.bf16.mxu0 %v2510
      %3366 = vmatpush1.bf16.msra.mxu0 %v2509
      %3367 = vmatprep.subr.bf16.mxu0 %v2515
      %3368 = vmatpush1.bf16.msra.mxu0 %v2514
      %3369 = vmatprep.subr.bf16.mxu0 %v2520
      %3370 = vmatpush1.bf16.msra.mxu0 %v2519
      %3371 = vmatprep.subr.bf16.mxu0 %v2525
      %3372 = vmatpush1.bf16.msra.mxu0 %v2524
      %3373 = vmatprep.subr.bf16.mxu0 %v2530
      %3374 = vmatpush1.bf16.msra.mxu0 %v2529
      %3375 = vmatprep.subr.bf16.mxu0 %v2535
      %3376 = vmatpush1.bf16.msra.mxu0 %v2534
      %3377 = vmatprep.mubr.bf16.mxu0 %v427
      %3378 = vmatmul.mubr.bf16.gmra.mrb[0].mxu0 %v426
      %v3379 = vpop.f32.mrb[0].mxu0
      %v3380 = vadd.f32 %v3339, %v3379
      %v3381 = vpop.f32.mrb[0].mxu0
      %v3382 = vadd.f32 %v3341, %v3381
      %v3383 = vpop.f32.mrb[0].mxu0
      %v3384 = vpop.f32.mrb[0].mxu0
      %3385 = vdwg.mxu0
      %3386 = vmatprep.subr.bf16.mxu0 %v2540
      %3387 = vmatpush1.bf16.msra.mxu0 %v2539
      %3388 = vmatprep.subr.bf16.mxu0 %v2545
      %3389 = vmatpush1.bf16.msra.mxu0 %v2544
      %3390 = vmatprep.subr.bf16.mxu0 %v2550
      %3391 = vmatpush1.bf16.msra.mxu0 %v2549
      %3392 = vmatprep.subr.bf16.mxu0 %v2555
      %3393 = vmatpush1.bf16.msra.mxu0 %v2554
      %3394 = vmatprep.subr.bf16.mxu0 %v2560
      %3395 = vmatpush1.bf16.msra.mxu0 %v2559
      %3396 = vmatprep.subr.bf16.mxu0 %v2565
      %3397 = vmatpush1.bf16.msra.mxu0 %v2564
      %3398 = vmatprep.subr.bf16.mxu0 %v2570
      %3399 = vmatpush1.bf16.msra.mxu0 %v2569
      %3400 = vmatprep.subr.bf16.mxu0 %v2575
      %3401 = vmatpush1.bf16.msra.mxu0 %v2574
      %3402 = vmatprep.subr.bf16.mxu0 %v2580
      %3403 = vmatpush1.bf16.msra.mxu0 %v2579
      %3404 = vmatprep.subr.bf16.mxu0 %v2585
      %3405 = vmatpush1.bf16.msra.mxu0 %v2584
      %3406 = vmatprep.subr.bf16.mxu0 %v2590
      %3407 = vmatpush1.bf16.msra.mxu0 %v2589
      %3408 = vmatprep.subr.bf16.mxu0 %v2595
      %3409 = vmatpush1.bf16.msra.mxu0 %v2594
      %3410 = vmatprep.subr.bf16.mxu0 %v2600
      %3411 = vmatpush1.bf16.msra.mxu0 %v2599
      %3412 = vmatprep.subr.bf16.mxu0 %v2605
      %3413 = vmatpush1.bf16.msra.mxu0 %v2604
      %3414 = vmatprep.subr.bf16.mxu0 %v2610
      %3415 = vmatpush1.bf16.msra.mxu0 %v2609
      %3416 = vmatprep.subr.bf16.mxu0 %v2615
      %3417 = vmatpush1.bf16.msra.mxu0 %v2614
      %3418 = vmatprep.mubr.bf16.mxu0 %v429
      %3419 = vmatmul.mubr.bf16.gmra.mrb[0].mxu0 %v428
      %v3420 = vpop.f32.mrb[0].mxu0
      %v3421 = vadd.f32 %v3380, %v3420
      %v3422 = vpop.f32.mrb[0].mxu0
      %v3423 = vadd.f32 %v3382, %v3422
      %v3424 = vpop.f32.mrb[0].mxu0
      %v3425 = vpop.f32.mrb[0].mxu0
      %3426 = vdwg.mxu0
      %3427 = vmatprep.subr.bf16.mxu0 0
      %3428 = vmatpush1.bf16.msra.mxu0 %v2221
      %3429 = vmatprep.subr.bf16.mxu0 0
      %3430 = vmatpush1.bf16.msra.mxu0 %v2226
      %3431 = vmatprep.subr.bf16.mxu0 0
      %3432 = vmatpush1.bf16.msra.mxu0 %v2231
      %3433 = vmatprep.subr.bf16.mxu0 0
      %3434 = vmatpush1.bf16.msra.mxu0 %v2236
      %3435 = vmatprep.subr.bf16.mxu0 0
      %3436 = vmatpush1.bf16.msra.mxu0 %v2241
      %3437 = vmatprep.subr.bf16.mxu0 0
      %3438 = vmatpush1.bf16.msra.mxu0 %v2246
      %3439 = vmatprep.subr.bf16.mxu0 0
      %3440 = vmatpush1.bf16.msra.mxu0 %v2251
      %3441 = vmatprep.subr.bf16.mxu0 0
      %3442 = vmatpush1.bf16.msra.mxu0 %v2256
      %3443 = vmatprep.subr.bf16.mxu0 0
      %3444 = vmatpush1.bf16.msra.mxu0 %v2261
      %3445 = vmatprep.subr.bf16.mxu0 0
      %3446 = vmatpush1.bf16.msra.mxu0 %v2266
      %3447 = vmatprep.subr.bf16.mxu0 0
      %3448 = vmatpush1.bf16.msra.mxu0 %v2271
      %3449 = vmatprep.subr.bf16.mxu0 0
      %3450 = vmatpush1.bf16.msra.mxu0 %v2276
      %3451 = vmatprep.subr.bf16.mxu0 0
      %3452 = vmatpush1.bf16.msra.mxu0 %v2281
      %3453 = vmatprep.subr.bf16.mxu0 0
      %3454 = vmatpush1.bf16.msra.mxu0 %v2286
      %3455 = vmatprep.subr.bf16.mxu0 0
      %3456 = vmatpush1.bf16.msra.mxu0 %v2291
      %3457 = vmatprep.subr.bf16.mxu0 0
      %3458 = vmatpush1.bf16.msra.mxu0 %v2296
      %3459 = vmatprep.mubr.bf16.mxu0 %v421
      %3460 = vmatmul.mubr.bf16.gmra.mrb[0].mxu0 %v420
      %v3461 = vpop.f32.mrb[0].mxu0
      %v3462 = vadd.f32 %v931, %v3461
      %v3463 = vpop.f32.mrb[0].mxu0
      %v3464 = vpop.f32.mrb[0].mxu0
      %v3465 = vpop.f32.mrb[0].mxu0
      %3466 = vdwg.mxu0
      %3467 = vmatprep.subr.bf16.mxu0 0
      %3468 = vmatpush1.bf16.msra.mxu0 %v2301
      %3469 = vmatprep.subr.bf16.mxu0 0
      %3470 = vmatpush1.bf16.msra.mxu0 %v2306
      %3471 = vmatprep.subr.bf16.mxu0 0
      %3472 = vmatpush1.bf16.msra.mxu0 %v2311
      %3473 = vmatprep.subr.bf16.mxu0 0
      %3474 = vmatpush1.bf16.msra.mxu0 %v2316
      %3475 = vmatprep.subr.bf16.mxu0 0
      %3476 = vmatpush1.bf16.msra.mxu0 %v2321
      %3477 = vmatprep.subr.bf16.mxu0 0
      %3478 = vmatpush1.bf16.msra.mxu0 %v2326
      %3479 = vmatprep.subr.bf16.mxu0 0
      %3480 = vmatpush1.bf16.msra.mxu0 %v2331
      %3481 = vmatprep.subr.bf16.mxu0 0
      %3482 = vmatpush1.bf16.msra.mxu0 %v2336
      %3483 = vmatprep.subr.bf16.mxu0 0
      %3484 = vmatpush1.bf16.msra.mxu0 %v2341
      %3485 = vmatprep.subr.bf16.mxu0 0
      %3486 = vmatpush1.bf16.msra.mxu0 %v2346
      %3487 = vmatprep.subr.bf16.mxu0 0
      %3488 = vmatpush1.bf16.msra.mxu0 %v2351
      %3489 = vmatprep.subr.bf16.mxu0 0
      %3490 = vmatpush1.bf16.msra.mxu0 %v2356
      %3491 = vmatprep.subr.bf16.mxu0 0
      %3492 = vmatpush1.bf16.msra.mxu0 %v2361
      %3493 = vmatprep.subr.bf16.mxu0 0
      %3494 = vmatpush1.bf16.msra.mxu0 %v2366
      %3495 = vmatprep.subr.bf16.mxu0 0
      %3496 = vmatpush1.bf16.msra.mxu0 %v2371
      %3497 = vmatprep.subr.bf16.mxu0 0
      %3498 = vmatpush1.bf16.msra.mxu0 %v2376
      %3499 = vmatprep.mubr.bf16.mxu0 %v423
      %3500 = vmatmul.mubr.bf16.gmra.mrb[0].mxu0 %v422
      %v3501 = vpop.f32.mrb[0].mxu0
      %v3502 = vadd.f32 %v3462, %v3501
      %v3503 = vpop.f32.mrb[0].mxu0
      %v3504 = vpop.f32.mrb[0].mxu0
      %v3505 = vpop.f32.mrb[0].mxu0
      %3506 = vdwg.mxu0
      %3507 = vmatprep.subr.bf16.mxu0 0
      %3508 = vmatpush1.bf16.msra.mxu0 %v2381
      %3509 = vmatprep.subr.bf16.mxu0 0
      %3510 = vmatpush1.bf16.msra.mxu0 %v2386
      %3511 = vmatprep.subr.bf16.mxu0 0
      %3512 = vmatpush1.bf16.msra.mxu0 %v2391
      %3513 = vmatprep.subr.bf16.mxu0 0
      %3514 = vmatpush1.bf16.msra.mxu0 %v2396
      %3515 = vmatprep.subr.bf16.mxu0 0
      %3516 = vmatpush1.bf16.msra.mxu0 %v2401
      %3517 = vmatprep.subr.bf16.mxu0 0
      %3518 = vmatpush1.bf16.msra.mxu0 %v2406
      %3519 = vmatprep.subr.bf16.mxu0 0
      %3520 = vmatpush1.bf16.msra.mxu0 %v2411
      %3521 = vmatprep.subr.bf16.mxu0 0
      %3522 = vmatpush1.bf16.msra.mxu0 %v2416
      %3523 = vmatprep.subr.bf16.mxu0 0
      %3524 = vmatpush1.bf16.msra.mxu0 %v2421
      %3525 = vmatprep.subr.bf16.mxu0 0
      %3526 = vmatpush1.bf16.msra.mxu0 %v2426
      %3527 = vmatprep.subr.bf16.mxu0 0
      %3528 = vmatpush1.bf16.msra.mxu0 %v2431
      %3529 = vmatprep.subr.bf16.mxu0 0
      %3530 = vmatpush1.bf16.msra.mxu0 %v2436
      %3531 = vmatprep.subr.bf16.mxu0 0
      %3532 = vmatpush1.bf16.msra.mxu0 %v2441
      %3533 = vmatprep.subr.bf16.mxu0 0
      %3534 = vmatpush1.bf16.msra.mxu0 %v2446
      %3535 = vmatprep.subr.bf16.mxu0 0
      %3536 = vmatpush1.bf16.msra.mxu0 %v2451
      %3537 = vmatprep.subr.bf16.mxu0 0
      %3538 = vmatpush1.bf16.msra.mxu0 %v2456
      %3539 = vmatprep.mubr.bf16.mxu0 %v425
      %3540 = vmatmul.mubr.bf16.gmra.mrb[0].mxu0 %v424
      %v3541 = vpop.f32.mrb[0].mxu0
      %v3542 = vadd.f32 %v3502, %v3541
      %v3543 = vpop.f32.mrb[0].mxu0
      %v3544 = vpop.f32.mrb[0].mxu0
      %v3545 = vpop.f32.mrb[0].mxu0
      %3546 = vdwg.mxu0
      %3547 = vmatprep.subr.bf16.mxu0 0
      %3548 = vmatpush1.bf16.msra.mxu0 %v2461
      %3549 = vmatprep.subr.bf16.mxu0 0
      %3550 = vmatpush1.bf16.msra.mxu0 %v2466
      %3551 = vmatprep.subr.bf16.mxu0 0
      %3552 = vmatpush1.bf16.msra.mxu0 %v2471
      %3553 = vmatprep.subr.bf16.mxu0 0
      %3554 = vmatpush1.bf16.msra.mxu0 %v2476
      %3555 = vmatprep.subr.bf16.mxu0 0
      %3556 = vmatpush1.bf16.msra.mxu0 %v2481
      %3557 = vmatprep.subr.bf16.mxu0 0
      %3558 = vmatpush1.bf16.msra.mxu0 %v2486
      %3559 = vmatprep.subr.bf16.mxu0 0
      %3560 = vmatpush1.bf16.msra.mxu0 %v2491
      %3561 = vmatprep.subr.bf16.mxu0 0
      %3562 = vmatpush1.bf16.msra.mxu0 %v2496
      %3563 = vmatprep.subr.bf16.mxu0 0
      %3564 = vmatpush1.bf16.msra.mxu0 %v2501
      %3565 = vmatprep.subr.bf16.mxu0 0
      %3566 = vmatpush1.bf16.msra.mxu0 %v2506
      %3567 = vmatprep.subr.bf16.mxu0 0
      %3568 = vmatpush1.bf16.msra.mxu0 %v2511
      %3569 = vmatprep.subr.bf16.mxu0 0
      %3570 = vmatpush1.bf16.msra.mxu0 %v2516
      %3571 = vmatprep.subr.bf16.mxu0 0
      %3572 = vmatpush1.bf16.msra.mxu0 %v2521
      %3573 = vmatprep.subr.bf16.mxu0 0
      %3574 = vmatpush1.bf16.msra.mxu0 %v2526
      %3575 = vmatprep.subr.bf16.mxu0 0
      %3576 = vmatpush1.bf16.msra.mxu0 %v2531
      %3577 = vmatprep.subr.bf16.mxu0 0
      %3578 = vmatpush1.bf16.msra.mxu0 %v2536
      %3579 = vmatprep.mubr.bf16.mxu0 %v427
      %3580 = vmatmul.mubr.bf16.gmra.mrb[0].mxu0 %v426
      %v3581 = vpop.f32.mrb[0].mxu0
      %v3582 = vadd.f32 %v3542, %v3581
      %v3583 = vpop.f32.mrb[0].mxu0
      %v3584 = vpop.f32.mrb[0].mxu0
      %v3585 = vpop.f32.mrb[0].mxu0
      %3586 = vdwg.mxu0
      %3587 = vmatprep.subr.bf16.mxu0 0
      %3588 = vmatpush1.bf16.msra.mxu0 %v2541
      %3589 = vmatprep.subr.bf16.mxu0 0
      %3590 = vmatpush1.bf16.msra.mxu0 %v2546
      %3591 = vmatprep.subr.bf16.mxu0 0
      %3592 = vmatpush1.bf16.msra.mxu0 %v2551
      %3593 = vmatprep.subr.bf16.mxu0 0
      %3594 = vmatpush1.bf16.msra.mxu0 %v2556
      %3595 = vmatprep.subr.bf16.mxu0 0
      %3596 = vmatpush1.bf16.msra.mxu0 %v2561
      %3597 = vmatprep.subr.bf16.mxu0 0
      %3598 = vmatpush1.bf16.msra.mxu0 %v2566
      %3599 = vmatprep.subr.bf16.mxu0 0
      %3600 = vmatpush1.bf16.msra.mxu0 %v2571
      %3601 = vmatprep.subr.bf16.mxu0 0
      %3602 = vmatpush1.bf16.msra.mxu0 %v2576
      %3603 = vmatprep.subr.bf16.mxu0 0
      %3604 = vmatpush1.bf16.msra.mxu0 %v2581
      %3605 = vmatprep.subr.bf16.mxu0 0
      %3606 = vmatpush1.bf16.msra.mxu0 %v2586
      %3607 = vmatprep.subr.bf16.mxu0 0
      %3608 = vmatpush1.bf16.msra.mxu0 %v2591
      %3609 = vmatprep.subr.bf16.mxu0 0
      %3610 = vmatpush1.bf16.msra.mxu0 %v2596
      %3611 = vmatprep.subr.bf16.mxu0 0
      %3612 = vmatpush1.bf16.msra.mxu0 %v2601
      %3613 = vmatprep.subr.bf16.mxu0 0
      %3614 = vmatpush1.bf16.msra.mxu0 %v2606
      %3615 = vmatprep.subr.bf16.mxu0 0
      %3616 = vmatpush1.bf16.msra.mxu0 %v2611
      %3617 = vmatprep.subr.bf16.mxu0 0
      %3618 = vmatpush1.bf16.msra.mxu0 %v2616
      %3619 = vmatprep.mubr.bf16.mxu0 %v429
      %3620 = vmatmul.mubr.bf16.gmra.mrb[0].mxu0 %v428
      %v3621 = vpop.f32.mrb[0].mxu0
      %v3622 = vadd.f32 %v3582, %v3621
      %v3623 = vpop.f32.mrb[0].mxu0
      %v3624 = vpop.f32.mrb[0].mxu0
      %v3625 = vpop.f32.mrb[0].mxu0
      %3626 = vdwg.mxu0
      %v3627 = vmax.f32 %v3216, 0.0
      %v3628 = vmax.f32 %v3218, 0.0
      %v3629 = vmax.f32 %v3421, 0.0
      %v3630 = vmax.f32 %v3423, 0.0
      %v3631 = vmax.f32 %v3622, 0.0
      %3632 = vst [vmem:[#allocation2] sm:$0xff] %v3627
      %3633 = vst [vmem:[#allocation2 + $0x8] sm:$0xff] %v3628
      %3634 = vst [vmem:[#allocation2 + $0x10] sm:$0xff] %v3629
      %3635 = vst [vmem:[#allocation2 + $0x18] sm:$0xff] %v3630
      %3636 = vst [vmem:[#allocation2 + $0x20] sm:$0xff] %v3631
      %p3637 = scmp.eq.s32.totalorder %s23, 0
      // Predicated region
      $region49: #{_forward.1} parent=47 // pred_check
        %p3638 = pneg %p3637
      $region50: #{_forward.1} parent=47 // pred_check_branch
        %3640 = sbr.rel (%p3638) target = $region52
      $region51: #{_forward.1} parent=47 // pred_region
        %v3641 = vld [vmem:[#allocation2] sm:$0xff]
        %v3642 = vld [vmem:[#allocation2 + $0x8] sm:$0xff]
        %v3643 = vld [vmem:[#allocation2 + $0x10] sm:$0xff]
        %v3644 = vld [vmem:[#allocation2 + $0x18] sm:$0xff]
        %v3645 = vld [vmem:[#allocation2 + $0x20] sm:$0xff]
        %v3646 = vpack.c.bf16 %v3641, %v3641
        %v3647 = vpack.c.bf16 %v3642, %v3642
        %v3648 = vpack.c.bf16 %v3643, %v3643
        %v3649 = vpack.c.bf16 %v3644, %v3644
        %v3650 = vpack.c.bf16 %v3645, %v3645
        %v3651 = vld [vmem:[%s392] sm:$0xff]
        %v3652 = vld [vmem:[%s392 + $0x8] sm:$0xf]
        %v3653 = vld [vmem:[%s392 + $0xc] sm:$0xff]
        %v3654 = vld [vmem:[%s392 + $0x14] sm:$0xf]
        %v3655 = vld [vmem:[%s392 + $0x18] sm:$0xff]
        %v3656 = vld [vmem:[%s392 + $0x20] sm:$0xf]
        %v3657 = vld [vmem:[%s392 + $0x24] sm:$0xff]
        %v3658 = vld [vmem:[%s392 + $0x2c] sm:$0xf]
        %v3659 = vld [vmem:[%s392 + $0x30] sm:$0xff]
        %v3660 = vld [vmem:[%s392 + $0x38] sm:$0xf]
        %v3661 = vld [vmem:[%s392 + $0x3c] sm:$0xff]
        %v3662 = vld [vmem:[%s392 + $0x44] sm:$0xf]
        %v3663 = vld [vmem:[%s392 + $0x48] sm:$0xff]
        %v3664 = vld [vmem:[%s392 + $0x50] sm:$0xf]
        %v3665 = vld [vmem:[%s392 + $0x54] sm:$0xff]
        %v3666 = vld [vmem:[%s392 + $0x5c] sm:$0xf]
        %v3667 = vld [vmem:[%s392 + $0x60] sm:$0xff]
        %v3668 = vld [vmem:[%s392 + $0x68] sm:$0xf]
        %v3669 = vld [vmem:[%s392 + $0x6c] sm:$0xff]
        %v3670 = vld [vmem:[%s392 + $0x74] sm:$0xf]
        %v3671 = vld [vmem:[%s392 + $0x78] sm:$0xff]
        %v3672 = vld [vmem:[%s392 + $0x80] sm:$0xf]
        %v3673 = vld [vmem:[%s392 + $0x84] sm:$0xff]
        %v3674 = vld [vmem:[%s392 + $0x8c] sm:$0xf]
        %v3675 = vld [vmem:[%s392 + $0x90] sm:$0xff]
        %v3676 = vld [vmem:[%s392 + $0x98] sm:$0xf]
        %v3677 = vld [vmem:[%s392 + $0x9c] sm:$0xff]
        %v3678 = vld [vmem:[%s392 + $0xa4] sm:$0xf]
        %v3679 = vld [vmem:[%s392 + $0xa8] sm:$0xff]
        %v3680 = vld [vmem:[%s392 + $0xb0] sm:$0xf]
        %v3681 = vld [vmem:[%s392 + $0xb4] sm:$0xff]
        %v3682 = vld [vmem:[%s392 + $0xbc] sm:$0xf]
        %v3683 = vld [vmem:[%s392 + $0xc0] sm:$0xff]
        %v3684 = vld [vmem:[%s392 + $0xc8] sm:$0xf]
        %v3685 = vld [vmem:[%s392 + $0xcc] sm:$0xff]
        %v3686 = vld [vmem:[%s392 + $0xd4] sm:$0xf]
        %v3687 = vld [vmem:[%s392 + $0xd8] sm:$0xff]
        %v3688 = vld [vmem:[%s392 + $0xe0] sm:$0xf]
        %v3689 = vld [vmem:[%s392 + $0xe4] sm:$0xff]
        %v3690 = vld [vmem:[%s392 + $0xec] sm:$0xf]
        %v3691 = vld [vmem:[%s392 + $0xf0] sm:$0xff]
        %v3692 = vld [vmem:[%s392 + $0xf8] sm:$0xf]
        %v3693 = vld [vmem:[%s392 + $0xfc] sm:$0xff]
        %v3694 = vld [vmem:[%s392 + $0x104] sm:$0xf]
        %v3695 = vld [vmem:[%s392 + $0x108] sm:$0xff]
        %v3696 = vld [vmem:[%s392 + $0x110] sm:$0xf]
        %v3697 = vld [vmem:[%s392 + $0x114] sm:$0xff]
        %v3698 = vld [vmem:[%s392 + $0x11c] sm:$0xf]
        %v3699 = vld [vmem:[%s392 + $0x120] sm:$0xff]
        %v3700 = vld [vmem:[%s392 + $0x128] sm:$0xf]
        %v3701 = vld [vmem:[%s392 + $0x12c] sm:$0xff]
        %v3702 = vld [vmem:[%s392 + $0x134] sm:$0xf]
        %v3703 = vld [vmem:[%s392 + $0x138] sm:$0xff]
        %v3704 = vld [vmem:[%s392 + $0x140] sm:$0xf]
        %v3705 = vld [vmem:[%s392 + $0x144] sm:$0xff]
        %v3706 = vld [vmem:[%s392 + $0x14c] sm:$0xf]
        %v3707 = vld [vmem:[%s392 + $0x150] sm:$0xff]
        %v3708 = vld [vmem:[%s392 + $0x158] sm:$0xf]
        %v3709 = vld [vmem:[%s392 + $0x15c] sm:$0xff]
        %v3710 = vld [vmem:[%s392 + $0x164] sm:$0xf]
        %v3711 = vld [vmem:[%s392 + $0x168] sm:$0xff]
        %v3712 = vld [vmem:[%s392 + $0x170] sm:$0xf]
        %v3713 = vld [vmem:[%s392 + $0x174] sm:$0xff]
        %v3714 = vld [vmem:[%s392 + $0x17c] sm:$0xf]
        %v3715 = vld [vmem:[%s392 + $0x180] sm:$0xff]
        %v3716 = vld [vmem:[%s392 + $0x188] sm:$0xf]
        %v3717 = vld [vmem:[%s392 + $0x18c] sm:$0xff]
        %v3718 = vld [vmem:[%s392 + $0x194] sm:$0xf]
        %v3719 = vld [vmem:[%s392 + $0x198] sm:$0xff]
        %v3720 = vld [vmem:[%s392 + $0x1a0] sm:$0xf]
        %v3721 = vld [vmem:[%s392 + $0x1a4] sm:$0xff]
        %v3722 = vld [vmem:[%s392 + $0x1ac] sm:$0xf]
        %v3723 = vld [vmem:[%s392 + $0x1b0] sm:$0xff]
        %v3724 = vld [vmem:[%s392 + $0x1b8] sm:$0xf]
        %v3725 = vld [vmem:[%s392 + $0x1bc] sm:$0xff]
        %v3726 = vld [vmem:[%s392 + $0x1c4] sm:$0xf]
        %v3727 = vld [vmem:[%s392 + $0x1c8] sm:$0xff]
        %v3728 = vld [vmem:[%s392 + $0x1d0] sm:$0xf]
        %v3729 = vld [vmem:[%s392 + $0x1d4] sm:$0xff]
        %v3730 = vld [vmem:[%s392 + $0x1dc] sm:$0xf]
        %v3731 = vld [vmem:[%s392 + $0x1e0] sm:$0xff]
        %v3732 = vld [vmem:[%s392 + $0x1e8] sm:$0xf]
        %v3733 = vld [vmem:[%s392 + $0x1ec] sm:$0xff]
        %v3734 = vld [vmem:[%s392 + $0x1f4] sm:$0xf]
        %v3735 = vld [vmem:[%s392 + $0x1f8] sm:$0xff]
        %v3736 = vld [vmem:[%s392 + $0x200] sm:$0xf]
        %v3737 = vld [vmem:[%s392 + $0x204] sm:$0xff]
        %v3738 = vld [vmem:[%s392 + $0x20c] sm:$0xf]
        %v3739 = vld [vmem:[%s392 + $0x210] sm:$0xff]
        %v3740 = vld [vmem:[%s392 + $0x218] sm:$0xf]
        %v3741 = vld [vmem:[%s392 + $0x21c] sm:$0xff]
        %v3742 = vld [vmem:[%s392 + $0x224] sm:$0xf]
        %v3743 = vld [vmem:[%s392 + $0x228] sm:$0xff]
        %v3744 = vld [vmem:[%s392 + $0x230] sm:$0xf]
        %v3745 = vld [vmem:[%s392 + $0x234] sm:$0xff]
        %v3746 = vld [vmem:[%s392 + $0x23c] sm:$0xf]
        %v3747 = vld [vmem:[%s392 + $0x240] sm:$0xff]
        %v3748 = vld [vmem:[%s392 + $0x248] sm:$0xf]
        %v3749 = vld [vmem:[%s392 + $0x24c] sm:$0xff]
        %v3750 = vld [vmem:[%s392 + $0x254] sm:$0xf]
        %v3751 = vld [vmem:[%s392 + $0x258] sm:$0xff]
        %v3752 = vld [vmem:[%s392 + $0x260] sm:$0xf]
        %v3753 = vld [vmem:[%s392 + $0x264] sm:$0xff]
        %v3754 = vld [vmem:[%s392 + $0x26c] sm:$0xf]
        %v3755 = vld [vmem:[%s392 + $0x270] sm:$0xff]
        %v3756 = vld [vmem:[%s392 + $0x278] sm:$0xf]
        %v3757 = vld [vmem:[%s392 + $0x27c] sm:$0xff]
        %v3758 = vld [vmem:[%s392 + $0x284] sm:$0xf]
        %v3759 = vld [vmem:[%s392 + $0x288] sm:$0xff]
        %v3760 = vld [vmem:[%s392 + $0x290] sm:$0xf]
        %v3761 = vld [vmem:[%s392 + $0x294] sm:$0xff]
        %v3762 = vld [vmem:[%s392 + $0x29c] sm:$0xf]
        %v3763 = vld [vmem:[%s392 + $0x2a0] sm:$0xff]
        %v3764 = vld [vmem:[%s392 + $0x2a8] sm:$0xf]
        %v3765 = vld [vmem:[%s392 + $0x2ac] sm:$0xff]
        %v3766 = vld [vmem:[%s392 + $0x2b4] sm:$0xf]
        %v3767 = vld [vmem:[%s392 + $0x2b8] sm:$0xff]
        %v3768 = vld [vmem:[%s392 + $0x2c0] sm:$0xf]
        %v3769 = vld [vmem:[%s392 + $0x2c4] sm:$0xff]
        %v3770 = vld [vmem:[%s392 + $0x2cc] sm:$0xf]
        %v3771 = vld [vmem:[%s392 + $0x2d0] sm:$0xff]
        %v3772 = vld [vmem:[%s392 + $0x2d8] sm:$0xf]
        %v3773 = vld [vmem:[%s392 + $0x2dc] sm:$0xff]
        %v3774 = vld [vmem:[%s392 + $0x2e4] sm:$0xf]
        %v3775 = vld [vmem:[%s392 + $0x2e8] sm:$0xff]
        %v3776 = vld [vmem:[%s392 + $0x2f0] sm:$0xf]
        %v3777 = vld [vmem:[%s392 + $0x2f4] sm:$0xff]
        %v3778 = vld [vmem:[%s392 + $0x2fc] sm:$0xf]
        %v3779 = vld [vmem:[%s392 + $0x300] sm:$0xff]
        %v3780 = vld [vmem:[%s392 + $0x308] sm:$0xf]
        %v3781 = vld [vmem:[%s392 + $0x30c] sm:$0xff]
        %v3782 = vld [vmem:[%s392 + $0x314] sm:$0xf]
        %v3783 = vld [vmem:[%s392 + $0x318] sm:$0xff]
        %v3784 = vld [vmem:[%s392 + $0x320] sm:$0xf]
        %v3785 = vld [vmem:[%s392 + $0x324] sm:$0xff]
        %v3786 = vld [vmem:[%s392 + $0x32c] sm:$0xf]
        %v3787 = vld [vmem:[%s392 + $0x330] sm:$0xff]
        %v3788 = vld [vmem:[%s392 + $0x338] sm:$0xf]
        %v3789 = vld [vmem:[%s392 + $0x33c] sm:$0xff]
        %v3790 = vld [vmem:[%s392 + $0x344] sm:$0xf]
        %v3791 = vld [vmem:[%s392 + $0x348] sm:$0xff]
        %v3792 = vld [vmem:[%s392 + $0x350] sm:$0xf]
        %v3793 = vld [vmem:[%s392 + $0x354] sm:$0xff]
        %v3794 = vld [vmem:[%s392 + $0x35c] sm:$0xf]
        %v3795 = vld [vmem:[%s392 + $0x360] sm:$0xff]
        %v3796 = vld [vmem:[%s392 + $0x368] sm:$0xf]
        %v3797 = vld [vmem:[%s392 + $0x36c] sm:$0xff]
        %v3798 = vld [vmem:[%s392 + $0x374] sm:$0xf]
        %v3799 = vld [vmem:[%s392 + $0x378] sm:$0xff]
        %v3800 = vld [vmem:[%s392 + $0x380] sm:$0xf]
        %v3801 = vld [vmem:[%s392 + $0x384] sm:$0xff]
        %v3802 = vld [vmem:[%s392 + $0x38c] sm:$0xf]
        %v3803 = vld [vmem:[%s392 + $0x390] sm:$0xff]
        %v3804 = vld [vmem:[%s392 + $0x398] sm:$0xf]
        %v3805 = vld [vmem:[%s392 + $0x39c] sm:$0xff]
        %v3806 = vld [vmem:[%s392 + $0x3a4] sm:$0xf]
        %v3807 = vld [vmem:[%s392 + $0x3a8] sm:$0xff]
        %v3808 = vld [vmem:[%s392 + $0x3b0] sm:$0xf]
        %v3809 = vld [vmem:[%s392 + $0x3b4] sm:$0xff]
        %v3810 = vld [vmem:[%s392 + $0x3bc] sm:$0xf]
        %v3811 = vld [vmem:[%s396] sm:$0x7]
        %v3813 = vlaneseq
        %v3814 = vshrl.u32 %v3813, 7
        %v3815 = vsub.s32 0, %v3814
        %v3816 = vrot.slane %v3811, %v3815
        %v3817 = vlaneseq
        %v3818 = vshrl.u32 %v3817, 7
        %v3819 = vsub.s32 1, %v3818
        %v3820 = vrot.slane %v3811, %v3819
        %v3821 = vlaneseq
        %v3822 = vshrl.u32 %v3821, 7
        %v3823 = vsub.s32 2, %v3822
        %v3824 = vrot.slane %v3811, %v3823
        %v3988 = vunpack.c.l.b16 %v3651
        %v3989 = vunpack.c.h.b16 %v3651
        %v3990 = vunpack.c.l.b16 %v3652
        %v3991 = vunpack.c.l.b16 %v3653
        %v3992 = vunpack.c.h.b16 %v3653
        %v3993 = vunpack.c.l.b16 %v3654
        %v3994 = vunpack.c.l.b16 %v3655
        %v3995 = vunpack.c.h.b16 %v3655
        %v3996 = vunpack.c.l.b16 %v3656
        %v3997 = vunpack.c.l.b16 %v3657
        %v3998 = vunpack.c.h.b16 %v3657
        %v3999 = vunpack.c.l.b16 %v3658
        %v4000 = vunpack.c.l.b16 %v3659
        %v4001 = vunpack.c.h.b16 %v3659
        %v4002 = vunpack.c.l.b16 %v3660
        %v4003 = vunpack.c.l.b16 %v3661
        %v4004 = vunpack.c.h.b16 %v3661
        %v4005 = vunpack.c.l.b16 %v3662
        %v4006 = vunpack.c.l.b16 %v3663
        %v4007 = vunpack.c.h.b16 %v3663
        %v4008 = vunpack.c.l.b16 %v3664
        %v4009 = vunpack.c.l.b16 %v3665
        %v4010 = vunpack.c.h.b16 %v3665
        %v4011 = vunpack.c.l.b16 %v3666
        %v4012 = vunpack.c.l.b16 %v3667
        %v4013 = vunpack.c.h.b16 %v3667
        %v4014 = vunpack.c.l.b16 %v3668
        %v4015 = vunpack.c.l.b16 %v3669
        %v4016 = vunpack.c.h.b16 %v3669
        %v4017 = vunpack.c.l.b16 %v3670
        %v4018 = vunpack.c.l.b16 %v3671
        %v4019 = vunpack.c.h.b16 %v3671
        %v4020 = vunpack.c.l.b16 %v3672
        %v4021 = vunpack.c.l.b16 %v3673
        %v4022 = vunpack.c.h.b16 %v3673
        %v4023 = vunpack.c.l.b16 %v3674
        %v4024 = vunpack.c.l.b16 %v3675
        %v4025 = vunpack.c.h.b16 %v3675
        %v4026 = vunpack.c.l.b16 %v3676
        %v4027 = vunpack.c.l.b16 %v3677
        %v4028 = vunpack.c.h.b16 %v3677
        %v4029 = vunpack.c.l.b16 %v3678
        %v4030 = vunpack.c.l.b16 %v3679
        %v4031 = vunpack.c.h.b16 %v3679
        %v4032 = vunpack.c.l.b16 %v3680
        %v4033 = vunpack.c.l.b16 %v3681
        %v4034 = vunpack.c.h.b16 %v3681
        %v4035 = vunpack.c.l.b16 %v3682
        %v4036 = vunpack.c.l.b16 %v3683
        %v4037 = vunpack.c.h.b16 %v3683
        %v4038 = vunpack.c.l.b16 %v3684
        %v4039 = vunpack.c.l.b16 %v3685
        %v4040 = vunpack.c.h.b16 %v3685
        %v4041 = vunpack.c.l.b16 %v3686
        %v4042 = vunpack.c.l.b16 %v3687
        %v4043 = vunpack.c.h.b16 %v3687
        %v4044 = vunpack.c.l.b16 %v3688
        %v4045 = vunpack.c.l.b16 %v3689
        %v4046 = vunpack.c.h.b16 %v3689
        %v4047 = vunpack.c.l.b16 %v3690
        %v4048 = vunpack.c.l.b16 %v3691
        %v4049 = vunpack.c.h.b16 %v3691
        %v4050 = vunpack.c.l.b16 %v3692
        %v4051 = vunpack.c.l.b16 %v3693
        %v4052 = vunpack.c.h.b16 %v3693
        %v4053 = vunpack.c.l.b16 %v3694
        %v4054 = vunpack.c.l.b16 %v3695
        %v4055 = vunpack.c.h.b16 %v3695
        %v4056 = vunpack.c.l.b16 %v3696
        %v4057 = vunpack.c.l.b16 %v3697
        %v4058 = vunpack.c.h.b16 %v3697
        %v4059 = vunpack.c.l.b16 %v3698
        %v4060 = vunpack.c.l.b16 %v3699
        %v4061 = vunpack.c.h.b16 %v3699
        %v4062 = vunpack.c.l.b16 %v3700
        %v4063 = vunpack.c.l.b16 %v3701
        %v4064 = vunpack.c.h.b16 %v3701
        %v4065 = vunpack.c.l.b16 %v3702
        %v4066 = vunpack.c.l.b16 %v3703
        %v4067 = vunpack.c.h.b16 %v3703
        %v4068 = vunpack.c.l.b16 %v3704
        %v4069 = vunpack.c.l.b16 %v3705
        %v4070 = vunpack.c.h.b16 %v3705
        %v4071 = vunpack.c.l.b16 %v3706
        %v4072 = vunpack.c.l.b16 %v3707
        %v4073 = vunpack.c.h.b16 %v3707
        %v4074 = vunpack.c.l.b16 %v3708
        %v4075 = vunpack.c.l.b16 %v3709
        %v4076 = vunpack.c.h.b16 %v3709
        %v4077 = vunpack.c.l.b16 %v3710
        %v4078 = vunpack.c.l.b16 %v3711
        %v4079 = vunpack.c.h.b16 %v3711
        %v4080 = vunpack.c.l.b16 %v3712
        %v4081 = vunpack.c.l.b16 %v3713
        %v4082 = vunpack.c.h.b16 %v3713
        %v4083 = vunpack.c.l.b16 %v3714
        %v4084 = vunpack.c.l.b16 %v3715
        %v4085 = vunpack.c.h.b16 %v3715
        %v4086 = vunpack.c.l.b16 %v3716
        %v4087 = vunpack.c.l.b16 %v3717
        %v4088 = vunpack.c.h.b16 %v3717
        %v4089 = vunpack.c.l.b16 %v3718
        %v4090 = vunpack.c.l.b16 %v3719
        %v4091 = vunpack.c.h.b16 %v3719
        %v4092 = vunpack.c.l.b16 %v3720
        %v4093 = vunpack.c.l.b16 %v3721
        %v4094 = vunpack.c.h.b16 %v3721
        %v4095 = vunpack.c.l.b16 %v3722
        %v4096 = vunpack.c.l.b16 %v3723
        %v4097 = vunpack.c.h.b16 %v3723
        %v4098 = vunpack.c.l.b16 %v3724
        %v4099 = vunpack.c.l.b16 %v3725
        %v4100 = vunpack.c.h.b16 %v3725
        %v4101 = vunpack.c.l.b16 %v3726
        %v4102 = vunpack.c.l.b16 %v3727
        %v4103 = vunpack.c.h.b16 %v3727
        %v4104 = vunpack.c.l.b16 %v3728
        %v4105 = vunpack.c.l.b16 %v3729
        %v4106 = vunpack.c.h.b16 %v3729
        %v4107 = vunpack.c.l.b16 %v3730
        %v4108 = vunpack.c.l.b16 %v3731
        %v4109 = vunpack.c.h.b16 %v3731
        %v4110 = vunpack.c.l.b16 %v3732
        %v4111 = vunpack.c.l.b16 %v3733
        %v4112 = vunpack.c.h.b16 %v3733
        %v4113 = vunpack.c.l.b16 %v3734
        %v4114 = vunpack.c.l.b16 %v3735
        %v4115 = vunpack.c.h.b16 %v3735
        %v4116 = vunpack.c.l.b16 %v3736
        %v4117 = vunpack.c.l.b16 %v3737
        %v4118 = vunpack.c.h.b16 %v3737
        %v4119 = vunpack.c.l.b16 %v3738
        %v4120 = vunpack.c.l.b16 %v3739
        %v4121 = vunpack.c.h.b16 %v3739
        %v4122 = vunpack.c.l.b16 %v3740
        %v4123 = vunpack.c.l.b16 %v3741
        %v4124 = vunpack.c.h.b16 %v3741
        %v4125 = vunpack.c.l.b16 %v3742
        %v4126 = vunpack.c.l.b16 %v3743
        %v4127 = vunpack.c.h.b16 %v3743
        %v4128 = vunpack.c.l.b16 %v3744
        %v4129 = vunpack.c.l.b16 %v3745
        %v4130 = vunpack.c.h.b16 %v3745
        %v4131 = vunpack.c.l.b16 %v3746
        %v4132 = vunpack.c.l.b16 %v3747
        %v4133 = vunpack.c.h.b16 %v3747
        %v4134 = vunpack.c.l.b16 %v3748
        %v4135 = vunpack.c.l.b16 %v3749
        %v4136 = vunpack.c.h.b16 %v3749
        %v4137 = vunpack.c.l.b16 %v3750
        %v4138 = vunpack.c.l.b16 %v3751
        %v4139 = vunpack.c.h.b16 %v3751
        %v4140 = vunpack.c.l.b16 %v3752
        %v4141 = vunpack.c.l.b16 %v3753
        %v4142 = vunpack.c.h.b16 %v3753
        %v4143 = vunpack.c.l.b16 %v3754
        %v4144 = vunpack.c.l.b16 %v3755
        %v4145 = vunpack.c.h.b16 %v3755
        %v4146 = vunpack.c.l.b16 %v3756
        %v4147 = vunpack.c.l.b16 %v3757
        %v4148 = vunpack.c.h.b16 %v3757
        %v4149 = vunpack.c.l.b16 %v3758
        %v4150 = vunpack.c.l.b16 %v3759
        %v4151 = vunpack.c.h.b16 %v3759
        %v4152 = vunpack.c.l.b16 %v3760
        %v4153 = vunpack.c.l.b16 %v3761
        %v4154 = vunpack.c.h.b16 %v3761
        %v4155 = vunpack.c.l.b16 %v3762
        %v4156 = vunpack.c.l.b16 %v3763
        %v4157 = vunpack.c.h.b16 %v3763
        %v4158 = vunpack.c.l.b16 %v3764
        %v4159 = vunpack.c.l.b16 %v3765
        %v4160 = vunpack.c.h.b16 %v3765
        %v4161 = vunpack.c.l.b16 %v3766
        %v4162 = vunpack.c.l.b16 %v3767
        %v4163 = vunpack.c.h.b16 %v3767
        %v4164 = vunpack.c.l.b16 %v3768
        %v4165 = vunpack.c.l.b16 %v3769
        %v4166 = vunpack.c.h.b16 %v3769
        %v4167 = vunpack.c.l.b16 %v3770
        %v4168 = vunpack.c.l.b16 %v3771
        %v4169 = vunpack.c.h.b16 %v3771
        %v4170 = vunpack.c.l.b16 %v3772
        %v4171 = vunpack.c.l.b16 %v3773
        %v4172 = vunpack.c.h.b16 %v3773
        %v4173 = vunpack.c.l.b16 %v3774
        %v4174 = vunpack.c.l.b16 %v3775
        %v4175 = vunpack.c.h.b16 %v3775
        %v4176 = vunpack.c.l.b16 %v3776
        %v4177 = vunpack.c.l.b16 %v3777
        %v4178 = vunpack.c.h.b16 %v3777
        %v4179 = vunpack.c.l.b16 %v3778
        %v4180 = vunpack.c.l.b16 %v3779
        %v4181 = vunpack.c.h.b16 %v3779
        %v4182 = vunpack.c.l.b16 %v3780
        %v4183 = vunpack.c.l.b16 %v3781
        %v4184 = vunpack.c.h.b16 %v3781
        %v4185 = vunpack.c.l.b16 %v3782
        %v4186 = vunpack.c.l.b16 %v3783
        %v4187 = vunpack.c.h.b16 %v3783
        %v4188 = vunpack.c.l.b16 %v3784
        %v4189 = vunpack.c.l.b16 %v3785
        %v4190 = vunpack.c.h.b16 %v3785
        %v4191 = vunpack.c.l.b16 %v3786
        %v4192 = vunpack.c.l.b16 %v3787
        %v4193 = vunpack.c.h.b16 %v3787
        %v4194 = vunpack.c.l.b16 %v3788
        %v4195 = vunpack.c.l.b16 %v3789
        %v4196 = vunpack.c.h.b16 %v3789
        %v4197 = vunpack.c.l.b16 %v3790
        %v4198 = vunpack.c.l.b16 %v3791
        %v4199 = vunpack.c.h.b16 %v3791
        %v4200 = vunpack.c.l.b16 %v3792
        %v4201 = vunpack.c.l.b16 %v3793
        %v4202 = vunpack.c.h.b16 %v3793
        %v4203 = vunpack.c.l.b16 %v3794
        %v4204 = vunpack.c.l.b16 %v3795
        %v4205 = vunpack.c.h.b16 %v3795
        %v4206 = vunpack.c.l.b16 %v3796
        %v4207 = vunpack.c.l.b16 %v3797
        %v4208 = vunpack.c.h.b16 %v3797
        %v4209 = vunpack.c.l.b16 %v3798
        %v4210 = vunpack.c.l.b16 %v3799
        %v4211 = vunpack.c.h.b16 %v3799
        %v4212 = vunpack.c.l.b16 %v3800
        %v4213 = vunpack.c.l.b16 %v3801
        %v4214 = vunpack.c.h.b16 %v3801
        %v4215 = vunpack.c.l.b16 %v3802
        %v4216 = vunpack.c.l.b16 %v3803
        %v4217 = vunpack.c.h.b16 %v3803
        %v4218 = vunpack.c.l.b16 %v3804
        %v4219 = vunpack.c.l.b16 %v3805
        %v4220 = vunpack.c.h.b16 %v3805
        %v4221 = vunpack.c.l.b16 %v3806
        %v4222 = vunpack.c.l.b16 %v3807
        %v4223 = vunpack.c.h.b16 %v3807
        %v4224 = vunpack.c.l.b16 %v3808
        %v4225 = vunpack.c.l.b16 %v3809
        %v4226 = vunpack.c.h.b16 %v3809
        %v4227 = vunpack.c.l.b16 %v3810
        %v4228 = vpack.c.b16 %v3991, %v3988
        %v4229 = vpack.c.b16 %v3992, %v3989
        %v4230 = vpack.c.b16 %v3993, %v3990
        %v4231 = vpack.c.b16 %v3997, %v3994
        %v4232 = vpack.c.b16 %v3998, %v3995
        %v4233 = vpack.c.b16 %v3999, %v3996
        %v4234 = vpack.c.b16 %v4003, %v4000
        %v4235 = vpack.c.b16 %v4004, %v4001
        %v4236 = vpack.c.b16 %v4005, %v4002
        %v4237 = vpack.c.b16 %v4009, %v4006
        %v4238 = vpack.c.b16 %v4010, %v4007
        %v4239 = vpack.c.b16 %v4011, %v4008
        %v4240 = vpack.c.b16 %v4015, %v4012
        %v4241 = vpack.c.b16 %v4016, %v4013
        %v4242 = vpack.c.b16 %v4017, %v4014
        %v4243 = vpack.c.b16 %v4021, %v4018
        %v4244 = vpack.c.b16 %v4022, %v4019
        %v4245 = vpack.c.b16 %v4023, %v4020
        %v4246 = vpack.c.b16 %v4027, %v4024
        %v4247 = vpack.c.b16 %v4028, %v4025
        %v4248 = vpack.c.b16 %v4029, %v4026
        %v4249 = vpack.c.b16 %v4033, %v4030
        %v4250 = vpack.c.b16 %v4034, %v4031
        %v4251 = vpack.c.b16 %v4035, %v4032
        %v4252 = vpack.c.b16 %v4039, %v4036
        %v4253 = vpack.c.b16 %v4040, %v4037
        %v4254 = vpack.c.b16 %v4041, %v4038
        %v4255 = vpack.c.b16 %v4045, %v4042
        %v4256 = vpack.c.b16 %v4046, %v4043
        %v4257 = vpack.c.b16 %v4047, %v4044
        %v4258 = vpack.c.b16 %v4051, %v4048
        %v4259 = vpack.c.b16 %v4052, %v4049
        %v4260 = vpack.c.b16 %v4053, %v4050
        %v4261 = vpack.c.b16 %v4057, %v4054
        %v4262 = vpack.c.b16 %v4058, %v4055
        %v4263 = vpack.c.b16 %v4059, %v4056
        %v4264 = vpack.c.b16 %v4063, %v4060
        %v4265 = vpack.c.b16 %v4064, %v4061
        %v4266 = vpack.c.b16 %v4065, %v4062
        %v4267 = vpack.c.b16 %v4069, %v4066
        %v4268 = vpack.c.b16 %v4070, %v4067
        %v4269 = vpack.c.b16 %v4071, %v4068
        %v4270 = vpack.c.b16 %v4075, %v4072
        %v4271 = vpack.c.b16 %v4076, %v4073
        %v4272 = vpack.c.b16 %v4077, %v4074
        %v4273 = vpack.c.b16 %v4081, %v4078
        %v4274 = vpack.c.b16 %v4082, %v4079
        %v4275 = vpack.c.b16 %v4083, %v4080
        %v4276 = vpack.c.b16 %v4087, %v4084
        %v4277 = vpack.c.b16 %v4088, %v4085
        %v4278 = vpack.c.b16 %v4089, %v4086
        %v4279 = vpack.c.b16 %v4093, %v4090
        %v4280 = vpack.c.b16 %v4094, %v4091
        %v4281 = vpack.c.b16 %v4095, %v4092
        %v4282 = vpack.c.b16 %v4099, %v4096
        %v4283 = vpack.c.b16 %v4100, %v4097
        %v4284 = vpack.c.b16 %v4101, %v4098
        %v4285 = vpack.c.b16 %v4105, %v4102
        %v4286 = vpack.c.b16 %v4106, %v4103
        %v4287 = vpack.c.b16 %v4107, %v4104
        %v4288 = vpack.c.b16 %v4111, %v4108
        %v4289 = vpack.c.b16 %v4112, %v4109
        %v4290 = vpack.c.b16 %v4113, %v4110
        %v4291 = vpack.c.b16 %v4117, %v4114
        %v4292 = vpack.c.b16 %v4118, %v4115
        %v4293 = vpack.c.b16 %v4119, %v4116
        %v4294 = vpack.c.b16 %v4123, %v4120
        %v4295 = vpack.c.b16 %v4124, %v4121
        %v4296 = vpack.c.b16 %v4125, %v4122
        %v4297 = vpack.c.b16 %v4129, %v4126
        %v4298 = vpack.c.b16 %v4130, %v4127
        %v4299 = vpack.c.b16 %v4131, %v4128
        %v4300 = vpack.c.b16 %v4135, %v4132
        %v4301 = vpack.c.b16 %v4136, %v4133
        %v4302 = vpack.c.b16 %v4137, %v4134
        %v4303 = vpack.c.b16 %v4141, %v4138
        %v4304 = vpack.c.b16 %v4142, %v4139
        %v4305 = vpack.c.b16 %v4143, %v4140
        %v4306 = vpack.c.b16 %v4147, %v4144
        %v4307 = vpack.c.b16 %v4148, %v4145
        %v4308 = vpack.c.b16 %v4149, %v4146
        %v4309 = vpack.c.b16 %v4153, %v4150
        %v4310 = vpack.c.b16 %v4154, %v4151
        %v4311 = vpack.c.b16 %v4155, %v4152
        %v4312 = vpack.c.b16 %v4159, %v4156
        %v4313 = vpack.c.b16 %v4160, %v4157
        %v4314 = vpack.c.b16 %v4161, %v4158
        %v4315 = vpack.c.b16 %v4165, %v4162
        %v4316 = vpack.c.b16 %v4166, %v4163
        %v4317 = vpack.c.b16 %v4167, %v4164
        %v4318 = vpack.c.b16 %v4171, %v4168
        %v4319 = vpack.c.b16 %v4172, %v4169
        %v4320 = vpack.c.b16 %v4173, %v4170
        %v4321 = vpack.c.b16 %v4177, %v4174
        %v4322 = vpack.c.b16 %v4178, %v4175
        %v4323 = vpack.c.b16 %v4179, %v4176
        %v4324 = vpack.c.b16 %v4183, %v4180
        %v4325 = vpack.c.b16 %v4184, %v4181
        %v4326 = vpack.c.b16 %v4185, %v4182
        %v4327 = vpack.c.b16 %v4189, %v4186
        %v4328 = vpack.c.b16 %v4190, %v4187
        %v4329 = vpack.c.b16 %v4191, %v4188
        %v4330 = vpack.c.b16 %v4195, %v4192
        %v4331 = vpack.c.b16 %v4196, %v4193
        %v4332 = vpack.c.b16 %v4197, %v4194
        %v4333 = vpack.c.b16 %v4201, %v4198
        %v4334 = vpack.c.b16 %v4202, %v4199
        %v4335 = vpack.c.b16 %v4203, %v4200
        %v4336 = vpack.c.b16 %v4207, %v4204
        %v4337 = vpack.c.b16 %v4208, %v4205
        %v4338 = vpack.c.b16 %v4209, %v4206
        %v4339 = vpack.c.b16 %v4213, %v4210
        %v4340 = vpack.c.b16 %v4214, %v4211
        %v4341 = vpack.c.b16 %v4215, %v4212
        %v4342 = vpack.c.b16 %v4219, %v4216
        %v4343 = vpack.c.b16 %v4220, %v4217
        %v4344 = vpack.c.b16 %v4221, %v4218
        %v4345 = vpack.c.b16 %v4225, %v4222
        %v4346 = vpack.c.b16 %v4226, %v4223
        %v4347 = vpack.c.b16 %v4227, %v4224
        %4468 = vmatprep.subr.bf16.mxu0 %v4229
        %4469 = vmatpush1.bf16.msra.mxu0 %v4228
        %4470 = vmatprep.subr.bf16.mxu0 %v4232
        %4471 = vmatpush1.bf16.msra.mxu0 %v4231
        %4472 = vmatprep.subr.bf16.mxu0 %v4235
        %4473 = vmatpush1.bf16.msra.mxu0 %v4234
        %4474 = vmatprep.subr.bf16.mxu0 %v4238
        %4475 = vmatpush1.bf16.msra.mxu0 %v4237
        %4476 = vmatprep.subr.bf16.mxu0 %v4241
        %4477 = vmatpush1.bf16.msra.mxu0 %v4240
        %4478 = vmatprep.subr.bf16.mxu0 %v4244
        %4479 = vmatpush1.bf16.msra.mxu0 %v4243
        %4480 = vmatprep.subr.bf16.mxu0 %v4247
        %4481 = vmatpush1.bf16.msra.mxu0 %v4246
        %4482 = vmatprep.subr.bf16.mxu0 %v4250
        %4483 = vmatpush1.bf16.msra.mxu0 %v4249
        %4484 = vmatprep.subr.bf16.mxu0 %v4253
        %4485 = vmatpush1.bf16.msra.mxu0 %v4252
        %4486 = vmatprep.subr.bf16.mxu0 %v4256
        %4487 = vmatpush1.bf16.msra.mxu0 %v4255
        %4488 = vmatprep.subr.bf16.mxu0 %v4259
        %4489 = vmatpush1.bf16.msra.mxu0 %v4258
        %4490 = vmatprep.subr.bf16.mxu0 %v4262
        %4491 = vmatpush1.bf16.msra.mxu0 %v4261
        %4492 = vmatprep.subr.bf16.mxu0 %v4265
        %4493 = vmatpush1.bf16.msra.mxu0 %v4264
        %4494 = vmatprep.subr.bf16.mxu0 %v4268
        %4495 = vmatpush1.bf16.msra.mxu0 %v4267
        %4496 = vmatprep.subr.bf16.mxu0 %v4271
        %4497 = vmatpush1.bf16.msra.mxu0 %v4270
        %4498 = vmatprep.subr.bf16.mxu0 %v4274
        %4499 = vmatpush1.bf16.msra.mxu0 %v4273
        %4500 = vmatprep.mubr.bf16.mxu0 %v3647
        %4501 = vmatmul.mubr.bf16.gmra.mrb[0].mxu0 %v3646
        %v4502 = vpop.f32.mrb[0].mxu0
        %v4503 = vadd.f32 %v3816, %v4502
        %v4504 = vpop.f32.mrb[0].mxu0
        %v4505 = vadd.f32 %v3820, %v4504
        %v4506 = vpop.f32.mrb[0].mxu0
        %v4507 = vpop.f32.mrb[0].mxu0
        %4508 = vdwg.mxu0
        %4509 = vmatprep.subr.bf16.mxu0 %v4277
        %4510 = vmatpush1.bf16.msra.mxu0 %v4276
        %4511 = vmatprep.subr.bf16.mxu0 %v4280
        %4512 = vmatpush1.bf16.msra.mxu0 %v4279
        %4513 = vmatprep.subr.bf16.mxu0 %v4283
        %4514 = vmatpush1.bf16.msra.mxu0 %v4282
        %4515 = vmatprep.subr.bf16.mxu0 %v4286
        %4516 = vmatpush1.bf16.msra.mxu0 %v4285
        %4517 = vmatprep.subr.bf16.mxu0 %v4289
        %4518 = vmatpush1.bf16.msra.mxu0 %v4288
        %4519 = vmatprep.subr.bf16.mxu0 %v4292
        %4520 = vmatpush1.bf16.msra.mxu0 %v4291
        %4521 = vmatprep.subr.bf16.mxu0 %v4295
        %4522 = vmatpush1.bf16.msra.mxu0 %v4294
        %4523 = vmatprep.subr.bf16.mxu0 %v4298
        %4524 = vmatpush1.bf16.msra.mxu0 %v4297
        %4525 = vmatprep.subr.bf16.mxu0 %v4301
        %4526 = vmatpush1.bf16.msra.mxu0 %v4300
        %4527 = vmatprep.subr.bf16.mxu0 %v4304
        %4528 = vmatpush1.bf16.msra.mxu0 %v4303
        %4529 = vmatprep.subr.bf16.mxu0 %v4307
        %4530 = vmatpush1.bf16.msra.mxu0 %v4306
        %4531 = vmatprep.subr.bf16.mxu0 %v4310
        %4532 = vmatpush1.bf16.msra.mxu0 %v4309
        %4533 = vmatprep.subr.bf16.mxu0 %v4313
        %4534 = vmatpush1.bf16.msra.mxu0 %v4312
        %4535 = vmatprep.subr.bf16.mxu0 %v4316
        %4536 = vmatpush1.bf16.msra.mxu0 %v4315
        %4537 = vmatprep.subr.bf16.mxu0 %v4319
        %4538 = vmatpush1.bf16.msra.mxu0 %v4318
        %4539 = vmatprep.subr.bf16.mxu0 %v4322
        %4540 = vmatpush1.bf16.msra.mxu0 %v4321
        %4541 = vmatprep.mubr.bf16.mxu0 %v3649
        %4542 = vmatmul.mubr.bf16.gmra.mrb[0].mxu0 %v3648
        %v4543 = vpop.f32.mrb[0].mxu0
        %v4544 = vadd.f32 %v4503, %v4543
        %v4545 = vpop.f32.mrb[0].mxu0
        %v4546 = vadd.f32 %v4505, %v4545
        %v4547 = vpop.f32.mrb[0].mxu0
        %v4548 = vpop.f32.mrb[0].mxu0
        %4549 = vdwg.mxu0
        %4550 = vmatprep.subr.bf16.mxu0 %v4325
        %4551 = vmatpush1.bf16.msra.mxu0 %v4324
        %4552 = vmatprep.subr.bf16.mxu0 %v4328
        %4553 = vmatpush1.bf16.msra.mxu0 %v4327
        %4554 = vmatprep.subr.bf16.mxu0 %v4331
        %4555 = vmatpush1.bf16.msra.mxu0 %v4330
        %4556 = vmatprep.subr.bf16.mxu0 %v4334
        %4557 = vmatpush1.bf16.msra.mxu0 %v4333
        %4558 = vmatprep.subr.bf16.mxu0 %v4337
        %4559 = vmatpush1.bf16.msra.mxu0 %v4336
        %4560 = vmatprep.subr.bf16.mxu0 %v4340
        %4561 = vmatpush1.bf16.msra.mxu0 %v4339
        %4562 = vmatprep.subr.bf16.mxu0 %v4343
        %4563 = vmatpush1.bf16.msra.mxu0 %v4342
        %4564 = vmatprep.subr.bf16.mxu0 %v4346
        %4565 = vmatpush1.bf16.msra.mxu0 %v4345
        %4566 = vmatprep.subr.bf16.mxu0 0
        %4567 = vmatpush1.bf16.msra.mxu0 0
        %4568 = vmatprep.subr.bf16.mxu0 0
        %4569 = vmatpush1.bf16.msra.mxu0 0
        %4570 = vmatprep.subr.bf16.mxu0 0
        %4571 = vmatpush1.bf16.msra.mxu0 0
        %4572 = vmatprep.subr.bf16.mxu0 0
        %4573 = vmatpush1.bf16.msra.mxu0 0
        %4574 = vmatprep.subr.bf16.mxu0 0
        %4575 = vmatpush1.bf16.msra.mxu0 0
        %4576 = vmatprep.subr.bf16.mxu0 0
        %4577 = vmatpush1.bf16.msra.mxu0 0
        %4578 = vmatprep.subr.bf16.mxu0 0
        %4579 = vmatpush1.bf16.msra.mxu0 0
        %4580 = vmatprep.subr.bf16.mxu0 0
        %4581 = vmatpush1.bf16.msra.mxu0 0
        %4582 = vmatprep.mubr.bf16.mxu0 0
        %4583 = vmatmul.mubr.bf16.gmra.mrb[0].mxu0 %v3650
        %v4584 = vpop.f32.mrb[0].mxu0
        %v4585 = vadd.f32 %v4544, %v4584
        %v4586 = vpop.f32.mrb[0].mxu0
        %v4587 = vadd.f32 %v4546, %v4586
        %v4588 = vpop.f32.mrb[0].mxu0
        %v4589 = vpop.f32.mrb[0].mxu0
        %4590 = vdwg.mxu0
        %4591 = vmatprep.subr.bf16.mxu0 0
        %4592 = vmatpush1.bf16.msra.mxu0 %v4230
        %4593 = vmatprep.subr.bf16.mxu0 0
        %4594 = vmatpush1.bf16.msra.mxu0 %v4233
        %4595 = vmatprep.subr.bf16.mxu0 0
        %4596 = vmatpush1.bf16.msra.mxu0 %v4236
        %4597 = vmatprep.subr.bf16.mxu0 0
        %4598 = vmatpush1.bf16.msra.mxu0 %v4239
        %4599 = vmatprep.subr.bf16.mxu0 0
        %4600 = vmatpush1.bf16.msra.mxu0 %v4242
        %4601 = vmatprep.subr.bf16.mxu0 0
        %4602 = vmatpush1.bf16.msra.mxu0 %v4245
        %4603 = vmatprep.subr.bf16.mxu0 0
        %4604 = vmatpush1.bf16.msra.mxu0 %v4248
        %4605 = vmatprep.subr.bf16.mxu0 0
        %4606 = vmatpush1.bf16.msra.mxu0 %v4251
        %4607 = vmatprep.subr.bf16.mxu0 0
        %4608 = vmatpush1.bf16.msra.mxu0 %v4254
        %4609 = vmatprep.subr.bf16.mxu0 0
        %4610 = vmatpush1.bf16.msra.mxu0 %v4257
        %4611 = vmatprep.subr.bf16.mxu0 0
        %4612 = vmatpush1.bf16.msra.mxu0 %v4260
        %4613 = vmatprep.subr.bf16.mxu0 0
        %4614 = vmatpush1.bf16.msra.mxu0 %v4263
        %4615 = vmatprep.subr.bf16.mxu0 0
        %4616 = vmatpush1.bf16.msra.mxu0 %v4266
        %4617 = vmatprep.subr.bf16.mxu0 0
        %4618 = vmatpush1.bf16.msra.mxu0 %v4269
        %4619 = vmatprep.subr.bf16.mxu0 0
        %4620 = vmatpush1.bf16.msra.mxu0 %v4272
        %4621 = vmatprep.subr.bf16.mxu0 0
        %4622 = vmatpush1.bf16.msra.mxu0 %v4275
        %4623 = vmatprep.mubr.bf16.mxu0 %v3647
        %4624 = vmatmul.mubr.bf16.gmra.mrb[0].mxu0 %v3646
        %v4625 = vpop.f32.mrb[0].mxu0
        %v4626 = vadd.f32 %v3824, %v4625
        %v4627 = vpop.f32.mrb[0].mxu0
        %v4628 = vpop.f32.mrb[0].mxu0
        %v4629 = vpop.f32.mrb[0].mxu0
        %4630 = vdwg.mxu0
        %4631 = vmatprep.subr.bf16.mxu0 0
        %4632 = vmatpush1.bf16.msra.mxu0 %v4278
        %4633 = vmatprep.subr.bf16.mxu0 0
        %4634 = vmatpush1.bf16.msra.mxu0 %v4281
        %4635 = vmatprep.subr.bf16.mxu0 0
        %4636 = vmatpush1.bf16.msra.mxu0 %v4284
        %4637 = vmatprep.subr.bf16.mxu0 0
        %4638 = vmatpush1.bf16.msra.mxu0 %v4287
        %4639 = vmatprep.subr.bf16.mxu0 0
        %4640 = vmatpush1.bf16.msra.mxu0 %v4290
        %4641 = vmatprep.subr.bf16.mxu0 0
        %4642 = vmatpush1.bf16.msra.mxu0 %v4293
        %4643 = vmatprep.subr.bf16.mxu0 0
        %4644 = vmatpush1.bf16.msra.mxu0 %v4296
        %4645 = vmatprep.subr.bf16.mxu0 0
        %4646 = vmatpush1.bf16.msra.mxu0 %v4299
        %4647 = vmatprep.subr.bf16.mxu0 0
        %4648 = vmatpush1.bf16.msra.mxu0 %v4302
        %4649 = vmatprep.subr.bf16.mxu0 0
        %4650 = vmatpush1.bf16.msra.mxu0 %v4305
        %4651 = vmatprep.subr.bf16.mxu0 0
        %4652 = vmatpush1.bf16.msra.mxu0 %v4308
        %4653 = vmatprep.subr.bf16.mxu0 0
        %4654 = vmatpush1.bf16.msra.mxu0 %v4311
        %4655 = vmatprep.subr.bf16.mxu0 0
        %4656 = vmatpush1.bf16.msra.mxu0 %v4314
        %4657 = vmatprep.subr.bf16.mxu0 0
        %4658 = vmatpush1.bf16.msra.mxu0 %v4317
        %4659 = vmatprep.subr.bf16.mxu0 0
        %4660 = vmatpush1.bf16.msra.mxu0 %v4320
        %4661 = vmatprep.subr.bf16.mxu0 0
        %4662 = vmatpush1.bf16.msra.mxu0 %v4323
        %4663 = vmatprep.mubr.bf16.mxu0 %v3649
        %4664 = vmatmul.mubr.bf16.gmra.mrb[0].mxu0 %v3648
        %v4665 = vpop.f32.mrb[0].mxu0
        %v4666 = vadd.f32 %v4626, %v4665
        %v4667 = vpop.f32.mrb[0].mxu0
        %v4668 = vpop.f32.mrb[0].mxu0
        %v4669 = vpop.f32.mrb[0].mxu0
        %4670 = vdwg.mxu0
        %4671 = vmatprep.subr.bf16.mxu0 0
        %4672 = vmatpush1.bf16.msra.mxu0 %v4326
        %4673 = vmatprep.subr.bf16.mxu0 0
        %4674 = vmatpush1.bf16.msra.mxu0 %v4329
        %4675 = vmatprep.subr.bf16.mxu0 0
        %4676 = vmatpush1.bf16.msra.mxu0 %v4332
        %4677 = vmatprep.subr.bf16.mxu0 0
        %4678 = vmatpush1.bf16.msra.mxu0 %v4335
        %4679 = vmatprep.subr.bf16.mxu0 0
        %4680 = vmatpush1.bf16.msra.mxu0 %v4338
        %4681 = vmatprep.subr.bf16.mxu0 0
        %4682 = vmatpush1.bf16.msra.mxu0 %v4341
        %4683 = vmatprep.subr.bf16.mxu0 0
        %4684 = vmatpush1.bf16.msra.mxu0 %v4344
        %4685 = vmatprep.subr.bf16.mxu0 0
        %4686 = vmatpush1.bf16.msra.mxu0 %v4347
        %4687 = vmatprep.subr.bf16.mxu0 0
        %4688 = vmatpush1.bf16.msra.mxu0 0
        %4689 = vmatprep.subr.bf16.mxu0 0
        %4690 = vmatpush1.bf16.msra.mxu0 0
        %4691 = vmatprep.subr.bf16.mxu0 0
        %4692 = vmatpush1.bf16.msra.mxu0 0
        %4693 = vmatprep.subr.bf16.mxu0 0
        %4694 = vmatpush1.bf16.msra.mxu0 0
        %4695 = vmatprep.subr.bf16.mxu0 0
        %4696 = vmatpush1.bf16.msra.mxu0 0
        %4697 = vmatprep.subr.bf16.mxu0 0
        %4698 = vmatpush1.bf16.msra.mxu0 0
        %4699 = vmatprep.subr.bf16.mxu0 0
        %4700 = vmatpush1.bf16.msra.mxu0 0
        %4701 = vmatprep.subr.bf16.mxu0 0
        %4702 = vmatpush1.bf16.msra.mxu0 0
        %4703 = vmatprep.mubr.bf16.mxu0 0
        %4704 = vmatmul.mubr.bf16.gmra.mrb[0].mxu0 %v3650
        %v4705 = vpop.f32.mrb[0].mxu0
        %v4706 = vadd.f32 %v4666, %v4705
        %v4707 = vpop.f32.mrb[0].mxu0
        %v4708 = vpop.f32.mrb[0].mxu0
        %v4709 = vpop.f32.mrb[0].mxu0
        %4710 = vdwg.mxu0
        %v4711 = vmax.f32 %v4585, 0.0
        %v4712 = vmax.f32 %v4587, 0.0
        %v4713 = vmax.f32 %v4706, 0.0
        %v4714 = vpack.c.bf16 %v4711, %v4711
        %v4715 = vpack.c.bf16 %v4712, %v4712
        %v4716 = vpack.c.bf16 %v4713, %v4713
        %v4717 = vld [vmem:[%s401] sm:$0xf]
        %v4718 = vld [vmem:[%s401 + $0x4] sm:$0xf]
        %v4719 = vld [vmem:[%s401 + $0x8] sm:$0xf]
        %v4720 = vld [vmem:[%s401 + $0xc] sm:$0xf]
        %v4721 = vld [vmem:[%s401 + $0x10] sm:$0xf]
        %v4722 = vld [vmem:[%s401 + $0x14] sm:$0xf]
        %v4723 = vld [vmem:[%s401 + $0x18] sm:$0xf]
        %v4724 = vld [vmem:[%s401 + $0x1c] sm:$0xf]
        %v4725 = vld [vmem:[%s401 + $0x20] sm:$0xf]
        %v4726 = vld [vmem:[%s401 + $0x24] sm:$0xf]
        %v4727 = vld [vmem:[%s401 + $0x28] sm:$0xf]
        %v4728 = vld [vmem:[%s401 + $0x2c] sm:$0xf]
        %v4729 = vld [vmem:[%s401 + $0x30] sm:$0xf]
        %v4730 = vld [vmem:[%s401 + $0x34] sm:$0xf]
        %v4731 = vld [vmem:[%s401 + $0x38] sm:$0xf]
        %v4732 = vld [vmem:[%s401 + $0x3c] sm:$0xf]
        %v4733 = vld [vmem:[%s401 + $0x40] sm:$0xf]
        %v4734 = vld [vmem:[%s401 + $0x44] sm:$0xf]
        %v4735 = vld [vmem:[%s401 + $0x48] sm:$0xf]
        %v4736 = vld [vmem:[%s401 + $0x4c] sm:$0xf]
        %v4737 = vld [vmem:[%s401 + $0x50] sm:$0xf]
        %v4738 = vld [vmem:[%s401 + $0x54] sm:$0xf]
        %v4739 = vld [vmem:[%s401 + $0x58] sm:$0xf]
        %v4740 = vld [vmem:[%s401 + $0x5c] sm:$0xf]
        %v4741 = vld [vmem:[%s401 + $0x60] sm:$0xf]
        %v4742 = vld [vmem:[%s401 + $0x64] sm:$0xf]
        %v4743 = vld [vmem:[%s401 + $0x68] sm:$0xf]
        %v4744 = vld [vmem:[%s401 + $0x6c] sm:$0xf]
        %v4745 = vld [vmem:[%s401 + $0x70] sm:$0xf]
        %v4746 = vld [vmem:[%s401 + $0x74] sm:$0xf]
        %v4747 = vld [vmem:[%s401 + $0x78] sm:$0xf]
        %v4748 = vld [vmem:[%s401 + $0x7c] sm:$0xf]
        %v4749 = vld [vmem:[%s401 + $0x80] sm:$0xf]
        %v4750 = vld [vmem:[%s401 + $0x84] sm:$0xf]
        %v4751 = vld [vmem:[%s401 + $0x88] sm:$0xf]
        %v4752 = vld [vmem:[%s401 + $0x8c] sm:$0xf]
        %v4753 = vld [vmem:[%s401 + $0x90] sm:$0xf]
        %v4754 = vld [vmem:[%s401 + $0x94] sm:$0xf]
        %v4755 = vld [vmem:[%s401 + $0x98] sm:$0xf]
        %v4756 = vld [vmem:[%s401 + $0x9c] sm:$0xf]
        %v4757 = vld [vmem:[%s401 + $0xa0] sm:$0xf]
        %v4758 = vld [vmem:[%s401 + $0xa4] sm:$0xf]
        %v4759 = vld [vmem:[%s401 + $0xa8] sm:$0xf]
        %v4760 = vld [vmem:[%s401 + $0xac] sm:$0xf]
        %v4761 = vld [vmem:[%s401 + $0xb0] sm:$0xf]
        %v4762 = vld [vmem:[%s401 + $0xb4] sm:$0xf]
        %v4763 = vld [vmem:[%s401 + $0xb8] sm:$0xf]
        %v4764 = vld [vmem:[%s401 + $0xbc] sm:$0xf]
        %v4765 = vld [vmem:[%s404] sm:$0x1]
        %v4767 = vlaneseq
        %v4768 = vshrl.u32 %v4767, 7
        %v4769 = vsub.s32 0, %v4768
        %v4770 = vrot.slane %v4765, %v4769
        %v4820 = vunpack.c.l.b16 %v4717
        %v4821 = vunpack.c.l.b16 %v4718
        %v4822 = vunpack.c.l.b16 %v4719
        %v4823 = vunpack.c.l.b16 %v4720
        %v4824 = vunpack.c.l.b16 %v4721
        %v4825 = vunpack.c.l.b16 %v4722
        %v4826 = vunpack.c.l.b16 %v4723
        %v4827 = vunpack.c.l.b16 %v4724
        %v4828 = vunpack.c.l.b16 %v4725
        %v4829 = vunpack.c.l.b16 %v4726
        %v4830 = vunpack.c.l.b16 %v4727
        %v4831 = vunpack.c.l.b16 %v4728
        %v4832 = vunpack.c.l.b16 %v4729
        %v4833 = vunpack.c.l.b16 %v4730
        %v4834 = vunpack.c.l.b16 %v4731
        %v4835 = vunpack.c.l.b16 %v4732
        %v4836 = vunpack.c.l.b16 %v4733
        %v4837 = vunpack.c.l.b16 %v4734
        %v4838 = vunpack.c.l.b16 %v4735
        %v4839 = vunpack.c.l.b16 %v4736
        %v4840 = vunpack.c.l.b16 %v4737
        %v4841 = vunpack.c.l.b16 %v4738
        %v4842 = vunpack.c.l.b16 %v4739
        %v4843 = vunpack.c.l.b16 %v4740
        %v4844 = vunpack.c.l.b16 %v4741
        %v4845 = vunpack.c.l.b16 %v4742
        %v4846 = vunpack.c.l.b16 %v4743
        %v4847 = vunpack.c.l.b16 %v4744
        %v4848 = vunpack.c.l.b16 %v4745
        %v4849 = vunpack.c.l.b16 %v4746
        %v4850 = vunpack.c.l.b16 %v4747
        %v4851 = vunpack.c.l.b16 %v4748
        %v4852 = vunpack.c.l.b16 %v4749
        %v4853 = vunpack.c.l.b16 %v4750
        %v4854 = vunpack.c.l.b16 %v4751
        %v4855 = vunpack.c.l.b16 %v4752
        %v4856 = vunpack.c.l.b16 %v4753
        %v4857 = vunpack.c.l.b16 %v4754
        %v4858 = vunpack.c.l.b16 %v4755
        %v4859 = vunpack.c.l.b16 %v4756
        %v4860 = vunpack.c.l.b16 %v4757
        %v4861 = vunpack.c.l.b16 %v4758
        %v4862 = vunpack.c.l.b16 %v4759
        %v4863 = vunpack.c.l.b16 %v4760
        %v4864 = vunpack.c.l.b16 %v4761
        %v4865 = vunpack.c.l.b16 %v4762
        %v4866 = vunpack.c.l.b16 %v4763
        %v4867 = vunpack.c.l.b16 %v4764
        %v4868 = vpack.c.b16 %v4821, %v4820
        %v4869 = vpack.c.b16 %v4823, %v4822
        %v4870 = vpack.c.b16 %v4825, %v4824
        %v4871 = vpack.c.b16 %v4827, %v4826
        %v4872 = vpack.c.b16 %v4829, %v4828
        %v4873 = vpack.c.b16 %v4831, %v4830
        %v4874 = vpack.c.b16 %v4833, %v4832
        %v4875 = vpack.c.b16 %v4835, %v4834
        %v4876 = vpack.c.b16 %v4837, %v4836
        %v4877 = vpack.c.b16 %v4839, %v4838
        %v4878 = vpack.c.b16 %v4841, %v4840
        %v4879 = vpack.c.b16 %v4843, %v4842
        %v4880 = vpack.c.b16 %v4845, %v4844
        %v4881 = vpack.c.b16 %v4847, %v4846
        %v4882 = vpack.c.b16 %v4849, %v4848
        %v4883 = vpack.c.b16 %v4851, %v4850
        %v4884 = vpack.c.b16 %v4853, %v4852
        %v4885 = vpack.c.b16 %v4855, %v4854
        %v4886 = vpack.c.b16 %v4857, %v4856
        %v4887 = vpack.c.b16 %v4859, %v4858
        %v4888 = vpack.c.b16 %v4861, %v4860
        %v4889 = vpack.c.b16 %v4863, %v4862
        %v4890 = vpack.c.b16 %v4865, %v4864
        %v4891 = vpack.c.b16 %v4867, %v4866
        %4916 = vmatprep.subr.bf16.mxu0 0
        %4917 = vmatpush1.bf16.msra.mxu0 %v4868
        %4918 = vmatprep.subr.bf16.mxu0 0
        %4919 = vmatpush1.bf16.msra.mxu0 %v4869
        %4920 = vmatprep.subr.bf16.mxu0 0
        %4921 = vmatpush1.bf16.msra.mxu0 %v4870
        %4922 = vmatprep.subr.bf16.mxu0 0
        %4923 = vmatpush1.bf16.msra.mxu0 %v4871
        %4924 = vmatprep.subr.bf16.mxu0 0
        %4925 = vmatpush1.bf16.msra.mxu0 %v4872
        %4926 = vmatprep.subr.bf16.mxu0 0
        %4927 = vmatpush1.bf16.msra.mxu0 %v4873
        %4928 = vmatprep.subr.bf16.mxu0 0
        %4929 = vmatpush1.bf16.msra.mxu0 %v4874
        %4930 = vmatprep.subr.bf16.mxu0 0
        %4931 = vmatpush1.bf16.msra.mxu0 %v4875
        %4932 = vmatprep.subr.bf16.mxu0 0
        %4933 = vmatpush1.bf16.msra.mxu0 %v4876
        %4934 = vmatprep.subr.bf16.mxu0 0
        %4935 = vmatpush1.bf16.msra.mxu0 %v4877
        %4936 = vmatprep.subr.bf16.mxu0 0
        %4937 = vmatpush1.bf16.msra.mxu0 %v4878
        %4938 = vmatprep.subr.bf16.mxu0 0
        %4939 = vmatpush1.bf16.msra.mxu0 %v4879
        %4940 = vmatprep.subr.bf16.mxu0 0
        %4941 = vmatpush1.bf16.msra.mxu0 %v4880
        %4942 = vmatprep.subr.bf16.mxu0 0
        %4943 = vmatpush1.bf16.msra.mxu0 %v4881
        %4944 = vmatprep.subr.bf16.mxu0 0
        %4945 = vmatpush1.bf16.msra.mxu0 %v4882
        %4946 = vmatprep.subr.bf16.mxu0 0
        %4947 = vmatpush1.bf16.msra.mxu0 %v4883
        %4948 = vmatprep.mubr.bf16.mxu0 %v4715
        %4949 = vmatmul.mubr.bf16.gmra.mrb[0].mxu0 %v4714
        %v4950 = vpop.f32.mrb[0].mxu0
        %v4951 = vadd.f32 %v4770, %v4950
        %v4952 = vpop.f32.mrb[0].mxu0
        %v4953 = vpop.f32.mrb[0].mxu0
        %v4954 = vpop.f32.mrb[0].mxu0
        %4955 = vdwg.mxu0
        %4956 = vmatprep.subr.bf16.mxu0 0
        %4957 = vmatpush1.bf16.msra.mxu0 %v4884
        %4958 = vmatprep.subr.bf16.mxu0 0
        %4959 = vmatpush1.bf16.msra.mxu0 %v4885
        %4960 = vmatprep.subr.bf16.mxu0 0
        %4961 = vmatpush1.bf16.msra.mxu0 %v4886
        %4962 = vmatprep.subr.bf16.mxu0 0
        %4963 = vmatpush1.bf16.msra.mxu0 %v4887
        %4964 = vmatprep.subr.bf16.mxu0 0
        %4965 = vmatpush1.bf16.msra.mxu0 %v4888
        %4966 = vmatprep.subr.bf16.mxu0 0
        %4967 = vmatpush1.bf16.msra.mxu0 %v4889
        %4968 = vmatprep.subr.bf16.mxu0 0
        %4969 = vmatpush1.bf16.msra.mxu0 %v4890
        %4970 = vmatprep.subr.bf16.mxu0 0
        %4971 = vmatpush1.bf16.msra.mxu0 %v4891
        %4972 = vmatprep.subr.bf16.mxu0 0
        %4973 = vmatpush1.bf16.msra.mxu0 0
        %4974 = vmatprep.subr.bf16.mxu0 0
        %4975 = vmatpush1.bf16.msra.mxu0 0
        %4976 = vmatprep.subr.bf16.mxu0 0
        %4977 = vmatpush1.bf16.msra.mxu0 0
        %4978 = vmatprep.subr.bf16.mxu0 0
        %4979 = vmatpush1.bf16.msra.mxu0 0
        %4980 = vmatprep.subr.bf16.mxu0 0
        %4981 = vmatpush1.bf16.msra.mxu0 0
        %4982 = vmatprep.subr.bf16.mxu0 0
        %4983 = vmatpush1.bf16.msra.mxu0 0
        %4984 = vmatprep.subr.bf16.mxu0 0
        %4985 = vmatpush1.bf16.msra.mxu0 0
        %4986 = vmatprep.subr.bf16.mxu0 0
        %4987 = vmatpush1.bf16.msra.mxu0 0
        %4988 = vmatprep.mubr.bf16.mxu0 0
        %4989 = vmatmul.mubr.bf16.gmra.mrb[0].mxu0 %v4716
        %v4990 = vpop.f32.mrb[0].mxu0
        %v4991 = vadd.f32 %v4951, %v4990
        %v4992 = vpop.f32.mrb[0].mxu0
        %v4993 = vpop.f32.mrb[0].mxu0
        %v4994 = vpop.f32.mrb[0].mxu0
        %4995 = vdwg.mxu0
        %v4996 = vmax.f32 %v4991, 0.0
        %4997 = vst [vmem:[%s408] sm:$0xff] %v4996
      $region52: #{_forward.1} parent=47 // pred_fallthru
        _
      %p4998 = scmp.lt.s32.totalorder %s22, 1
      %s4999 = scalar_select %p4998, %s22, 1
      %s5000 = smul.addr %s4999, 8
      %s5001 = scalar_lea.vmem %s7, %s5000
      // Predicated region
      $region53: #{_forward.1} parent=47 // pred_check
        %p5002 = pneg %p229
      $region54: #{_forward.1} parent=47 // pred_check_branch
        %5004 = sbr.rel (%p5002) target = $region56
      $region55: #{_forward.1} parent=47 // pred_region
        _
      $region56: #{_forward.1} parent=47 // pred_fallthru
        _
    $region48: #{_forward.1} parent=5 // pred_fallthru
      _
    %p5005 = scmp.le.s32.totalorder 2, %s13
    // Predicated region
    $region57: #{_forward.1} parent=5 // pred_check
      %p5006 = pneg %p5005
    $region58: #{_forward.1} parent=5 // pred_check_branch
      %5008 = sbr.rel (%p5006) target = $region60
    $region59: #{_forward.1} parent=5 // pred_region
      %s5009 = ssub.s32 %s13, 2
      // Predicated region
      $region61: #{_forward.1} parent=59 // pred_check
        %p5010 = pneg %p235
      $region62: #{_forward.1} parent=59 // pred_check_branch
        %5012 = sbr.rel (%p5010) target = $region64
      $region63: #{_forward.1} parent=59 // pred_region
        %p5013 = scmp.lt.s32.totalorder %s24, 1
        %s5014 = scalar_select %p5013, %s24, 1
        %s5015 = smul.addr %s5014, 8
        %s5016 = scalar_lea.vmem %s7, %s5015
      $region64: #{_forward.1} parent=59 // pred_fallthru
        _
    $region60: #{_forward.1} parent=5 // pred_fallthru
      _
  $region6: #{_forward.1} parent=0 // loop_footer
    %s17 = sadd.s32 1, %s13
  $region7: #{_forward.1} parent=0 // loop_footer_branch
    %12 = sbr.rel target = $region3
  $region8: #{_forward.1} parent=0 // loop_exit
    _

</llo_original>
